<compile_context>
chip_gen: v7x
topology: tpu7x:2x2x1
jax: 0.10.0
libtpu: 0.0.40
codegen_flags: <defaults>
</compile_context>

<pallas_src>
import functools

import jax
import jax.numpy as jnp
from jax.experimental import pallas as pl
from jax.experimental.pallas import tpu as pltpu

# Scoped VMEM cap: 48 MiB fits every target generation (v7x physical VMEM is 64 MiB, v5e/v6e have
# 128 MiB).  The per-step working set of these kernels is far below it for EfficientNet-sized layers.
_VMEM_LIMIT = 48 * 1024 * 1024


def _round_up(x: int, m: int) -> int:
    return (x + m - 1) // m * m


# ---------------- Pass 1: conv (in-kernel patch build) + y + partial BN statistics ----------------
def _conv_stats_kernel(xph_ref, w_ref, *rest, kh, kw, sh, sw, Ho, Wo_pad, has_mask):
    """One grid step = one image x one output-channel tile.

    xph_ref: (P, 1, Hq, Wq, Cin) bf16   stride-phase decomposed, spatially padded input image
    w_ref:   (kh*kw, Cin, TC)    bf16   per-tap weights (tap t = i*kw + j -> weight[:, :, i, j].T)
    mask_ref (optional): (R, 1)  f32    1.0 on real output columns, 0.0 on the Wo->Wo_pad padding
    y_ref:   (1, R, TC)          bf16   conv output (pre-BN), R = Ho * Wo_pad
    sum_ref / sq_ref: (1, 1, TC) f32    per-channel partial sum / sum of squares (for batch stats)
    """
    if has_mask:
        mask_ref, y_ref, sum_ref, sq_ref = rest
    else:
        y_ref, sum_ref, sq_ref = rest

    R = Ho * Wo_pad
    acc = None
    for i in range(kh):
        for j in range(kw):
            p = (i % sh) * sw + (j % sw)          # stride phase of this tap
            qi, qj = i // sh, j // sw             # offset inside the phase image (stride-1 shift)
            x = xph_ref[p, 0, pl.ds(qi, Ho), pl.ds(qj, Wo_pad), :]    # (Ho, Wo_pad, Cin)
            x2 = x.reshape(R, x.shape[-1])        # free collapse: Wo_pad % 16 == 0 (bf16 packing)
            contrib = jnp.dot(x2, w_ref[i * kw + j], preferred_element_type=jnp.float32)
            acc = contrib if acc is None else acc + contrib           # (R, TC) f32

    if has_mask:
        acc = acc * mask_ref[...]                 # zero the padded (fake) output columns

    y_ref[...] = acc[None].astype(y_ref.dtype)
    sum_ref[...] = jnp.sum(acc, axis=0, keepdims=True)[None]
    sq_ref[...] = jnp.sum(acc * acc, axis=0, keepdims=True)[None]


# --------------- Pass 2: element-wise folded BN + ELU (+ residual), f32 output store --------------
def _bn_act_kernel(y_ref, scale_ref, shift_ref, *rest, has_skip):
    if has_skip:
        skip_ref, o_ref = rest
    else:
        (o_ref,) = rest

    y = y_ref[0].astype(jnp.float32)                       # (TR, TC)
    z = y * scale_ref[...] + shift_ref[...]                # folded BN: one FMA per element
    # ELU(alpha=1.0); clamp so the inactive branch never overflows.
    # TODO(synk): jnp.expm1 would be marginally more accurate near 0 where Mosaic supports it.
    act = jnp.where(z > 0, z, jnp.exp(jnp.minimum(z, 0.0)) - 1.0)
    if has_skip:
        act = act + skip_ref[0].astype(jnp.float32)
    o_ref[...] = act[None].astype(o_ref.dtype)


def conv_bn_act_2d(x, weight, gamma, beta, *, stride=(1, 1), padding="same", skip=False,
                   eps=1e-5, matmul_dtype=jnp.bfloat16):
    """x: (N, Cin, H, W) f32, weight: (Cout, Cin, kh, kw), gamma/beta: (Cout,). Returns NCHW f32.

    Matches the PyTorch module forward with BatchNorm2d in training mode (batch statistics),
    ELU activation and the optional residual add.  groups == 1 only.
    """
    N, Cin, H, W = x.shape
    Cout, Cin_w, kh, kw = weight.shape
    assert Cin_w == Cin, "groups != 1 not supported"   # TODO(synk): grouped / depthwise conv
    sh, sw = (stride, stride) if isinstance(stride, int) else tuple(stride)

    # Mirror the module's padding handling.
    if padding == "valid":
        ph, pw = 0, 0
    elif padding == "same":
        ph, pw = (kh - sh) // 2, (kw - sw) // 2
    else:
        ph, pw = padding

    # Literal module rule: compares the *original* stride argument to the int 1.
    has_skip = bool(skip) and (stride == 1) and (Cin == Cout)

    Ho = (H + 2 * ph - kh) // sh + 1
    Wo = (W + 2 * pw - kw) // sw + 1
    Wo_pad = _round_up(Wo, 16)          # multiple of 16: clean bf16 sublane packing / free collapse
    Hq = Ho + (kh - 1) // sh            # phase-image rows needed (stride-1 halo inside a phase)
    Wq = Wo_pad + (kw - 1) // sw
    P = sh * sw
    R = Ho * Wo_pad
    M = N * Ho * Wo                     # true per-channel element count for the batch statistics

    # ---- glue (reads the input once): NCHW -> NHWC, bf16 early, pad, stride-phase decomposition --
    x_nhwc = jnp.transpose(x, (0, 2, 3, 1))                              # (N, H, W, Cin) f32
    xpad = jnp.pad(x_nhwc.astype(matmul_dtype), ((0, 0), (ph, ph), (pw, pw), (0, 0)))
    Hp1, Wp1 = sh * Hq, sw * Wq
    Hp0, Wp0 = H + 2 * ph, W + 2 * pw
    xpad = jnp.pad(xpad, ((0, 0), (0, max(0, Hp1 - Hp0)), (0, max(0, Wp1 - Wp0)), (0, 0)))
    xpad = xpad[:, :Hp1, :Wp1, :]
    # a strided conv == sum of stride-1 convs over the sh*sw phase-subsampled images (no byte blowup)
    phases = [xpad[:, pi::sh, pj::sw, :] for pi in range(sh) for pj in range(sw)]
    xph = jnp.stack(phases, axis=0)                                      # (P, N, Hq, Wq, Cin)

    # per-tap weights: tap t = i*kw + j  ->  weight[:, :, i, j].T  of shape (Cin, Cout)
    w_taps = (jnp.transpose(weight, (2, 3, 1, 0))
              .reshape(kh * kw, Cin, Cout).astype(matmul_dtype))

    # Output-channel tiling: second "parallel" grid axis; keeps resident weight / accumulator small
    # for very wide layers (re-derived for v7x's 64 MiB VMEM).  For Cout > 128 the tile stays a
    # multiple of 128 (256 when possible -> full MXU width on v6e/v7x).
    if Cout > 512 and Cout % 256 == 0:
        tc = 256
    elif Cout > 512 and Cout % 128 == 0:
        tc = 128
    else:
        tc = Cout
    n_cb = Cout // tc

    need_mask = Wo_pad != Wo
    params1 = pltpu.CompilerParams(dimension_semantics=("parallel", "parallel"),
                                   vmem_limit_bytes=_VMEM_LIMIT)

    in_specs1 = [
        pl.BlockSpec((P, 1, Hq, Wq, Cin), lambda n, cb: (0, n, 0, 0, 0)),
        # Resident weight / BN vectors are tiny in this design (kh*kw*Cin*TC*2 bytes), so default
        # double-buffering is kept; single-buffering them would buy negligible VMEM here.
        pl.BlockSpec((kh * kw, Cin, tc), lambda n, cb: (0, 0, cb)),
    ]
    args1 = [xph, w_taps]
    if need_mask:
        col_valid = (jnp.arange(Wo_pad) < Wo).astype(jnp.float32)
        args1.append(jnp.tile(col_valid, Ho)[:, None])                   # (R, 1)
        in_specs1.append(pl.BlockSpec((R, 1), lambda n, cb: (0, 0)))

    kern1 = functools.partial(_conv_stats_kernel, kh=kh, kw=kw, sh=sh, sw=sw,
                              Ho=Ho, Wo_pad=Wo_pad, has_mask=need_mask)

    y_flat, sum_out, sq_out = pl.pallas_call(
        kern1,
        out_shape=(jax.ShapeDtypeStruct((N, R, Cout), matmul_dtype),
                   jax.ShapeDtypeStruct((N, 1, Cout), jnp.float32),
                   jax.ShapeDtypeStruct((N, 1, Cout), jnp.float32)),
        grid=(N, n_cb),
        in_specs=in_specs1,
        out_specs=(pl.BlockSpec((1, R, tc), lambda n, cb: (n, 0, cb)),
                   pl.BlockSpec((1, 1, tc), lambda n, cb: (n, 0, cb)),
                   pl.BlockSpec((1, 1, tc), lambda n, cb: (n, 0, cb))),
        compiler_params=params1,
        cost_estimate=pl.CostEstimate(
            flops=2 * N * R * Cin * kh * kw * Cout,
            transcendentals=0,
            bytes_accessed=int(xph.size) * 2 + int(w_taps.size) * 2 * N
                           + N * R * Cout * 2 + 2 * N * Cout * 4),
    )(*args1)

    # ---- fold training-mode BN into one scale/shift per channel (tiny, done in XLA) -------------
    # NOTE: single-pass E[y^2]-E[y]^2 in f32 (guarded); statistics come from the same bf16 matmul
    # that produced y, so normalization is self-consistent (tolerance vs an f32 reference loosened).
    total = jnp.sum(sum_out, axis=(0, 1))                                # (Cout,)
    total_sq = jnp.sum(sq_out, axis=(0, 1))
    mean = total / float(M)
    var = jnp.maximum(total_sq / float(M) - mean * mean, 0.0)
    scale = gamma.astype(jnp.float32) * jax.lax.rsqrt(var + eps)
    shift = beta.astype(jnp.float32) - mean * scale
    scale2 = scale.reshape(1, Cout)
    shift2 = shift.reshape(1, Cout)

    # ---- pass 2: stream y, apply folded BN + ELU (+ residual), write f32 output -----------------
    max_rows = 4096
    if R <= max_rows:
        tr = R
    else:
        th = max(d for d in range(1, Ho + 1) if Ho % d == 0 and d * Wo_pad <= max_rows)
        tr = th * Wo_pad                # always an exact divisor of R and a multiple of 16
    n_rb = R // tr

    in_specs2 = [
        pl.BlockSpec((1, tr, tc), lambda n, rb, cb: (n, rb, cb)),
        pl.BlockSpec((1, tc), lambda n, rb, cb: (0, cb)),
        pl.BlockSpec((1, tc), lambda n, rb, cb: (0, cb)),
    ]
    args2 = [y_flat, scale2, shift2]
    skip_bytes = 0
    if has_skip:
        assert Ho == H and Wo == W, "skip requires a shape-preserving conv"
        sk = jnp.pad(x_nhwc.astype(matmul_dtype),
                     ((0, 0), (0, 0), (0, Wo_pad - Wo), (0, 0))).reshape(N, R, Cout)
        in_specs2.append(pl.BlockSpec((1, tr, tc), lambda n, rb, cb: (n, rb, cb)))
        args2.append(sk)                 # bf16, no channel padding
        skip_bytes = N * R * Cout * 2

    kern2 = functools.partial(_bn_act_kernel, has_skip=has_skip)
    params2 = pltpu.CompilerParams(dimension_semantics=("parallel", "parallel", "parallel"),
                                   vmem_limit_bytes=_VMEM_LIMIT)
    out = pl.pallas_call(
        kern2,
        out_shape=jax.ShapeDtypeStruct((N, R, Cout), jnp.float32),
        grid=(N, n_rb, n_cb),
        in_specs=in_specs2,
        out_specs=pl.BlockSpec((1, tr, tc), lambda n, rb, cb: (n, rb, cb)),
        compiler_params=params2,
        cost_estimate=pl.CostEstimate(
            flops=6 * N * R * Cout,
            transcendentals=N * R * Cout,
            bytes_accessed=N * R * Cout * 2 + skip_bytes + N * R * Cout * 4 + 2 * Cout * 4),
    )(*args2)

    y_out = out.reshape(N, Ho, Wo_pad, Cout)[:, :, :Wo, :]
    return jnp.transpose(y_out, (0, 3, 1, 2))   # back to NCHW


def _reference(x, weight, gamma, beta, *, stride, padding, skip, eps=1e-5):
    """Pure-JAX f32 reference of the PyTorch forward (training-mode BN, ELU, optional skip)."""
    N, Cin, H, W = x.shape
    sh, sw = (stride, stride) if isinstance(stride, int) else tuple(stride)
    has_skip = bool(skip) and (stride == 1) and (Cin == weight.shape[0])
    y = jax.lax.conv_general_dilated(
        x, weight, window_strides=(sh, sw),
        padding=[(padding[0], padding[0]), (padding[1], padding[1])],
        dimension_numbers=("NCHW", "OIHW", "NCHW"))
    mean = jnp.mean(y, axis=(0, 2, 3), keepdims=True)
    var = jnp.mean((y - mean) ** 2, axis=(0, 2, 3), keepdims=True)
    z = (y - mean) / jnp.sqrt(var + eps) * gamma.reshape(1, -1, 1, 1) + beta.reshape(1, -1, 1, 1)
    act = jnp.where(z > 0, z, jnp.exp(jnp.minimum(z, 0.0)) - 1.0)
    if has_skip:
        act = act + x
    return act


if __name__ == "__main__":
    key = jax.random.PRNGKey(0)

    # --- Config A: 3x3 conv, stride (1,1), padding (1,1) (== 'same'), no skip.
    N, Cin, H, W, Cout = 2, 4, 16, 16, 8
    kx, kw_, kg, kb = jax.random.split(key, 4)
    xA = jax.random.normal(kx, (N, Cin, H, W), jnp.float32)
    wA = 0.1 * jax.random.normal(kw_, (Cout, Cin, 3, 3), jnp.float32)
    gA = 1.0 + 0.1 * jax.random.normal(kg, (Cout,), jnp.float32)
    bA = 0.05 * jax.random.normal(kb, (Cout,), jnp.float32)
    outA = conv_bn_act_2d(xA, wA, gA, bA, stride=(1, 1), padding=(1, 1), skip=False)
    refA = _reference(xA, wA, gA, bA, stride=(1, 1), padding=(1, 1), skip=False)

    # --- Config B: residual branch active (in == out channels, stride passed as the int 1).
    C = 8
    kx2, kw2, kg2, kb2 = jax.random.split(jax.random.PRNGKey(1), 4)
    xB = jax.random.normal(kx2, (N, C, H, W), jnp.float32)
    wB = 0.1 * jax.random.normal(kw2, (C, C, 3, 3), jnp.float32)
    gB = 1.0 + 0.1 * jax.random.normal(kg2, (C,), jnp.float32)
    bB = 0.05 * jax.random.normal(kb2, (C,), jnp.float32)
    outB = conv_bn_act_2d(xB, wB, gB, bB, stride=1, padding=(1, 1), skip=True)
    refB = _reference(xB, wB, gB, bB, stride=1, padding=(1, 1), skip=True)

    # --- Config C: stride 2, 'valid' padding (exercises the stride-phase path + Wo padding mask).
    kx3, kw3, kg3, kb3 = jax.random.split(jax.random.PRNGKey(2), 4)
    xC = jax.random.normal(kx3, (N, Cin, H, W), jnp.float32)
    wC = 0.1 * jax.random.normal(kw3, (Cout, Cin, 3, 3), jnp.float32)
    gC = 1.0 + 0.1 * jax.random.normal(kg3, (Cout,), jnp.float32)
    bC = 0.05 * jax.random.normal(kb3, (Cout,), jnp.float32)
    outC = conv_bn_act_2d(xC, wC, gC, bC, stride=(2, 2), padding="valid", skip=False)
    refC = _reference(xC, wC, gC, bC, stride=(2, 2), padding=(0, 0), skip=False)

    jax.block_until_ready((outA, outB, outC))
    assert outA.shape == (N, Cout, H, W) and outB.shape == (N, C, H, W)
    assert outC.shape == (N, Cout, 7, 7)
    # bf16 MXU operands + a bf16 conv intermediate -> loosened tolerance vs the f32 reference.
    assert jnp.allclose(outA, refA, atol=3e-2, rtol=3e-2), "config A mismatch"
    assert jnp.allclose(outB, refB, atol=3e-2, rtol=3e-2), "config B mismatch"
    assert jnp.allclose(outC, refC, atol=3e-2, rtol=3e-2), "config C mismatch"
    print("KERNEL_OK")
</pallas_src>

<mosaic_0001>
module attributes {stable_mosaic.version = 11 : i64} {
  func.func @_conv_stats_kernel(%arg0: i32, %arg1: i32, %arg2: memref<1x1x18x18x4xbf16, #tpu.memory_space<vmem>>, %arg3: memref<9x4x8xbf16, #tpu.memory_space<vmem>>, %arg4: memref<1x256x8xbf16, #tpu.memory_space<vmem>>, %arg5: memref<1x1x8xf32, #tpu.memory_space<vmem>>, %arg6: memref<1x1x8xf32, #tpu.memory_space<vmem>>) attributes {dimension_semantics = [#tpu.dimension_semantics<parallel>, #tpu.dimension_semantics<parallel>], iteration_bounds = array<i64: 2, 1>, scalar_prefetch = 0 : i64, scratch_operands = 0 : i64, tpu.core_type = #tpu.core_type<tc>, window_params = [{transform_indices = @transform_0, window_bounds = array<i64: 1, 1, 18, 18, 4>}, {transform_indices = @transform_1, window_bounds = array<i64: 9, 4, 8>}, {transform_indices = @transform_2, window_bounds = array<i64: 1, 256, 8>}, {transform_indices = @transform_3, window_bounds = array<i64: 1, 1, 8>}, {transform_indices = @transform_4, window_bounds = array<i64: 1, 1, 8>}]} {
    %c0 = arith.constant 0 : index
    %c0_0 = arith.constant 0 : index
    %c0_1 = arith.constant 0 : index
    %c0_2 = arith.constant 0 : index
    %c0_3 = arith.constant 0 : index
    %0 = vector.load %arg2[%c0, %c0_0, %c0_1, %c0_2, %c0_3] : memref<1x1x18x18x4xbf16, #tpu.memory_space<vmem>>, vector<1x1x16x16x4xbf16>
    %1 = vector.shape_cast %0 : vector<1x1x16x16x4xbf16> to vector<16x16x4xbf16>
    %2 = vector.shape_cast %1 : vector<16x16x4xbf16> to vector<256x4xbf16>
    %c0_4 = arith.constant 0 : index
    %c0_5 = arith.constant 0 : index
    %c0_6 = arith.constant 0 : index
    %3 = vector.load %arg3[%c0_4, %c0_5, %c0_6] : memref<9x4x8xbf16, #tpu.memory_space<vmem>>, vector<1x4x8xbf16>
    %4 = vector.shape_cast %3 : vector<1x4x8xbf16> to vector<4x8xbf16>
    %cst = arith.constant dense<0.000000e+00> : vector<256x8xf32>
    %5 = tpu.matmul %2, %4, %cst {dimension_numbers = #tpu.dot_dimension_numbers<[1], [0], [0], [1], [0, 0, 1, 1], [], []>} : vector<256x4xbf16>, vector<4x8xbf16>, vector<256x8xf32> -> vector<256x8xf32>
    %c0_7 = arith.constant 0 : index
    %c0_8 = arith.constant 0 : index
    %c0_9 = arith.constant 0 : index
    %c1 = arith.constant 1 : index
    %c0_10 = arith.constant 0 : index
    %6 = vector.load %arg2[%c0_7, %c0_8, %c0_9, %c1, %c0_10] : memref<1x1x18x18x4xbf16, #tpu.memory_space<vmem>>, vector<1x1x16x16x4xbf16>
    %7 = vector.shape_cast %6 : vector<1x1x16x16x4xbf16> to vector<16x16x4xbf16>
    %8 = vector.shape_cast %7 : vector<16x16x4xbf16> to vector<256x4xbf16>
    %c1_11 = arith.constant 1 : index
    %c0_12 = arith.constant 0 : index
    %c0_13 = arith.constant 0 : index
    %9 = vector.load %arg3[%c1_11, %c0_12, %c0_13] : memref<9x4x8xbf16, #tpu.memory_space<vmem>>, vector<1x4x8xbf16>
    %10 = vector.shape_cast %9 : vector<1x4x8xbf16> to vector<4x8xbf16>
    %cst_14 = arith.constant dense<0.000000e+00> : vector<256x8xf32>
    %11 = tpu.matmul %8, %10, %cst_14 {dimension_numbers = #tpu.dot_dimension_numbers<[1], [0], [0], [1], [0, 0, 1, 1], [], []>} : vector<256x4xbf16>, vector<4x8xbf16>, vector<256x8xf32> -> vector<256x8xf32>
    %12 = arith.addf %5, %11 : vector<256x8xf32>
    %c0_15 = arith.constant 0 : index
    %c0_16 = arith.constant 0 : index
    %c0_17 = arith.constant 0 : index
    %c2 = arith.constant 2 : index
    %c0_18 = arith.constant 0 : index
    %13 = vector.load %arg2[%c0_15, %c0_16, %c0_17, %c2, %c0_18] : memref<1x1x18x18x4xbf16, #tpu.memory_space<vmem>>, vector<1x1x16x16x4xbf16>
    %14 = vector.shape_cast %13 : vector<1x1x16x16x4xbf16> to vector<16x16x4xbf16>
    %15 = vector.shape_cast %14 : vector<16x16x4xbf16> to vector<256x4xbf16>
    %c2_19 = arith.constant 2 : index
    %c0_20 = arith.constant 0 : index
    %c0_21 = arith.constant 0 : index
    %16 = vector.load %arg3[%c2_19, %c0_20, %c0_21] : memref<9x4x8xbf16, #tpu.memory_space<vmem>>, vector<1x4x8xbf16>
    %17 = vector.shape_cast %16 : vector<1x4x8xbf16> to vector<4x8xbf16>
    %cst_22 = arith.constant dense<0.000000e+00> : vector<256x8xf32>
    %18 = tpu.matmul %15, %17, %cst_22 {dimension_numbers = #tpu.dot_dimension_numbers<[1], [0], [0], [1], [0, 0, 1, 1], [], []>} : vector<256x4xbf16>, vector<4x8xbf16>, vector<256x8xf32> -> vector<256x8xf32>
    %19 = arith.addf %12, %18 : vector<256x8xf32>
    %c0_23 = arith.constant 0 : index
    %c0_24 = arith.constant 0 : index
    %c1_25 = arith.constant 1 : index
    %c0_26 = arith.constant 0 : index
    %c0_27 = arith.constant 0 : index
    %20 = vector.load %arg2[%c0_23, %c0_24, %c1_25, %c0_26, %c0_27] : memref<1x1x18x18x4xbf16, #tpu.memory_space<vmem>>, vector<1x1x16x16x4xbf16>
    %21 = vector.shape_cast %20 : vector<1x1x16x16x4xbf16> to vector<16x16x4xbf16>
    %22 = vector.shape_cast %21 : vector<16x16x4xbf16> to vector<256x4xbf16>
    %c3 = arith.constant 3 : index
    %c0_28 = arith.constant 0 : index
    %c0_29 = arith.constant 0 : index
    %23 = vector.load %arg3[%c3, %c0_28, %c0_29] : memref<9x4x8xbf16, #tpu.memory_space<vmem>>, vector<1x4x8xbf16>
    %24 = vector.shape_cast %23 : vector<1x4x8xbf16> to vector<4x8xbf16>
    %cst_30 = arith.constant dense<0.000000e+00> : vector<256x8xf32>
    %25 = tpu.matmul %22, %24, %cst_30 {dimension_numbers = #tpu.dot_dimension_numbers<[1], [0], [0], [1], [0, 0, 1, 1], [], []>} : vector<256x4xbf16>, vector<4x8xbf16>, vector<256x8xf32> -> vector<256x8xf32>
    %26 = arith.addf %19, %25 : vector<256x8xf32>
    %c0_31 = arith.constant 0 : index
    %c0_32 = arith.constant 0 : index
    %c1_33 = arith.constant 1 : index
    %c1_34 = arith.constant 1 : index
    %c0_35 = arith.constant 0 : index
    %27 = vector.load %arg2[%c0_31, %c0_32, %c1_33, %c1_34, %c0_35] : memref<1x1x18x18x4xbf16, #tpu.memory_space<vmem>>, vector<1x1x16x16x4xbf16>
    %28 = vector.shape_cast %27 : vector<1x1x16x16x4xbf16> to vector<16x16x4xbf16>
    %29 = vector.shape_cast %28 : vector<16x16x4xbf16> to vector<256x4xbf16>
    %c4 = arith.constant 4 : index
    %c0_36 = arith.constant 0 : index
    %c0_37 = arith.constant 0 : index
    %30 = vector.load %arg3[%c4, %c0_36, %c0_37] : memref<9x4x8xbf16, #tpu.memory_space<vmem>>, vector<1x4x8xbf16>
    %31 = vector.shape_cast %30 : vector<1x4x8xbf16> to vector<4x8xbf16>
    %cst_38 = arith.constant dense<0.000000e+00> : vector<256x8xf32>
    %32 = tpu.matmul %29, %31, %cst_38 {dimension_numbers = #tpu.dot_dimension_numbers<[1], [0], [0], [1], [0, 0, 1, 1], [], []>} : vector<256x4xbf16>, vector<4x8xbf16>, vector<256x8xf32> -> vector<256x8xf32>
    %33 = arith.addf %26, %32 : vector<256x8xf32>
    %c0_39 = arith.constant 0 : index
    %c0_40 = arith.constant 0 : index
    %c1_41 = arith.constant 1 : index
    %c2_42 = arith.constant 2 : index
    %c0_43 = arith.constant 0 : index
    %34 = vector.load %arg2[%c0_39, %c0_40, %c1_41, %c2_42, %c0_43] : memref<1x1x18x18x4xbf16, #tpu.memory_space<vmem>>, vector<1x1x16x16x4xbf16>
    %35 = vector.shape_cast %34 : vector<1x1x16x16x4xbf16> to vector<16x16x4xbf16>
    %36 = vector.shape_cast %35 : vector<16x16x4xbf16> to vector<256x4xbf16>
    %c5 = arith.constant 5 : index
    %c0_44 = arith.constant 0 : index
    %c0_45 = arith.constant 0 : index
    %37 = vector.load %arg3[%c5, %c0_44, %c0_45] : memref<9x4x8xbf16, #tpu.memory_space<vmem>>, vector<1x4x8xbf16>
    %38 = vector.shape_cast %37 : vector<1x4x8xbf16> to vector<4x8xbf16>
    %cst_46 = arith.constant dense<0.000000e+00> : vector<256x8xf32>
    %39 = tpu.matmul %36, %38, %cst_46 {dimension_numbers = #tpu.dot_dimension_numbers<[1], [0], [0], [1], [0, 0, 1, 1], [], []>} : vector<256x4xbf16>, vector<4x8xbf16>, vector<256x8xf32> -> vector<256x8xf32>
    %40 = arith.addf %33, %39 : vector<256x8xf32>
    %c0_47 = arith.constant 0 : index
    %c0_48 = arith.constant 0 : index
    %c2_49 = arith.constant 2 : index
    %c0_50 = arith.constant 0 : index
    %c0_51 = arith.constant 0 : index
    %41 = vector.load %arg2[%c0_47, %c0_48, %c2_49, %c0_50, %c0_51] : memref<1x1x18x18x4xbf16, #tpu.memory_space<vmem>>, vector<1x1x16x16x4xbf16>
    %42 = vector.shape_cast %41 : vector<1x1x16x16x4xbf16> to vector<16x16x4xbf16>
    %43 = vector.shape_cast %42 : vector<16x16x4xbf16> to vector<256x4xbf16>
    %c6 = arith.constant 6 : index
    %c0_52 = arith.constant 0 : index
    %c0_53 = arith.constant 0 : index
    %44 = vector.load %arg3[%c6, %c0_52, %c0_53] : memref<9x4x8xbf16, #tpu.memory_space<vmem>>, vector<1x4x8xbf16>
    %45 = vector.shape_cast %44 : vector<1x4x8xbf16> to vector<4x8xbf16>
    %cst_54 = arith.constant dense<0.000000e+00> : vector<256x8xf32>
    %46 = tpu.matmul %43, %45, %cst_54 {dimension_numbers = #tpu.dot_dimension_numbers<[1], [0], [0], [1], [0, 0, 1, 1], [], []>} : vector<256x4xbf16>, vector<4x8xbf16>, vector<256x8xf32> -> vector<256x8xf32>
    %47 = arith.addf %40, %46 : vector<256x8xf32>
    %c0_55 = arith.constant 0 : index
    %c0_56 = arith.constant 0 : index
    %c2_57 = arith.constant 2 : index
    %c1_58 = arith.constant 1 : index
    %c0_59 = arith.constant 0 : index
    %48 = vector.load %arg2[%c0_55, %c0_56, %c2_57, %c1_58, %c0_59] : memref<1x1x18x18x4xbf16, #tpu.memory_space<vmem>>, vector<1x1x16x16x4xbf16>
    %49 = vector.shape_cast %48 : vector<1x1x16x16x4xbf16> to vector<16x16x4xbf16>
    %50 = vector.shape_cast %49 : vector<16x16x4xbf16> to vector<256x4xbf16>
    %c7 = arith.constant 7 : index
    %c0_60 = arith.constant 0 : index
    %c0_61 = arith.constant 0 : index
    %51 = vector.load %arg3[%c7, %c0_60, %c0_61] : memref<9x4x8xbf16, #tpu.memory_space<vmem>>, vector<1x4x8xbf16>
    %52 = vector.shape_cast %51 : vector<1x4x8xbf16> to vector<4x8xbf16>
    %cst_62 = arith.constant dense<0.000000e+00> : vector<256x8xf32>
    %53 = tpu.matmul %50, %52, %cst_62 {dimension_numbers = #tpu.dot_dimension_numbers<[1], [0], [0], [1], [0, 0, 1, 1], [], []>} : vector<256x4xbf16>, vector<4x8xbf16>, vector<256x8xf32> -> vector<256x8xf32>
    %54 = arith.addf %47, %53 : vector<256x8xf32>
    %c0_63 = arith.constant 0 : index
    %c0_64 = arith.constant 0 : index
    %c2_65 = arith.constant 2 : index
    %c2_66 = arith.constant 2 : index
    %c0_67 = arith.constant 0 : index
    %55 = vector.load %arg2[%c0_63, %c0_64, %c2_65, %c2_66, %c0_67] : memref<1x1x18x18x4xbf16, #tpu.memory_space<vmem>>, vector<1x1x16x16x4xbf16>
    %56 = vector.shape_cast %55 : vector<1x1x16x16x4xbf16> to vector<16x16x4xbf16>
    %57 = vector.shape_cast %56 : vector<16x16x4xbf16> to vector<256x4xbf16>
    %c8 = arith.constant 8 : index
    %c0_68 = arith.constant 0 : index
    %c0_69 = arith.constant 0 : index
    %58 = vector.load %arg3[%c8, %c0_68, %c0_69] : memref<9x4x8xbf16, #tpu.memory_space<vmem>>, vector<1x4x8xbf16>
    %59 = vector.shape_cast %58 : vector<1x4x8xbf16> to vector<4x8xbf16>
    %cst_70 = arith.constant dense<0.000000e+00> : vector<256x8xf32>
    %60 = tpu.matmul %57, %59, %cst_70 {dimension_numbers = #tpu.dot_dimension_numbers<[1], [0], [0], [1], [0, 0, 1, 1], [], []>} : vector<256x4xbf16>, vector<4x8xbf16>, vector<256x8xf32> -> vector<256x8xf32>
    %61 = arith.addf %54, %60 : vector<256x8xf32>
    %62 = vector.shape_cast %61 : vector<256x8xf32> to vector<1x256x8xf32>
    %63 = arith.truncf %62 : vector<1x256x8xf32> to vector<1x256x8xbf16>
    %c0_71 = arith.constant 0 : index
    %c0_72 = arith.constant 0 : index
    %c0_73 = arith.constant 0 : index
    %64 = vector.load %arg4[%c0_71, %c0_72, %c0_73] : memref<1x256x8xbf16, #tpu.memory_space<vmem>>, vector<1x256x8xbf16>
    tpu.vector_store %arg4[%c0_71, %c0_72, %c0_73], %63 {strides = array<i32>} : memref<1x256x8xbf16, #tpu.memory_space<vmem>>, vector<1x256x8xbf16>,
    %cst_74 = arith.constant dense<0.000000e+00> : vector<8xf32>
    %65 = vector.multi_reduction <add>, %61, %cst_74 [0] : vector<256x8xf32> to vector<8xf32>
    %66 = vector.shape_cast %65 : vector<8xf32> to vector<1x8xf32>
    %67 = vector.shape_cast %66 : vector<1x8xf32> to vector<1x1x8xf32>
    %c0_75 = arith.constant 0 : index
    %c0_76 = arith.constant 0 : index
    %c0_77 = arith.constant 0 : index
    %68 = vector.load %arg5[%c0_75, %c0_76, %c0_77] : memref<1x1x8xf32, #tpu.memory_space<vmem>>, vector<1x1x8xf32>
    tpu.vector_store %arg5[%c0_75, %c0_76, %c0_77], %67 {strides = array<i32>} : memref<1x1x8xf32, #tpu.memory_space<vmem>>, vector<1x1x8xf32>,
    %69 = arith.mulf %61, %61 : vector<256x8xf32>
    %cst_78 = arith.constant dense<0.000000e+00> : vector<8xf32>
    %70 = vector.multi_reduction <add>, %69, %cst_78 [0] : vector<256x8xf32> to vector<8xf32>
    %71 = vector.shape_cast %70 : vector<8xf32> to vector<1x8xf32>
    %72 = vector.shape_cast %71 : vector<1x8xf32> to vector<1x1x8xf32>
    %c0_79 = arith.constant 0 : index
    %c0_80 = arith.constant 0 : index
    %c0_81 = arith.constant 0 : index
    %73 = vector.load %arg6[%c0_79, %c0_80, %c0_81] : memref<1x1x8xf32, #tpu.memory_space<vmem>>, vector<1x1x8xf32>
    tpu.vector_store %arg6[%c0_79, %c0_80, %c0_81], %72 {strides = array<i32>} : memref<1x1x8xf32, #tpu.memory_space<vmem>>, vector<1x1x8xf32>,
    return
  }
  func.func @transform_0(%arg0: i32, %arg1: i32) -> (i32, i32, i32, i32, i32) {
    %c0_i32 = arith.constant 0 : i32
    %c0_i32_0 = arith.constant 0 : i32
    %c0_i32_1 = arith.constant 0 : i32
    %c0_i32_2 = arith.constant 0 : i32
    %c0_i32_3 = arith.constant 0 : i32
    return %c0_i32, %arg0, %c0_i32_0, %c0_i32_1, %c0_i32_2 : i32, i32, i32, i32, i32
  }
  func.func @transform_1(%arg0: i32, %arg1: i32) -> (i32, i32, i32) {
    %c0_i32 = arith.constant 0 : i32
    %c0_i32_0 = arith.constant 0 : i32
    %c0_i32_1 = arith.constant 0 : i32
    return %c0_i32, %c0_i32_0, %arg1 : i32, i32, i32
  }
  func.func @transform_2(%arg0: i32, %arg1: i32) -> (i32, i32, i32) {
    %c0_i32 = arith.constant 0 : i32
    %c0_i32_0 = arith.constant 0 : i32
    return %arg0, %c0_i32, %arg1 : i32, i32, i32
  }
  func.func @transform_3(%arg0: i32, %arg1: i32) -> (i32, i32, i32) {
    %c0_i32 = arith.constant 0 : i32
    %c0_i32_0 = arith.constant 0 : i32
    return %arg0, %c0_i32, %arg1 : i32, i32, i32
  }
  func.func @transform_4(%arg0: i32, %arg1: i32) -> (i32, i32, i32) {
    %c0_i32 = arith.constant 0 : i32
    %c0_i32_0 = arith.constant 0 : i32
    return %arg0, %c0_i32, %arg1 : i32, i32, i32
  }
}

</mosaic_0001>

<llo_original>
// kernel: tpu_custom_call.1
$region0: #{tpu_custom_call.1}
  #allocation0 [shape = 'u32[]', space=smem, size = 0x4, offset = 0x4, fixed_abs, tag = 'smem constant byte address 0x4 - core index']
  #allocation1 [shape = 'u32[144,128]{1,0:T(1,128)}', space=vmem, size = 0x12000, scoped, tag = 'internal scratch']
  %s0 = inlined_call_operand.vmem [shape: bf16[1,2,18,18,4], index: 0, kind: input, shape index: {}]
  %s1 = inlined_call_operand.vmem [shape: bf16[9,4,8], index: 1, kind: input, shape index: {}]
  %s2 = inlined_call_operand.vmem [shape: bf16[2,256,8], index: 2, kind: output, shape index: {0}]
  %s3 = inlined_call_operand.hbm [shape: f32[2,1,8], index: 3, kind: output, shape index: {1}]
  %s4 = inlined_call_operand.hbm [shape: f32[2,1,8], index: 4, kind: output, shape index: {2}]
  %5 = xla_tuple %s2, %s3, %s4
  %s6 = sld [smem:[#allocation0]]
  $region57: #{tpu_custom_call.1} parent=0
    _
  %s8 = ssub.s32 1, %s6
  %s9 = scalar_select 0, %s8, %s6
  $region1: #{tpu_custom_call.1} parent=0
    #allocation2 [shape = 'u8[1024]{0}', space=vmem, size = 0x400, scoped, tag = 'output window, operand 1']
    #allocation3 [shape = 's32[2]{0}', space=sflag, size = 0x8, scoped, tag = 'scoped memory for tpu_custom_call.1']
    #allocation4 [shape = 'u8[1024]{0}', space=vmem, size = 0x400, scoped, tag = 'output window, operand 2']
    #allocation5 [shape = 's32[2]{0}', space=sflag, size = 0x8, scoped, tag = 'scoped memory for tpu_custom_call.1']
    %10 = vsyncpa [#allocation3], 0
    %s11 = scalar_lea.sflag [#allocation3], 1
    %12 = vsyncpa %s11, 0
    %13 = vsyncpa [#allocation5], 0
    %s14 = scalar_lea.sflag [#allocation5], 1
    %15 = vsyncpa %s14, 0
    loop: start=0, step=1, limit=4
    $region2: #{tpu_custom_call.1} parent=1 // loop_pre_header
      _
    $region3: #{tpu_custom_call.1} parent=1 // loop_header
      %s17 = sphi 0, %s21
      %p18 = scmp.ge.s32.totalorder %s17, 4
      %s24 = sphi 0, %s36
      %s25 = sphi 0, %s32
      %s26 = sphi 0, %s24
      %s27 = sphi 0, %s25
      %s28 = sphi 0, %s26
      %s29 = sphi 0, %s27
      %s39 = sphi 0, %s41
      %s42 = sphi 0, %s39
      %s43 = sphi 0, %s42
      %s59 = sphi 0, %s43
      %s65 = sphi 0, %s67
      %s68 = sphi 0, %s65
      %s69 = sphi 0, %s68
      %s85 = sphi 0, %s69
      %s93 = sphi 0, %s95
      %s96 = sphi 0, %s93
      %s97 = sphi 0, %s96
      %s113 = sphi 0, %s97
      %s121 = sphi 0, %s123
      %s124 = sphi 0, %s121
      %s125 = sphi 0, %s124
      %s141 = sphi 0, %s125
      %s149 = sphi 0, %s151
      %s152 = sphi 0, %s149
      %s153 = sphi 0, %s152
      %s169 = sphi 0, %s153
    $region4: #{tpu_custom_call.1} parent=1 // loop_header_branch
      %20 = sbr.rel (%p18) target = $region8
    $region5: #{tpu_custom_call.1} parent=1 // loop_body
      %s22 = ssub.s32 %s17, 1
      %s23 = ssub.s32 %s17, 2
      %s30 = sadd.s32 1, %s25
      %p31 = scmp.ge.s32.totalorder %s30, 1
      %s32 = scalar_select %p31, 0, %s30
      %s33 = sadd.s32 1, %s24
      %s34 = scalar_select %p31, %s33, %s24
      %p35 = scmp.ge.s32.totalorder %s34, 2
      %s36 = scalar_select %p35, 0, %s34
      %s37 = ssub.s32 %s24, %s36
      %p38 = scmp.eq.s32.totalorder %s37, 0
      %s40 = sadd.s32 %s39, 1
      %s41 = scalar_select %p38, %s39, %s40
      %p44 = pneg %p38
      %p45 = scmp.eq.s32.totalorder %s17, 1
      %p46 = por %p44, %p45
      %p47 = scmp.ne.s32.totalorder %s39, %s42
      %p48 = scmp.eq.s32.totalorder %s17, 0
      %p49 = por %p47, %p48
      %p50 = scmp.ne.s32.totalorder %s39, %s42
      %p51 = scmp.eq.s32.totalorder %s22, 1
      %p52 = por %p50, %p51
      %p53 = scmp.ne.s32.totalorder %s42, %s43
      %p54 = scmp.eq.s32.totalorder %s22, 0
      %p55 = por %p53, %p54
      %p56 = scmp.ne.s32.totalorder %s42, %s43
      %p57 = scmp.eq.s32.totalorder %s23, 1
      %p58 = por %p56, %p57
      %p60 = scmp.ne.s32.totalorder %s43, %s59
      %p61 = scmp.eq.s32.totalorder %s23, 0
      %p62 = por %p60, %p61
      %s63 = ssub.s32 %s25, %s32
      %p64 = scmp.eq.s32.totalorder %s63, 0
      %s66 = sadd.s32 %s65, 1
      %s67 = scalar_select %p64, %s65, %s66
      %p70 = pneg %p64
      %p71 = scmp.eq.s32.totalorder %s17, 1
      %p72 = por %p70, %p71
      %p73 = scmp.ne.s32.totalorder %s65, %s68
      %p74 = scmp.eq.s32.totalorder %s17, 0
      %p75 = por %p73, %p74
      %p76 = scmp.ne.s32.totalorder %s65, %s68
      %p77 = scmp.eq.s32.totalorder %s22, 1
      %p78 = por %p76, %p77
      %p79 = scmp.ne.s32.totalorder %s68, %s69
      %p80 = scmp.eq.s32.totalorder %s22, 0
      %p81 = por %p79, %p80
      %p82 = scmp.ne.s32.totalorder %s68, %s69
      %p83 = scmp.eq.s32.totalorder %s23, 1
      %p84 = por %p82, %p83
      %p86 = scmp.ne.s32.totalorder %s69, %s85
      %p87 = scmp.eq.s32.totalorder %s23, 0
      %p88 = por %p86, %p87
      %s89 = ssub.s32 %s24, %s36
      %s90 = ssub.s32 %s25, %s32
      %s91 = sor.u32 %s89, %s90
      %p92 = scmp.eq.s32.totalorder %s91, 0
      %s94 = sadd.s32 %s93, 1
      %s95 = scalar_select %p92, %s93, %s94
      %p98 = pneg %p92
      %p99 = scmp.eq.s32.totalorder %s17, 1
      %p100 = por %p98, %p99
      %p101 = scmp.ne.s32.totalorder %s93, %s96
      %p102 = scmp.eq.s32.totalorder %s17, 0
      %p103 = por %p101, %p102
      %p104 = scmp.ne.s32.totalorder %s93, %s96
      %p105 = scmp.eq.s32.totalorder %s22, 1
      %p106 = por %p104, %p105
      %p107 = scmp.ne.s32.totalorder %s96, %s97
      %p108 = scmp.eq.s32.totalorder %s22, 0
      %p109 = por %p107, %p108
      %p110 = scmp.ne.s32.totalorder %s96, %s97
      %p111 = scmp.eq.s32.totalorder %s23, 1
      %p112 = por %p110, %p111
      %p114 = scmp.ne.s32.totalorder %s97, %s113
      %p115 = scmp.eq.s32.totalorder %s23, 0
      %p116 = por %p114, %p115
      %s117 = ssub.s32 %s24, %s36
      %s118 = ssub.s32 %s25, %s32
      %s119 = sor.u32 %s117, %s118
      %p120 = scmp.eq.s32.totalorder %s119, 0
      %s122 = sadd.s32 %s121, 1
      %s123 = scalar_select %p120, %s121, %s122
      %p126 = pneg %p120
      %p127 = scmp.eq.s32.totalorder %s17, 1
      %p128 = por %p126, %p127
      %p129 = scmp.ne.s32.totalorder %s121, %s124
      %p130 = scmp.eq.s32.totalorder %s17, 0
      %p131 = por %p129, %p130
      %p132 = scmp.ne.s32.totalorder %s121, %s124
      %p133 = scmp.eq.s32.totalorder %s22, 1
      %p134 = por %p132, %p133
      %p135 = scmp.ne.s32.totalorder %s124, %s125
      %p136 = scmp.eq.s32.totalorder %s22, 0
      %p137 = por %p135, %p136
      %p138 = scmp.ne.s32.totalorder %s124, %s125
      %p139 = scmp.eq.s32.totalorder %s23, 1
      %p140 = por %p138, %p139
      %p142 = scmp.ne.s32.totalorder %s125, %s141
      %p143 = scmp.eq.s32.totalorder %s23, 0
      %p144 = por %p142, %p143
      %s145 = ssub.s32 %s24, %s36
      %s146 = ssub.s32 %s25, %s32
      %s147 = sor.u32 %s145, %s146
      %p148 = scmp.eq.s32.totalorder %s147, 0
      %s150 = sadd.s32 %s149, 1
      %s151 = scalar_select %p148, %s149, %s150
      %p154 = pneg %p148
      %p155 = scmp.eq.s32.totalorder %s17, 1
      %p156 = por %p154, %p155
      %p157 = scmp.ne.s32.totalorder %s149, %s152
      %p158 = scmp.eq.s32.totalorder %s17, 0
      %p159 = por %p157, %p158
      %p160 = scmp.ne.s32.totalorder %s149, %s152
      %p161 = scmp.eq.s32.totalorder %s22, 1
      %p162 = por %p160, %p161
      %p163 = scmp.ne.s32.totalorder %s152, %s153
      %p164 = scmp.eq.s32.totalorder %s22, 0
      %p165 = por %p163, %p164
      %p166 = scmp.ne.s32.totalorder %s152, %s153
      %p167 = scmp.eq.s32.totalorder %s23, 1
      %p168 = por %p166, %p167
      %p170 = scmp.ne.s32.totalorder %s153, %s169
      %p171 = scmp.eq.s32.totalorder %s23, 0
      %p172 = por %p170, %p171
      %p173 = scmp.le.s32.totalorder 1, %s17
      %p174 = scmp.lt.s32.totalorder %s17, 3
      %p175 = pnand %p173, %p174
      %p176 = pneg %p175
      // Predicated region
      $region9: #{tpu_custom_call.1} parent=5 // pred_check
        _
      $region10: #{tpu_custom_call.1} parent=5 // pred_check_branch
        %178 = sbr.rel (%p175) target = $region12
      $region11: #{tpu_custom_call.1} parent=5 // pred_region
        %s179 = ssub.s32 %s17, 1
        // Predicated region
        $region13: #{tpu_custom_call.1} parent=11 // pred_check
          %p180 = pneg %p81
        $region14: #{tpu_custom_call.1} parent=11 // pred_check_branch
          %182 = sbr.rel (%p180) target = $region16
        $region15: #{tpu_custom_call.1} parent=11 // pred_region
          %p183 = scmp.lt.s32.totalorder %s27, 0
          %s184 = scalar_select %p183, %s27, 0
          %s185 = smul.addr %s184, 2
          %s186 = scalar_lea.vmem %s1, %s185
        $region16: #{tpu_custom_call.1} parent=11 // pred_fallthru
          _
      $region12: #{tpu_custom_call.1} parent=5 // pred_fallthru
        _
      %p187 = scmp.lt.s32.totalorder %s17, 2
      // Predicated region
      $region17: #{tpu_custom_call.1} parent=5 // pred_check
        %p188 = pneg %p187
      $region18: #{tpu_custom_call.1} parent=5 // pred_check_branch
        %190 = sbr.rel (%p188) target = $region20
      $region19: #{tpu_custom_call.1} parent=5 // pred_region
        // Predicated region
        $region21: #{tpu_custom_call.1} parent=19 // pred_check
          %p191 = pneg %p49
        $region22: #{tpu_custom_call.1} parent=19 // pred_check_branch
          %193 = sbr.rel (%p191) target = $region24
        $region23: #{tpu_custom_call.1} parent=19 // pred_region
          %p194 = scmp.lt.s32.totalorder %s24, 1
          %s195 = scalar_select %p194, %s24, 1
          %s196 = smul.addr %s195, 54
          %s197 = smul.addr %s196, 4
          %s198 = scalar_lea.vmem %s0, %s197
        $region24: #{tpu_custom_call.1} parent=19 // pred_fallthru
          _
      $region20: #{tpu_custom_call.1} parent=5 // pred_fallthru
        _
      %p199 = scmp.le.s32.totalorder 1, %s17
      %p200 = scmp.lt.s32.totalorder %s17, 3
      %p201 = pnand %p199, %p200
      %p202 = pneg %p201
      // Predicated region
      $region25: #{tpu_custom_call.1} parent=5 // pred_check
        _
      $region26: #{tpu_custom_call.1} parent=5 // pred_check_branch
        %204 = sbr.rel (%p201) target = $region28
      $region27: #{tpu_custom_call.1} parent=5 // pred_region
        %s205 = ssub.s32 %s17, 1
        %p206 = scmp.lt.s32.totalorder %s26, 1
        %s207 = scalar_select %p206, %s26, 1
        %s208 = smul.addr %s207, 54
        %s209 = smul.addr %s208, 4
        %s210 = scalar_lea.vmem %s0, %s209
        %p211 = pneg %p55
        %p212 = pneg %p52
        %p213 = scmp.lt.s32.totalorder %s27, 0
        %s214 = scalar_select %p213, %s27, 0
        %s215 = smul.addr %s214, 2
        %s216 = scalar_lea.vmem %s1, %s215
        %p217 = pneg %p81
        %p218 = pneg %p78
        %p219 = pneg %p109
        %p220 = pneg %p106
        %p221 = scmp.lt.s32.totalorder %s26, 1
        %s222 = scalar_select %p221, %s26, 1
        %p223 = scmp.lt.s32.totalorder %s27, 0
        %s224 = scalar_select %p223, %s27, 0
        %s225 = smul.addr %s222, 32
        %s226 = sadd.s32 %s224, %s225
        %s227 = smul.addr %s226, 4
        %s228 = scalar_lea.vmem %s2, %s227
        %p229 = pneg %p137
        %p230 = pneg %p134
        %s231 = sand.u32 %s124, 1
        %s232 = scalar_lea.sflag [#allocation3], %s231
        %s233 = sand.u32 %s124, 1
        %s234 = scalar_lea.vmem [#allocation2], %s233
        %p235 = pneg %p165
        %p236 = pneg %p162
        %s237 = sand.u32 %s152, 1
        %s238 = scalar_lea.sflag [#allocation5], %s237
        %s239 = sand.u32 %s152, 1
        %s240 = scalar_lea.vmem [#allocation4], %s239
        %p241 = scmp.lt.s32.totalorder %s26, 1
        %s242 = scalar_select %p241, %s26, 1
        %s243 = smul.addr %s242, 54
        %s244 = smul.addr %s243, 4
        %s245 = scalar_lea.vmem %s0, %s244
        %p246 = scmp.lt.s32.totalorder %s27, 0
        %s247 = scalar_select %p246, %s27, 0
        %s248 = smul.addr %s247, 2
        %s249 = scalar_lea.vmem %s1, %s248
        %p250 = scmp.lt.s32.totalorder %s26, 1
        %s251 = scalar_select %p250, %s26, 1
        %p252 = scmp.lt.s32.totalorder %s27, 0
        %s253 = scalar_select %p252, %s27, 0
        %s254 = smul.addr %s251, 32
        %s255 = sadd.s32 %s253, %s254
        %s256 = smul.addr %s255, 4
        %s257 = scalar_lea.vmem %s2, %s256
        %v259 = vld [vmem:[%s245] sm:$0xf]
        %v260 = vld [vmem:[%s245 + $0x4] sm:$0xf]
        %v261 = vld [vmem:[%s245 + $0xc] sm:$0xf]
        %v262 = vld [vmem:[%s245 + $0x10] sm:$0xf]
        %v263 = vld [vmem:[%s245 + $0x18] sm:$0xf]
        %v264 = vld [vmem:[%s245 + $0x1c] sm:$0xf]
        %v265 = vld [vmem:[%s245 + $0x24] sm:$0xf]
        %v266 = vld [vmem:[%s245 + $0x28] sm:$0xf]
        %v267 = vld [vmem:[%s245 + $0x30] sm:$0xf]
        %v268 = vld [vmem:[%s245 + $0x34] sm:$0xf]
        %v269 = vld [vmem:[%s245 + $0x3c] sm:$0xf]
        %v270 = vld [vmem:[%s245 + $0x40] sm:$0xf]
        %v271 = vld [vmem:[%s245 + $0x48] sm:$0xf]
        %v272 = vld [vmem:[%s245 + $0x4c] sm:$0xf]
        %v273 = vld [vmem:[%s245 + $0x54] sm:$0xf]
        %v274 = vld [vmem:[%s245 + $0x58] sm:$0xf]
        %v275 = vld [vmem:[%s245 + $0x60] sm:$0xf]
        %v276 = vld [vmem:[%s245 + $0x64] sm:$0xf]
        %v277 = vld [vmem:[%s245 + $0x6c] sm:$0xf]
        %v278 = vld [vmem:[%s245 + $0x70] sm:$0xf]
        %v279 = vld [vmem:[%s245 + $0x78] sm:$0xf]
        %v280 = vld [vmem:[%s245 + $0x7c] sm:$0xf]
        %v281 = vld [vmem:[%s245 + $0x84] sm:$0xf]
        %v282 = vld [vmem:[%s245 + $0x88] sm:$0xf]
        %v283 = vld [vmem:[%s245 + $0x90] sm:$0xf]
        %v284 = vld [vmem:[%s245 + $0x94] sm:$0xf]
        %v285 = vld [vmem:[%s245 + $0x9c] sm:$0xf]
        %v286 = vld [vmem:[%s245 + $0xa0] sm:$0xf]
        %v287 = vld [vmem:[%s245 + $0xa8] sm:$0xf]
        %v288 = vld [vmem:[%s245 + $0xac] sm:$0xf]
        %v289 = vld [vmem:[%s245 + $0xb4] sm:$0xf]
        %v290 = vld [vmem:[%s245 + $0xb8] sm:$0xf]
        %v291 = vld [vmem:[%s249] sm:$0x3]
        %v292 = vld [vmem:[%s245 + $0x8] sm:$0x1]
        %v293 = vld [vmem:[%s245 + $0x14] sm:$0x1]
        %v294 = vld [vmem:[%s245 + $0x20] sm:$0x1]
        %v295 = vld [vmem:[%s245 + $0x2c] sm:$0x1]
        %v296 = vld [vmem:[%s245 + $0x38] sm:$0x1]
        %v297 = vld [vmem:[%s245 + $0x44] sm:$0x1]
        %v298 = vld [vmem:[%s245 + $0x50] sm:$0x1]
        %v299 = vld [vmem:[%s245 + $0x5c] sm:$0x1]
        %v300 = vld [vmem:[%s245 + $0x68] sm:$0x1]
        %v301 = vld [vmem:[%s245 + $0x74] sm:$0x1]
        %v302 = vld [vmem:[%s245 + $0x80] sm:$0x1]
        %v303 = vld [vmem:[%s245 + $0x8c] sm:$0x1]
        %v304 = vld [vmem:[%s245 + $0x98] sm:$0x1]
        %v305 = vld [vmem:[%s245 + $0xa4] sm:$0x1]
        %v306 = vld [vmem:[%s245 + $0xb0] sm:$0x1]
        %v307 = vld [vmem:[%s245 + $0xbc] sm:$0x1]
        %vm308 = vsmask.f32 3328
        %vm309 = vsmask.f32 7440
        %vm310 = vmor %vm308, %vm309
        %v312 = vshrl.u32 %v259, 16
        %v314 = vrot.slane %v312, 4
        %v315 = vshll.u32 %v259, 16
        %v317 = vrot.slane %v315, 5
        %v318 = vor.u32 %v314, %v317
        %v319 = vrot.slane %v318, 4
        %v321 = vshll.u32 %v260, 16
        %v323 = vrot.slane %v321, 5
        %v324 = vsel %vm310, %v319, %v323
        %v325 = vshrl.u32 %v260, 16
        %v327 = vrot.slane %v325, 4
        %v328 = vor.u32 %v327, %v323
        %v329 = vrot.slane %v328, 4
        %v331 = vshll.u32 %v292, 16
        %v333 = vrot.slane %v331, 5
        %v334 = vsel %vm310, %v329, %v333
        %v336 = vshrl.u32 %v261, 16
        %v338 = vrot.slane %v336, 4
        %v339 = vshll.u32 %v261, 16
        %v341 = vrot.slane %v339, 5
        %v342 = vor.u32 %v338, %v341
        %v343 = vrot.slane %v342, 4
        %v345 = vshll.u32 %v262, 16
        %v347 = vrot.slane %v345, 5
        %v348 = vsel %vm310, %v343, %v347
        %v349 = vshrl.u32 %v262, 16
        %v351 = vrot.slane %v349, 4
        %v352 = vor.u32 %v351, %v347
        %v353 = vrot.slane %v352, 4
        %v355 = vshll.u32 %v293, 16
        %v357 = vrot.slane %v355, 5
        %v358 = vsel %vm310, %v353, %v357
        %v360 = vshrl.u32 %v263, 16
        %v362 = vrot.slane %v360, 4
        %v363 = vshll.u32 %v263, 16
        %v365 = vrot.slane %v363, 5
        %v366 = vor.u32 %v362, %v365
        %v367 = vrot.slane %v366, 4
        %v369 = vshll.u32 %v264, 16
        %v371 = vrot.slane %v369, 5
        %v372 = vsel %vm310, %v367, %v371
        %v373 = vshrl.u32 %v264, 16
        %v375 = vrot.slane %v373, 4
        %v376 = vor.u32 %v375, %v371
        %v377 = vrot.slane %v376, 4
        %v379 = vshll.u32 %v294, 16
        %v381 = vrot.slane %v379, 5
        %v382 = vsel %vm310, %v377, %v381
        %v384 = vshrl.u32 %v265, 16
        %v386 = vrot.slane %v384, 4
        %v387 = vshll.u32 %v265, 16
        %v389 = vrot.slane %v387, 5
        %v390 = vor.u32 %v386, %v389
        %v391 = vrot.slane %v390, 4
        %v393 = vshll.u32 %v266, 16
        %v395 = vrot.slane %v393, 5
        %v396 = vsel %vm310, %v391, %v395
        %v397 = vshrl.u32 %v266, 16
        %v399 = vrot.slane %v397, 4
        %v400 = vor.u32 %v399, %v395
        %v401 = vrot.slane %v400, 4
        %v403 = vshll.u32 %v295, 16
        %v405 = vrot.slane %v403, 5
        %v406 = vsel %vm310, %v401, %v405
        %v408 = vshrl.u32 %v267, 16
        %v410 = vrot.slane %v408, 4
        %v411 = vshll.u32 %v267, 16
        %v413 = vrot.slane %v411, 5
        %v414 = vor.u32 %v410, %v413
        %v415 = vrot.slane %v414, 4
        %v417 = vshll.u32 %v268, 16
        %v419 = vrot.slane %v417, 5
        %v420 = vsel %vm310, %v415, %v419
        %v421 = vshrl.u32 %v268, 16
        %v423 = vrot.slane %v421, 4
        %v424 = vor.u32 %v423, %v419
        %v425 = vrot.slane %v424, 4
        %v427 = vshll.u32 %v296, 16
        %v429 = vrot.slane %v427, 5
        %v430 = vsel %vm310, %v425, %v429
        %v432 = vshrl.u32 %v269, 16
        %v434 = vrot.slane %v432, 4
        %v435 = vshll.u32 %v269, 16
        %v437 = vrot.slane %v435, 5
        %v438 = vor.u32 %v434, %v437
        %v439 = vrot.slane %v438, 4
        %v441 = vshll.u32 %v270, 16
        %v443 = vrot.slane %v441, 5
        %v444 = vsel %vm310, %v439, %v443
        %v445 = vshrl.u32 %v270, 16
        %v447 = vrot.slane %v445, 4
        %v448 = vor.u32 %v447, %v443
        %v449 = vrot.slane %v448, 4
        %v451 = vshll.u32 %v297, 16
        %v453 = vrot.slane %v451, 5
        %v454 = vsel %vm310, %v449, %v453
        %v456 = vshrl.u32 %v271, 16
        %v458 = vrot.slane %v456, 4
        %v459 = vshll.u32 %v271, 16
        %v461 = vrot.slane %v459, 5
        %v462 = vor.u32 %v458, %v461
        %v463 = vrot.slane %v462, 4
        %v465 = vshll.u32 %v272, 16
        %v467 = vrot.slane %v465, 5
        %v468 = vsel %vm310, %v463, %v467
        %v469 = vshrl.u32 %v272, 16
        %v471 = vrot.slane %v469, 4
        %v472 = vor.u32 %v471, %v467
        %v473 = vrot.slane %v472, 4
        %v475 = vshll.u32 %v298, 16
        %v477 = vrot.slane %v475, 5
        %v478 = vsel %vm310, %v473, %v477
        %v480 = vshrl.u32 %v273, 16
        %v482 = vrot.slane %v480, 4
        %v483 = vshll.u32 %v273, 16
        %v485 = vrot.slane %v483, 5
        %v486 = vor.u32 %v482, %v485
        %v487 = vrot.slane %v486, 4
        %v489 = vshll.u32 %v274, 16
        %v491 = vrot.slane %v489, 5
        %v492 = vsel %vm310, %v487, %v491
        %v493 = vshrl.u32 %v274, 16
        %v495 = vrot.slane %v493, 4
        %v496 = vor.u32 %v495, %v491
        %v497 = vrot.slane %v496, 4
        %v499 = vshll.u32 %v299, 16
        %v501 = vrot.slane %v499, 5
        %v502 = vsel %vm310, %v497, %v501
        %v504 = vshrl.u32 %v275, 16
        %v506 = vrot.slane %v504, 4
        %v507 = vshll.u32 %v275, 16
        %v509 = vrot.slane %v507, 5
        %v510 = vor.u32 %v506, %v509
        %v511 = vrot.slane %v510, 4
        %v513 = vshll.u32 %v276, 16
        %v515 = vrot.slane %v513, 5
        %v516 = vsel %vm310, %v511, %v515
        %v517 = vshrl.u32 %v276, 16
        %v519 = vrot.slane %v517, 4
        %v520 = vor.u32 %v519, %v515
        %v521 = vrot.slane %v520, 4
        %v523 = vshll.u32 %v300, 16
        %v525 = vrot.slane %v523, 5
        %v526 = vsel %vm310, %v521, %v525
        %v528 = vshrl.u32 %v277, 16
        %v530 = vrot.slane %v528, 4
        %v531 = vshll.u32 %v277, 16
        %v533 = vrot.slane %v531, 5
        %v534 = vor.u32 %v530, %v533
        %v535 = vrot.slane %v534, 4
        %v537 = vshll.u32 %v278, 16
        %v539 = vrot.slane %v537, 5
        %v540 = vsel %vm310, %v535, %v539
        %v541 = vshrl.u32 %v278, 16
        %v543 = vrot.slane %v541, 4
        %v544 = vor.u32 %v543, %v539
        %v545 = vrot.slane %v544, 4
        %v547 = vshll.u32 %v301, 16
        %v549 = vrot.slane %v547, 5
        %v550 = vsel %vm310, %v545, %v549
        %v552 = vshrl.u32 %v279, 16
        %v554 = vrot.slane %v552, 4
        %v555 = vshll.u32 %v279, 16
        %v557 = vrot.slane %v555, 5
        %v558 = vor.u32 %v554, %v557
        %v559 = vrot.slane %v558, 4
        %v561 = vshll.u32 %v280, 16
        %v563 = vrot.slane %v561, 5
        %v564 = vsel %vm310, %v559, %v563
        %v565 = vshrl.u32 %v280, 16
        %v567 = vrot.slane %v565, 4
        %v568 = vor.u32 %v567, %v563
        %v569 = vrot.slane %v568, 4
        %v571 = vshll.u32 %v302, 16
        %v573 = vrot.slane %v571, 5
        %v574 = vsel %vm310, %v569, %v573
        %v576 = vshrl.u32 %v281, 16
        %v578 = vrot.slane %v576, 4
        %v579 = vshll.u32 %v281, 16
        %v581 = vrot.slane %v579, 5
        %v582 = vor.u32 %v578, %v581
        %v583 = vrot.slane %v582, 4
        %v585 = vshll.u32 %v282, 16
        %v587 = vrot.slane %v585, 5
        %v588 = vsel %vm310, %v583, %v587
        %v589 = vshrl.u32 %v282, 16
        %v591 = vrot.slane %v589, 4
        %v592 = vor.u32 %v591, %v587
        %v593 = vrot.slane %v592, 4
        %v595 = vshll.u32 %v303, 16
        %v597 = vrot.slane %v595, 5
        %v598 = vsel %vm310, %v593, %v597
        %v600 = vshrl.u32 %v283, 16
        %v602 = vrot.slane %v600, 4
        %v603 = vshll.u32 %v283, 16
        %v605 = vrot.slane %v603, 5
        %v606 = vor.u32 %v602, %v605
        %v607 = vrot.slane %v606, 4
        %v609 = vshll.u32 %v284, 16
        %v611 = vrot.slane %v609, 5
        %v612 = vsel %vm310, %v607, %v611
        %v613 = vshrl.u32 %v284, 16
        %v615 = vrot.slane %v613, 4
        %v616 = vor.u32 %v615, %v611
        %v617 = vrot.slane %v616, 4
        %v619 = vshll.u32 %v304, 16
        %v621 = vrot.slane %v619, 5
        %v622 = vsel %vm310, %v617, %v621
        %v624 = vshrl.u32 %v285, 16
        %v626 = vrot.slane %v624, 4
        %v627 = vshll.u32 %v285, 16
        %v629 = vrot.slane %v627, 5
        %v630 = vor.u32 %v626, %v629
        %v631 = vrot.slane %v630, 4
        %v633 = vshll.u32 %v286, 16
        %v635 = vrot.slane %v633, 5
        %v636 = vsel %vm310, %v631, %v635
        %v637 = vshrl.u32 %v286, 16
        %v639 = vrot.slane %v637, 4
        %v640 = vor.u32 %v639, %v635
        %v641 = vrot.slane %v640, 4
        %v643 = vshll.u32 %v305, 16
        %v645 = vrot.slane %v643, 5
        %v646 = vsel %vm310, %v641, %v645
        %v648 = vshrl.u32 %v287, 16
        %v650 = vrot.slane %v648, 4
        %v651 = vshll.u32 %v287, 16
        %v653 = vrot.slane %v651, 5
        %v654 = vor.u32 %v650, %v653
        %v655 = vrot.slane %v654, 4
        %v657 = vshll.u32 %v288, 16
        %v659 = vrot.slane %v657, 5
        %v660 = vsel %vm310, %v655, %v659
        %v661 = vshrl.u32 %v288, 16
        %v663 = vrot.slane %v661, 4
        %v664 = vor.u32 %v663, %v659
        %v665 = vrot.slane %v664, 4
        %v667 = vshll.u32 %v306, 16
        %v669 = vrot.slane %v667, 5
        %v670 = vsel %vm310, %v665, %v669
        %v672 = vshrl.u32 %v289, 16
        %v674 = vrot.slane %v672, 4
        %v675 = vshll.u32 %v289, 16
        %v677 = vrot.slane %v675, 5
        %v678 = vor.u32 %v674, %v677
        %v679 = vrot.slane %v678, 4
        %v681 = vshll.u32 %v290, 16
        %v683 = vrot.slane %v681, 5
        %v684 = vsel %vm310, %v679, %v683
        %v685 = vshrl.u32 %v290, 16
        %v687 = vrot.slane %v685, 4
        %v688 = vor.u32 %v687, %v683
        %v689 = vrot.slane %v688, 4
        %v691 = vshll.u32 %v307, 16
        %v693 = vrot.slane %v691, 5
        %v694 = vsel %vm310, %v689, %v693
        %s695 = scalar_lea.vmem %s249, 2
        %v696 = vld [vmem:[%s695] sm:$0x3]
        %v697 = vunpack.c.l.b16 %v324
        %v698 = vunpack.c.l.b16 %v334
        %v699 = vunpack.c.l.b16 %v348
        %v700 = vunpack.c.l.b16 %v358
        %v701 = vunpack.c.l.b16 %v372
        %v702 = vunpack.c.l.b16 %v382
        %v703 = vunpack.c.l.b16 %v396
        %v704 = vunpack.c.l.b16 %v406
        %v705 = vunpack.c.l.b16 %v420
        %v706 = vunpack.c.l.b16 %v430
        %v707 = vunpack.c.l.b16 %v444
        %v708 = vunpack.c.l.b16 %v454
        %v709 = vunpack.c.l.b16 %v468
        %v710 = vunpack.c.l.b16 %v478
        %v711 = vunpack.c.l.b16 %v492
        %v712 = vunpack.c.l.b16 %v502
        %v713 = vunpack.c.l.b16 %v516
        %v714 = vunpack.c.l.b16 %v526
        %v715 = vunpack.c.l.b16 %v540
        %v716 = vunpack.c.l.b16 %v550
        %v717 = vunpack.c.l.b16 %v564
        %v718 = vunpack.c.l.b16 %v574
        %v719 = vunpack.c.l.b16 %v588
        %v720 = vunpack.c.l.b16 %v598
        %v721 = vunpack.c.l.b16 %v612
        %v722 = vunpack.c.l.b16 %v622
        %v723 = vunpack.c.l.b16 %v636
        %v724 = vunpack.c.l.b16 %v646
        %v725 = vunpack.c.l.b16 %v660
        %v726 = vunpack.c.l.b16 %v670
        %v727 = vunpack.c.l.b16 %v684
        %v728 = vunpack.c.l.b16 %v694
        %v729 = vpack.c.b16 %v698, %v697
        %v730 = vpack.c.b16 %v700, %v699
        %v731 = vpack.c.b16 %v702, %v701
        %v732 = vpack.c.b16 %v704, %v703
        %v733 = vpack.c.b16 %v706, %v705
        %v734 = vpack.c.b16 %v708, %v707
        %v735 = vpack.c.b16 %v710, %v709
        %v736 = vpack.c.b16 %v712, %v711
        %v737 = vpack.c.b16 %v714, %v713
        %v738 = vpack.c.b16 %v716, %v715
        %v739 = vpack.c.b16 %v718, %v717
        %v740 = vpack.c.b16 %v720, %v719
        %v741 = vpack.c.b16 %v722, %v721
        %v742 = vpack.c.b16 %v724, %v723
        %v743 = vpack.c.b16 %v726, %v725
        %v744 = vpack.c.b16 %v728, %v727
        %vm745 = vcmask 31744
        %v747 = vsel %vm745, %v729, 0
        %v750 = vsel %vm745, %v730, 0
        %v753 = vsel %vm745, %v731, 0
        %v756 = vsel %vm745, %v732, 0
        %v759 = vsel %vm745, %v733, 0
        %v762 = vsel %vm745, %v734, 0
        %v765 = vsel %vm745, %v735, 0
        %v768 = vsel %vm745, %v736, 0
        %v771 = vsel %vm745, %v737, 0
        %v774 = vsel %vm745, %v738, 0
        %v777 = vsel %vm745, %v739, 0
        %v780 = vsel %vm745, %v740, 0
        %v783 = vsel %vm745, %v741, 0
        %v786 = vsel %vm745, %v742, 0
        %v789 = vsel %vm745, %v743, 0
        %v792 = vsel %vm745, %v744, 0
        %vm794 = vcmask 1041408
        %v796 = vsel %vm794, %v696, 0
        %798 = vmatprep.subr.bf16.mxu0 0
        %799 = vmatpush1.bf16.msra.mxu0 %v796
        %800 = vmatprep.subr.bf16.mxu0 0
        %801 = vmatpush1.bf16.msra.mxu0 0
        %802 = vmatprep.subr.bf16.mxu0 0
        %803 = vmatpush1.bf16.msra.mxu0 0
        %804 = vmatprep.subr.bf16.mxu0 0
        %805 = vmatpush1.bf16.msra.mxu0 0
        %806 = vmatprep.subr.bf16.mxu0 0
        %807 = vmatpush1.bf16.msra.mxu0 0
        %808 = vmatprep.subr.bf16.mxu0 0
        %809 = vmatpush1.bf16.msra.mxu0 0
        %810 = vmatprep.subr.bf16.mxu0 0
        %811 = vmatpush1.bf16.msra.mxu0 0
        %812 = vmatprep.subr.bf16.mxu0 0
        %813 = vmatpush1.bf16.msra.mxu0 0
        %814 = vmatprep.subr.bf16.mxu0 0
        %815 = vmatpush1.bf16.msra.mxu0 0
        %816 = vmatprep.subr.bf16.mxu0 0
        %817 = vmatpush1.bf16.msra.mxu0 0
        %818 = vmatprep.subr.bf16.mxu0 0
        %819 = vmatpush1.bf16.msra.mxu0 0
        %820 = vmatprep.subr.bf16.mxu0 0
        %821 = vmatpush1.bf16.msra.mxu0 0
        %822 = vmatprep.subr.bf16.mxu0 0
        %823 = vmatpush1.bf16.msra.mxu0 0
        %824 = vmatprep.subr.bf16.mxu0 0
        %825 = vmatpush1.bf16.msra.mxu0 0
        %826 = vmatprep.subr.bf16.mxu0 0
        %827 = vmatpush1.bf16.msra.mxu0 0
        %828 = vmatprep.subr.bf16.mxu0 0
        %829 = vmatpush1.bf16.msra.mxu0 0
        %830 = vmatprep.mubr.bf16.mxu0 0
        %831 = vmatmul.mubr.bf16.gmra.mrb[0].mxu0 %v747
        %v832 = vpop.f32.mrb[0].mxu0
        %v833 = vadd.f32 0.0, %v832
        %v834 = vpop.f32.mrb[0].mxu0
        %v835 = vpop.f32.mrb[0].mxu0
        %v836 = vadd.f32 0.0, %v835
        %v837 = vpop.f32.mrb[0].mxu0
        %838 = vmatprep.mubr.bf16.mxu0 0
        %839 = vmatmul.mubr.bf16.gmra.mrb[0].mxu0 %v750
        %v840 = vpop.f32.mrb[0].mxu0
        %v841 = vadd.f32 0.0, %v840
        %v842 = vpop.f32.mrb[0].mxu0
        %v843 = vpop.f32.mrb[0].mxu0
        %v844 = vadd.f32 0.0, %v843
        %v845 = vpop.f32.mrb[0].mxu0
        %846 = vmatprep.mubr.bf16.mxu0 0
        %847 = vmatmul.mubr.bf16.gmra.mrb[0].mxu0 %v753
        %v848 = vpop.f32.mrb[0].mxu0
        %v849 = vadd.f32 0.0, %v848
        %v850 = vpop.f32.mrb[0].mxu0
        %v851 = vpop.f32.mrb[0].mxu0
        %v852 = vadd.f32 0.0, %v851
        %v853 = vpop.f32.mrb[0].mxu0
        %854 = vmatprep.mubr.bf16.mxu0 0
        %855 = vmatmul.mubr.bf16.gmra.mrb[0].mxu0 %v756
        %v856 = vpop.f32.mrb[0].mxu0
        %v857 = vadd.f32 0.0, %v856
        %v858 = vpop.f32.mrb[0].mxu0
        %v859 = vpop.f32.mrb[0].mxu0
        %v860 = vadd.f32 0.0, %v859
        %v861 = vpop.f32.mrb[0].mxu0
        %862 = vmatprep.mubr.bf16.mxu0 0
        %863 = vmatmul.mubr.bf16.gmra.mrb[0].mxu0 %v759
        %v864 = vpop.f32.mrb[0].mxu0
        %v865 = vadd.f32 0.0, %v864
        %v866 = vpop.f32.mrb[0].mxu0
        %v867 = vpop.f32.mrb[0].mxu0
        %v868 = vadd.f32 0.0, %v867
        %v869 = vpop.f32.mrb[0].mxu0
        %870 = vmatprep.mubr.bf16.mxu0 0
        %871 = vmatmul.mubr.bf16.gmra.mrb[0].mxu0 %v762
        %v872 = vpop.f32.mrb[0].mxu0
        %v873 = vadd.f32 0.0, %v872
        %v874 = vpop.f32.mrb[0].mxu0
        %v875 = vpop.f32.mrb[0].mxu0
        %v876 = vadd.f32 0.0, %v875
        %v877 = vpop.f32.mrb[0].mxu0
        %878 = vmatprep.mubr.bf16.mxu0 0
        %879 = vmatmul.mubr.bf16.gmra.mrb[0].mxu0 %v765
        %v880 = vpop.f32.mrb[0].mxu0
        %v881 = vadd.f32 0.0, %v880
        %v882 = vpop.f32.mrb[0].mxu0
        %v883 = vpop.f32.mrb[0].mxu0
        %v884 = vadd.f32 0.0, %v883
        %v885 = vpop.f32.mrb[0].mxu0
        %886 = vmatprep.mubr.bf16.mxu0 0
        %887 = vmatmul.mubr.bf16.gmra.mrb[0].mxu0 %v768
        %v888 = vpop.f32.mrb[0].mxu0
        %v889 = vadd.f32 0.0, %v888
        %v890 = vpop.f32.mrb[0].mxu0
        %v891 = vpop.f32.mrb[0].mxu0
        %v892 = vadd.f32 0.0, %v891
        %v893 = vpop.f32.mrb[0].mxu0
        %894 = vmatprep.mubr.bf16.mxu0 0
        %895 = vmatmul.mubr.bf16.gmra.mrb[0].mxu0 %v771
        %v896 = vpop.f32.mrb[0].mxu0
        %v897 = vadd.f32 0.0, %v896
        %v898 = vpop.f32.mrb[0].mxu0
        %v899 = vpop.f32.mrb[0].mxu0
        %v900 = vadd.f32 0.0, %v899
        %v901 = vpop.f32.mrb[0].mxu0
        %902 = vmatprep.mubr.bf16.mxu0 0
        %903 = vmatmul.mubr.bf16.gmra.mrb[0].mxu0 %v774
        %v904 = vpop.f32.mrb[0].mxu0
        %v905 = vadd.f32 0.0, %v904
        %v906 = vpop.f32.mrb[0].mxu0
        %v907 = vpop.f32.mrb[0].mxu0
        %v908 = vadd.f32 0.0, %v907
        %v909 = vpop.f32.mrb[0].mxu0
        %910 = vmatprep.mubr.bf16.mxu0 0
        %911 = vmatmul.mubr.bf16.gmra.mrb[0].mxu0 %v777
        %v912 = vpop.f32.mrb[0].mxu0
        %v913 = vadd.f32 0.0, %v912
        %v914 = vpop.f32.mrb[0].mxu0
        %v915 = vpop.f32.mrb[0].mxu0
        %v916 = vadd.f32 0.0, %v915
        %v917 = vpop.f32.mrb[0].mxu0
        %918 = vmatprep.mubr.bf16.mxu0 0
        %919 = vmatmul.mubr.bf16.gmra.mrb[0].mxu0 %v780
        %v920 = vpop.f32.mrb[0].mxu0
        %v921 = vadd.f32 0.0, %v920
        %v922 = vpop.f32.mrb[0].mxu0
        %v923 = vpop.f32.mrb[0].mxu0
        %v924 = vadd.f32 0.0, %v923
        %v925 = vpop.f32.mrb[0].mxu0
        %926 = vmatprep.mubr.bf16.mxu0 0
        %927 = vmatmul.mubr.bf16.gmra.mrb[0].mxu0 %v783
        %v928 = vpop.f32.mrb[0].mxu0
        %v929 = vadd.f32 0.0, %v928
        %v930 = vpop.f32.mrb[0].mxu0
        %v931 = vpop.f32.mrb[0].mxu0
        %v932 = vadd.f32 0.0, %v931
        %v933 = vpop.f32.mrb[0].mxu0
        %934 = vmatprep.mubr.bf16.mxu0 0
        %935 = vmatmul.mubr.bf16.gmra.mrb[0].mxu0 %v786
        %v936 = vpop.f32.mrb[0].mxu0
        %v937 = vadd.f32 0.0, %v936
        %v938 = vpop.f32.mrb[0].mxu0
        %v939 = vpop.f32.mrb[0].mxu0
        %v940 = vadd.f32 0.0, %v939
        %v941 = vpop.f32.mrb[0].mxu0
        %942 = vmatprep.mubr.bf16.mxu0 0
        %943 = vmatmul.mubr.bf16.gmra.mrb[0].mxu0 %v789
        %v944 = vpop.f32.mrb[0].mxu0
        %v945 = vadd.f32 0.0, %v944
        %v946 = vpop.f32.mrb[0].mxu0
        %v947 = vpop.f32.mrb[0].mxu0
        %v948 = vadd.f32 0.0, %v947
        %v949 = vpop.f32.mrb[0].mxu0
        %950 = vmatprep.mubr.bf16.mxu0 0
        %951 = vmatmul.mubr.bf16.gmra.mrb[0].mxu0 %v792
        %v952 = vpop.f32.mrb[0].mxu0
        %v953 = vadd.f32 0.0, %v952
        %v954 = vpop.f32.mrb[0].mxu0
        %v955 = vpop.f32.mrb[0].mxu0
        %v956 = vadd.f32 0.0, %v955
        %v957 = vpop.f32.mrb[0].mxu0
        %958 = vdwg.mxu0
        %v991 = vunpack.c.l.b16 %v259
        %v992 = vunpack.c.l.b16 %v260
        %v993 = vunpack.c.l.b16 %v261
        %v994 = vunpack.c.l.b16 %v262
        %v995 = vunpack.c.l.b16 %v263
        %v996 = vunpack.c.l.b16 %v264
        %v997 = vunpack.c.l.b16 %v265
        %v998 = vunpack.c.l.b16 %v266
        %v999 = vunpack.c.l.b16 %v267
        %v1000 = vunpack.c.l.b16 %v268
        %v1001 = vunpack.c.l.b16 %v269
        %v1002 = vunpack.c.l.b16 %v270
        %v1003 = vunpack.c.l.b16 %v271
        %v1004 = vunpack.c.l.b16 %v272
        %v1005 = vunpack.c.l.b16 %v273
        %v1006 = vunpack.c.l.b16 %v274
        %v1007 = vunpack.c.l.b16 %v275
        %v1008 = vunpack.c.l.b16 %v276
        %v1009 = vunpack.c.l.b16 %v277
        %v1010 = vunpack.c.l.b16 %v278
        %v1011 = vunpack.c.l.b16 %v279
        %v1012 = vunpack.c.l.b16 %v280
        %v1013 = vunpack.c.l.b16 %v281
        %v1014 = vunpack.c.l.b16 %v282
        %v1015 = vunpack.c.l.b16 %v283
        %v1016 = vunpack.c.l.b16 %v284
        %v1017 = vunpack.c.l.b16 %v285
        %v1018 = vunpack.c.l.b16 %v286
        %v1019 = vunpack.c.l.b16 %v287
        %v1020 = vunpack.c.l.b16 %v288
        %v1021 = vunpack.c.l.b16 %v289
        %v1022 = vunpack.c.l.b16 %v290
        %v1023 = vpack.c.b16 %v992, %v991
        %v1024 = vpack.c.b16 %v994, %v993
        %v1025 = vpack.c.b16 %v996, %v995
        %v1026 = vpack.c.b16 %v998, %v997
        %v1027 = vpack.c.b16 %v1000, %v999
        %v1028 = vpack.c.b16 %v1002, %v1001
        %v1029 = vpack.c.b16 %v1004, %v1003
        %v1030 = vpack.c.b16 %v1006, %v1005
        %v1031 = vpack.c.b16 %v1008, %v1007
        %v1032 = vpack.c.b16 %v1010, %v1009
        %v1033 = vpack.c.b16 %v1012, %v1011
        %v1034 = vpack.c.b16 %v1014, %v1013
        %v1035 = vpack.c.b16 %v1016, %v1015
        %v1036 = vpack.c.b16 %v1018, %v1017
        %v1037 = vpack.c.b16 %v1020, %v1019
        %v1038 = vpack.c.b16 %v1022, %v1021
        %v1040 = vsel %vm745, %v1023, 0
        %v1043 = vsel %vm745, %v1024, 0
        %v1046 = vsel %vm745, %v1025, 0
        %v1049 = vsel %vm745, %v1026, 0
        %v1052 = vsel %vm745, %v1027, 0
        %v1055 = vsel %vm745, %v1028, 0
        %v1058 = vsel %vm745, %v1029, 0
        %v1061 = vsel %vm745, %v1030, 0
        %v1064 = vsel %vm745, %v1031, 0
        %v1067 = vsel %vm745, %v1032, 0
        %v1070 = vsel %vm745, %v1033, 0
        %v1073 = vsel %vm745, %v1034, 0
        %v1076 = vsel %vm745, %v1035, 0
        %v1079 = vsel %vm745, %v1036, 0
        %v1082 = vsel %vm745, %v1037, 0
        %v1085 = vsel %vm745, %v1038, 0
        %v1088 = vsel %vm794, %v291, 0
        %1090 = vmatprep.subr.bf16.mxu0 0
        %1091 = vmatpush1.bf16.msra.mxu0 %v1088
        %1092 = vmatprep.subr.bf16.mxu0 0
        %1093 = vmatpush1.bf16.msra.mxu0 0
        %1094 = vmatprep.subr.bf16.mxu0 0
        %1095 = vmatpush1.bf16.msra.mxu0 0
        %1096 = vmatprep.subr.bf16.mxu0 0
        %1097 = vmatpush1.bf16.msra.mxu0 0
        %1098 = vmatprep.subr.bf16.mxu0 0
        %1099 = vmatpush1.bf16.msra.mxu0 0
        %1100 = vmatprep.subr.bf16.mxu0 0
        %1101 = vmatpush1.bf16.msra.mxu0 0
        %1102 = vmatprep.subr.bf16.mxu0 0
        %1103 = vmatpush1.bf16.msra.mxu0 0
        %1104 = vmatprep.subr.bf16.mxu0 0
        %1105 = vmatpush1.bf16.msra.mxu0 0
        %1106 = vmatprep.subr.bf16.mxu0 0
        %1107 = vmatpush1.bf16.msra.mxu0 0
        %1108 = vmatprep.subr.bf16.mxu0 0
        %1109 = vmatpush1.bf16.msra.mxu0 0
        %1110 = vmatprep.subr.bf16.mxu0 0
        %1111 = vmatpush1.bf16.msra.mxu0 0
        %1112 = vmatprep.subr.bf16.mxu0 0
        %1113 = vmatpush1.bf16.msra.mxu0 0
        %1114 = vmatprep.subr.bf16.mxu0 0
        %1115 = vmatpush1.bf16.msra.mxu0 0
        %1116 = vmatprep.subr.bf16.mxu0 0
        %1117 = vmatpush1.bf16.msra.mxu0 0
        %1118 = vmatprep.subr.bf16.mxu0 0
        %1119 = vmatpush1.bf16.msra.mxu0 0
        %1120 = vmatprep.subr.bf16.mxu0 0
        %1121 = vmatpush1.bf16.msra.mxu0 0
        %1122 = vmatprep.mubr.bf16.mxu0 0
        %1123 = vmatmul.mubr.bf16.gmra.mrb[0].mxu0 %v1040
        %v1124 = vpop.f32.mrb[0].mxu0
        %v1125 = vadd.f32 %v833, %v1124
        %v1126 = vpop.f32.mrb[0].mxu0
        %v1127 = vpop.f32.mrb[0].mxu0
        %v1128 = vadd.f32 %v836, %v1127
        %v1129 = vpop.f32.mrb[0].mxu0
        %1130 = vmatprep.mubr.bf16.mxu0 0
        %1131 = vmatmul.mubr.bf16.gmra.mrb[0].mxu0 %v1043
        %v1132 = vpop.f32.mrb[0].mxu0
        %v1133 = vadd.f32 %v841, %v1132
        %v1134 = vpop.f32.mrb[0].mxu0
        %v1135 = vpop.f32.mrb[0].mxu0
        %v1136 = vadd.f32 %v844, %v1135
        %v1137 = vpop.f32.mrb[0].mxu0
        %1138 = vmatprep.mubr.bf16.mxu0 0
        %1139 = vmatmul.mubr.bf16.gmra.mrb[0].mxu0 %v1046
        %v1140 = vpop.f32.mrb[0].mxu0
        %v1141 = vadd.f32 %v849, %v1140
        %v1142 = vpop.f32.mrb[0].mxu0
        %v1143 = vpop.f32.mrb[0].mxu0
        %v1144 = vadd.f32 %v852, %v1143
        %v1145 = vpop.f32.mrb[0].mxu0
        %1146 = vmatprep.mubr.bf16.mxu0 0
        %1147 = vmatmul.mubr.bf16.gmra.mrb[0].mxu0 %v1049
        %v1148 = vpop.f32.mrb[0].mxu0
        %v1149 = vadd.f32 %v857, %v1148
        %v1150 = vpop.f32.mrb[0].mxu0
        %v1151 = vpop.f32.mrb[0].mxu0
        %v1152 = vadd.f32 %v860, %v1151
        %v1153 = vpop.f32.mrb[0].mxu0
        %1154 = vmatprep.mubr.bf16.mxu0 0
        %1155 = vmatmul.mubr.bf16.gmra.mrb[0].mxu0 %v1052
        %v1156 = vpop.f32.mrb[0].mxu0
        %v1157 = vadd.f32 %v865, %v1156
        %v1158 = vpop.f32.mrb[0].mxu0
        %v1159 = vpop.f32.mrb[0].mxu0
        %v1160 = vadd.f32 %v868, %v1159
        %v1161 = vpop.f32.mrb[0].mxu0
        %1162 = vmatprep.mubr.bf16.mxu0 0
        %1163 = vmatmul.mubr.bf16.gmra.mrb[0].mxu0 %v1055
        %v1164 = vpop.f32.mrb[0].mxu0
        %v1165 = vadd.f32 %v873, %v1164
        %v1166 = vpop.f32.mrb[0].mxu0
        %v1167 = vpop.f32.mrb[0].mxu0
        %v1168 = vadd.f32 %v876, %v1167
        %v1169 = vpop.f32.mrb[0].mxu0
        %1170 = vmatprep.mubr.bf16.mxu0 0
        %1171 = vmatmul.mubr.bf16.gmra.mrb[0].mxu0 %v1058
        %v1172 = vpop.f32.mrb[0].mxu0
        %v1173 = vadd.f32 %v881, %v1172
        %v1174 = vpop.f32.mrb[0].mxu0
        %v1175 = vpop.f32.mrb[0].mxu0
        %v1176 = vadd.f32 %v884, %v1175
        %v1177 = vpop.f32.mrb[0].mxu0
        %1178 = vmatprep.mubr.bf16.mxu0 0
        %1179 = vmatmul.mubr.bf16.gmra.mrb[0].mxu0 %v1061
        %v1180 = vpop.f32.mrb[0].mxu0
        %v1181 = vadd.f32 %v889, %v1180
        %v1182 = vpop.f32.mrb[0].mxu0
        %v1183 = vpop.f32.mrb[0].mxu0
        %v1184 = vadd.f32 %v892, %v1183
        %v1185 = vpop.f32.mrb[0].mxu0
        %1186 = vmatprep.mubr.bf16.mxu0 0
        %1187 = vmatmul.mubr.bf16.gmra.mrb[0].mxu0 %v1064
        %v1188 = vpop.f32.mrb[0].mxu0
        %v1189 = vadd.f32 %v897, %v1188
        %v1190 = vpop.f32.mrb[0].mxu0
        %v1191 = vpop.f32.mrb[0].mxu0
        %v1192 = vadd.f32 %v900, %v1191
        %v1193 = vpop.f32.mrb[0].mxu0
        %1194 = vmatprep.mubr.bf16.mxu0 0
        %1195 = vmatmul.mubr.bf16.gmra.mrb[0].mxu0 %v1067
        %v1196 = vpop.f32.mrb[0].mxu0
        %v1197 = vadd.f32 %v905, %v1196
        %v1198 = vpop.f32.mrb[0].mxu0
        %v1199 = vpop.f32.mrb[0].mxu0
        %v1200 = vadd.f32 %v908, %v1199
        %v1201 = vpop.f32.mrb[0].mxu0
        %1202 = vmatprep.mubr.bf16.mxu0 0
        %1203 = vmatmul.mubr.bf16.gmra.mrb[0].mxu0 %v1070
        %v1204 = vpop.f32.mrb[0].mxu0
        %v1205 = vadd.f32 %v913, %v1204
        %v1206 = vpop.f32.mrb[0].mxu0
        %v1207 = vpop.f32.mrb[0].mxu0
        %v1208 = vadd.f32 %v916, %v1207
        %v1209 = vpop.f32.mrb[0].mxu0
        %1210 = vmatprep.mubr.bf16.mxu0 0
        %1211 = vmatmul.mubr.bf16.gmra.mrb[0].mxu0 %v1073
        %v1212 = vpop.f32.mrb[0].mxu0
        %v1213 = vadd.f32 %v921, %v1212
        %v1214 = vpop.f32.mrb[0].mxu0
        %v1215 = vpop.f32.mrb[0].mxu0
        %v1216 = vadd.f32 %v924, %v1215
        %v1217 = vpop.f32.mrb[0].mxu0
        %1218 = vmatprep.mubr.bf16.mxu0 0
        %1219 = vmatmul.mubr.bf16.gmra.mrb[0].mxu0 %v1076
        %v1220 = vpop.f32.mrb[0].mxu0
        %v1221 = vadd.f32 %v929, %v1220
        %v1222 = vpop.f32.mrb[0].mxu0
        %v1223 = vpop.f32.mrb[0].mxu0
        %v1224 = vadd.f32 %v932, %v1223
        %v1225 = vpop.f32.mrb[0].mxu0
        %1226 = vmatprep.mubr.bf16.mxu0 0
        %1227 = vmatmul.mubr.bf16.gmra.mrb[0].mxu0 %v1079
        %v1228 = vpop.f32.mrb[0].mxu0
        %v1229 = vadd.f32 %v937, %v1228
        %v1230 = vpop.f32.mrb[0].mxu0
        %v1231 = vpop.f32.mrb[0].mxu0
        %v1232 = vadd.f32 %v940, %v1231
        %v1233 = vpop.f32.mrb[0].mxu0
        %1234 = vmatprep.mubr.bf16.mxu0 0
        %1235 = vmatmul.mubr.bf16.gmra.mrb[0].mxu0 %v1082
        %v1236 = vpop.f32.mrb[0].mxu0
        %v1237 = vadd.f32 %v945, %v1236
        %v1238 = vpop.f32.mrb[0].mxu0
        %v1239 = vpop.f32.mrb[0].mxu0
        %v1240 = vadd.f32 %v948, %v1239
        %v1241 = vpop.f32.mrb[0].mxu0
        %1242 = vmatprep.mubr.bf16.mxu0 0
        %1243 = vmatmul.mubr.bf16.gmra.mrb[0].mxu0 %v1085
        %v1244 = vpop.f32.mrb[0].mxu0
        %v1245 = vadd.f32 %v953, %v1244
        %v1246 = vpop.f32.mrb[0].mxu0
        %v1247 = vpop.f32.mrb[0].mxu0
        %v1248 = vadd.f32 %v956, %v1247
        %v1249 = vpop.f32.mrb[0].mxu0
        %1250 = vdwg.mxu0
        %v1251 = vld [vmem:[%s245] sm:$0xe]
        %v1252 = vld [vmem:[%s245 + $0xc] sm:$0xe]
        %v1253 = vld [vmem:[%s245 + $0x18] sm:$0xe]
        %v1254 = vld [vmem:[%s245 + $0x24] sm:$0xe]
        %v1255 = vld [vmem:[%s245 + $0x30] sm:$0xe]
        %v1256 = vld [vmem:[%s245 + $0x3c] sm:$0xe]
        %v1257 = vld [vmem:[%s245 + $0x48] sm:$0xe]
        %v1258 = vld [vmem:[%s245 + $0x54] sm:$0xe]
        %v1259 = vld [vmem:[%s245 + $0x60] sm:$0xe]
        %v1260 = vld [vmem:[%s245 + $0x6c] sm:$0xe]
        %v1261 = vld [vmem:[%s245 + $0x78] sm:$0xe]
        %v1262 = vld [vmem:[%s245 + $0x84] sm:$0xe]
        %v1263 = vld [vmem:[%s245 + $0x90] sm:$0xe]
        %v1264 = vld [vmem:[%s245 + $0x9c] sm:$0xe]
        %v1265 = vld [vmem:[%s245 + $0xa8] sm:$0xe]
        %v1266 = vld [vmem:[%s245 + $0xb4] sm:$0xe]
        %vm1299 = vcmask 1042432
        %vm1300 = vcmask 1046532
        %vm1301 = vmor %vm1299, %vm1300
        %v1302 = vrot.slane %v1251, 5
        %v1303 = vrot.slane %v1302, 4
        %v1304 = vrot.slane %v260, 5
        %v1305 = vsel %vm1301, %v1303, %v1304
        %v1306 = vrot.slane %v1304, 4
        %v1307 = vrot.slane %v292, 5
        %v1308 = vsel %vm1301, %v1306, %v1307
        %v1309 = vrot.slane %v1252, 5
        %v1310 = vrot.slane %v1309, 4
        %v1311 = vrot.slane %v262, 5
        %v1312 = vsel %vm1301, %v1310, %v1311
        %v1313 = vrot.slane %v1311, 4
        %v1314 = vrot.slane %v293, 5
        %v1315 = vsel %vm1301, %v1313, %v1314
        %v1316 = vrot.slane %v1253, 5
        %v1317 = vrot.slane %v1316, 4
        %v1318 = vrot.slane %v264, 5
        %v1319 = vsel %vm1301, %v1317, %v1318
        %v1320 = vrot.slane %v1318, 4
        %v1321 = vrot.slane %v294, 5
        %v1322 = vsel %vm1301, %v1320, %v1321
        %v1323 = vrot.slane %v1254, 5
        %v1324 = vrot.slane %v1323, 4
        %v1325 = vrot.slane %v266, 5
        %v1326 = vsel %vm1301, %v1324, %v1325
        %v1327 = vrot.slane %v1325, 4
        %v1328 = vrot.slane %v295, 5
        %v1329 = vsel %vm1301, %v1327, %v1328
        %v1330 = vrot.slane %v1255, 5
        %v1331 = vrot.slane %v1330, 4
        %v1332 = vrot.slane %v268, 5
        %v1333 = vsel %vm1301, %v1331, %v1332
        %v1334 = vrot.slane %v1332, 4
        %v1335 = vrot.slane %v296, 5
        %v1336 = vsel %vm1301, %v1334, %v1335
        %v1337 = vrot.slane %v1256, 5
        %v1338 = vrot.slane %v1337, 4
        %v1339 = vrot.slane %v270, 5
        %v1340 = vsel %vm1301, %v1338, %v1339
        %v1341 = vrot.slane %v1339, 4
        %v1342 = vrot.slane %v297, 5
        %v1343 = vsel %vm1301, %v1341, %v1342
        %v1344 = vrot.slane %v1257, 5
        %v1345 = vrot.slane %v1344, 4
        %v1346 = vrot.slane %v272, 5
        %v1347 = vsel %vm1301, %v1345, %v1346
        %v1348 = vrot.slane %v1346, 4
        %v1349 = vrot.slane %v298, 5
        %v1350 = vsel %vm1301, %v1348, %v1349
        %v1351 = vrot.slane %v1258, 5
        %v1352 = vrot.slane %v1351, 4
        %v1353 = vrot.slane %v274, 5
        %v1354 = vsel %vm1301, %v1352, %v1353
        %v1355 = vrot.slane %v1353, 4
        %v1356 = vrot.slane %v299, 5
        %v1357 = vsel %vm1301, %v1355, %v1356
        %v1358 = vrot.slane %v1259, 5
        %v1359 = vrot.slane %v1358, 4
        %v1360 = vrot.slane %v276, 5
        %v1361 = vsel %vm1301, %v1359, %v1360
        %v1362 = vrot.slane %v1360, 4
        %v1363 = vrot.slane %v300, 5
        %v1364 = vsel %vm1301, %v1362, %v1363
        %v1365 = vrot.slane %v1260, 5
        %v1366 = vrot.slane %v1365, 4
        %v1367 = vrot.slane %v278, 5
        %v1368 = vsel %vm1301, %v1366, %v1367
        %v1369 = vrot.slane %v1367, 4
        %v1370 = vrot.slane %v301, 5
        %v1371 = vsel %vm1301, %v1369, %v1370
        %v1372 = vrot.slane %v1261, 5
        %v1373 = vrot.slane %v1372, 4
        %v1374 = vrot.slane %v280, 5
        %v1375 = vsel %vm1301, %v1373, %v1374
        %v1376 = vrot.slane %v1374, 4
        %v1377 = vrot.slane %v302, 5
        %v1378 = vsel %vm1301, %v1376, %v1377
        %v1379 = vrot.slane %v1262, 5
        %v1380 = vrot.slane %v1379, 4
        %v1381 = vrot.slane %v282, 5
        %v1382 = vsel %vm1301, %v1380, %v1381
        %v1383 = vrot.slane %v1381, 4
        %v1384 = vrot.slane %v303, 5
        %v1385 = vsel %vm1301, %v1383, %v1384
        %v1386 = vrot.slane %v1263, 5
        %v1387 = vrot.slane %v1386, 4
        %v1388 = vrot.slane %v284, 5
        %v1389 = vsel %vm1301, %v1387, %v1388
        %v1390 = vrot.slane %v1388, 4
        %v1391 = vrot.slane %v304, 5
        %v1392 = vsel %vm1301, %v1390, %v1391
        %v1393 = vrot.slane %v1264, 5
        %v1394 = vrot.slane %v1393, 4
        %v1395 = vrot.slane %v286, 5
        %v1396 = vsel %vm1301, %v1394, %v1395
        %v1397 = vrot.slane %v1395, 4
        %v1398 = vrot.slane %v305, 5
        %v1399 = vsel %vm1301, %v1397, %v1398
        %v1400 = vrot.slane %v1265, 5
        %v1401 = vrot.slane %v1400, 4
        %v1402 = vrot.slane %v288, 5
        %v1403 = vsel %vm1301, %v1401, %v1402
        %v1404 = vrot.slane %v1402, 4
        %v1405 = vrot.slane %v306, 5
        %v1406 = vsel %vm1301, %v1404, %v1405
        %v1407 = vrot.slane %v1266, 5
        %v1408 = vrot.slane %v1407, 4
        %v1409 = vrot.slane %v290, 5
        %v1410 = vsel %vm1301, %v1408, %v1409
        %v1411 = vrot.slane %v1409, 4
        %v1412 = vrot.slane %v307, 5
        %v1413 = vsel %vm1301, %v1411, %v1412
        %s1414 = scalar_lea.vmem %s249, 4
        %v1415 = vld [vmem:[%s1414] sm:$0x3]
        %v1416 = vunpack.c.l.b16 %v1305
        %v1417 = vunpack.c.l.b16 %v1308
        %v1418 = vunpack.c.l.b16 %v1312
        %v1419 = vunpack.c.l.b16 %v1315
        %v1420 = vunpack.c.l.b16 %v1319
        %v1421 = vunpack.c.l.b16 %v1322
        %v1422 = vunpack.c.l.b16 %v1326
        %v1423 = vunpack.c.l.b16 %v1329
        %v1424 = vunpack.c.l.b16 %v1333
        %v1425 = vunpack.c.l.b16 %v1336
        %v1426 = vunpack.c.l.b16 %v1340
        %v1427 = vunpack.c.l.b16 %v1343
        %v1428 = vunpack.c.l.b16 %v1347
        %v1429 = vunpack.c.l.b16 %v1350
        %v1430 = vunpack.c.l.b16 %v1354
        %v1431 = vunpack.c.l.b16 %v1357
        %v1432 = vunpack.c.l.b16 %v1361
        %v1433 = vunpack.c.l.b16 %v1364
        %v1434 = vunpack.c.l.b16 %v1368
        %v1435 = vunpack.c.l.b16 %v1371
        %v1436 = vunpack.c.l.b16 %v1375
        %v1437 = vunpack.c.l.b16 %v1378
        %v1438 = vunpack.c.l.b16 %v1382
        %v1439 = vunpack.c.l.b16 %v1385
        %v1440 = vunpack.c.l.b16 %v1389
        %v1441 = vunpack.c.l.b16 %v1392
        %v1442 = vunpack.c.l.b16 %v1396
        %v1443 = vunpack.c.l.b16 %v1399
        %v1444 = vunpack.c.l.b16 %v1403
        %v1445 = vunpack.c.l.b16 %v1406
        %v1446 = vunpack.c.l.b16 %v1410
        %v1447 = vunpack.c.l.b16 %v1413
        %v1448 = vpack.c.b16 %v1417, %v1416
        %v1449 = vpack.c.b16 %v1419, %v1418
        %v1450 = vpack.c.b16 %v1421, %v1420
        %v1451 = vpack.c.b16 %v1423, %v1422
        %v1452 = vpack.c.b16 %v1425, %v1424
        %v1453 = vpack.c.b16 %v1427, %v1426
        %v1454 = vpack.c.b16 %v1429, %v1428
        %v1455 = vpack.c.b16 %v1431, %v1430
        %v1456 = vpack.c.b16 %v1433, %v1432
        %v1457 = vpack.c.b16 %v1435, %v1434
        %v1458 = vpack.c.b16 %v1437, %v1436
        %v1459 = vpack.c.b16 %v1439, %v1438
        %v1460 = vpack.c.b16 %v1441, %v1440
        %v1461 = vpack.c.b16 %v1443, %v1442
        %v1462 = vpack.c.b16 %v1445, %v1444
        %v1463 = vpack.c.b16 %v1447, %v1446
        %v1465 = vsel %vm745, %v1448, 0
        %v1468 = vsel %vm745, %v1449, 0
        %v1471 = vsel %vm745, %v1450, 0
        %v1474 = vsel %vm745, %v1451, 0
        %v1477 = vsel %vm745, %v1452, 0
        %v1480 = vsel %vm745, %v1453, 0
        %v1483 = vsel %vm745, %v1454, 0
        %v1486 = vsel %vm745, %v1455, 0
        %v1489 = vsel %vm745, %v1456, 0
        %v1492 = vsel %vm745, %v1457, 0
        %v1495 = vsel %vm745, %v1458, 0
        %v1498 = vsel %vm745, %v1459, 0
        %v1501 = vsel %vm745, %v1460, 0
        %v1504 = vsel %vm745, %v1461, 0
        %v1507 = vsel %vm745, %v1462, 0
        %v1510 = vsel %vm745, %v1463, 0
        %v1513 = vsel %vm794, %v1415, 0
        %1515 = vmatprep.subr.bf16.mxu0 0
        %1516 = vmatpush1.bf16.msra.mxu0 %v1513
        %1517 = vmatprep.subr.bf16.mxu0 0
        %1518 = vmatpush1.bf16.msra.mxu0 0
        %1519 = vmatprep.subr.bf16.mxu0 0
        %1520 = vmatpush1.bf16.msra.mxu0 0
        %1521 = vmatprep.subr.bf16.mxu0 0
        %1522 = vmatpush1.bf16.msra.mxu0 0
        %1523 = vmatprep.subr.bf16.mxu0 0
        %1524 = vmatpush1.bf16.msra.mxu0 0
        %1525 = vmatprep.subr.bf16.mxu0 0
        %1526 = vmatpush1.bf16.msra.mxu0 0
        %1527 = vmatprep.subr.bf16.mxu0 0
        %1528 = vmatpush1.bf16.msra.mxu0 0
        %1529 = vmatprep.subr.bf16.mxu0 0
        %1530 = vmatpush1.bf16.msra.mxu0 0
        %1531 = vmatprep.subr.bf16.mxu0 0
        %1532 = vmatpush1.bf16.msra.mxu0 0
        %1533 = vmatprep.subr.bf16.mxu0 0
        %1534 = vmatpush1.bf16.msra.mxu0 0
        %1535 = vmatprep.subr.bf16.mxu0 0
        %1536 = vmatpush1.bf16.msra.mxu0 0
        %1537 = vmatprep.subr.bf16.mxu0 0
        %1538 = vmatpush1.bf16.msra.mxu0 0
        %1539 = vmatprep.subr.bf16.mxu0 0
        %1540 = vmatpush1.bf16.msra.mxu0 0
        %1541 = vmatprep.subr.bf16.mxu0 0
        %1542 = vmatpush1.bf16.msra.mxu0 0
        %1543 = vmatprep.subr.bf16.mxu0 0
        %1544 = vmatpush1.bf16.msra.mxu0 0
        %1545 = vmatprep.subr.bf16.mxu0 0
        %1546 = vmatpush1.bf16.msra.mxu0 0
        %1547 = vmatprep.mubr.bf16.mxu0 0
        %1548 = vmatmul.mubr.bf16.gmra.mrb[0].mxu0 %v1465
        %v1549 = vpop.f32.mrb[0].mxu0
        %v1550 = vadd.f32 0.0, %v1549
        %v1551 = vpop.f32.mrb[0].mxu0
        %v1552 = vpop.f32.mrb[0].mxu0
        %v1553 = vadd.f32 0.0, %v1552
        %v1554 = vpop.f32.mrb[0].mxu0
        %1555 = vmatprep.mubr.bf16.mxu0 0
        %1556 = vmatmul.mubr.bf16.gmra.mrb[0].mxu0 %v1468
        %v1557 = vpop.f32.mrb[0].mxu0
        %v1558 = vadd.f32 0.0, %v1557
        %v1559 = vpop.f32.mrb[0].mxu0
        %v1560 = vpop.f32.mrb[0].mxu0
        %v1561 = vadd.f32 0.0, %v1560
        %v1562 = vpop.f32.mrb[0].mxu0
        %1563 = vmatprep.mubr.bf16.mxu0 0
        %1564 = vmatmul.mubr.bf16.gmra.mrb[0].mxu0 %v1471
        %v1565 = vpop.f32.mrb[0].mxu0
        %v1566 = vadd.f32 0.0, %v1565
        %v1567 = vpop.f32.mrb[0].mxu0
        %v1568 = vpop.f32.mrb[0].mxu0
        %v1569 = vadd.f32 0.0, %v1568
        %v1570 = vpop.f32.mrb[0].mxu0
        %1571 = vmatprep.mubr.bf16.mxu0 0
        %1572 = vmatmul.mubr.bf16.gmra.mrb[0].mxu0 %v1474
        %v1573 = vpop.f32.mrb[0].mxu0
        %v1574 = vadd.f32 0.0, %v1573
        %v1575 = vpop.f32.mrb[0].mxu0
        %v1576 = vpop.f32.mrb[0].mxu0
        %v1577 = vadd.f32 0.0, %v1576
        %v1578 = vpop.f32.mrb[0].mxu0
        %1579 = vmatprep.mubr.bf16.mxu0 0
        %1580 = vmatmul.mubr.bf16.gmra.mrb[0].mxu0 %v1477
        %v1581 = vpop.f32.mrb[0].mxu0
        %v1582 = vadd.f32 0.0, %v1581
        %v1583 = vpop.f32.mrb[0].mxu0
        %v1584 = vpop.f32.mrb[0].mxu0
        %v1585 = vadd.f32 0.0, %v1584
        %v1586 = vpop.f32.mrb[0].mxu0
        %1587 = vmatprep.mubr.bf16.mxu0 0
        %1588 = vmatmul.mubr.bf16.gmra.mrb[0].mxu0 %v1480
        %v1589 = vpop.f32.mrb[0].mxu0
        %v1590 = vadd.f32 0.0, %v1589
        %v1591 = vpop.f32.mrb[0].mxu0
        %v1592 = vpop.f32.mrb[0].mxu0
        %v1593 = vadd.f32 0.0, %v1592
        %v1594 = vpop.f32.mrb[0].mxu0
        %1595 = vmatprep.mubr.bf16.mxu0 0
        %1596 = vmatmul.mubr.bf16.gmra.mrb[0].mxu0 %v1483
        %v1597 = vpop.f32.mrb[0].mxu0
        %v1598 = vadd.f32 0.0, %v1597
        %v1599 = vpop.f32.mrb[0].mxu0
        %v1600 = vpop.f32.mrb[0].mxu0
        %v1601 = vadd.f32 0.0, %v1600
        %v1602 = vpop.f32.mrb[0].mxu0
        %1603 = vmatprep.mubr.bf16.mxu0 0
        %1604 = vmatmul.mubr.bf16.gmra.mrb[0].mxu0 %v1486
        %v1605 = vpop.f32.mrb[0].mxu0
        %v1606 = vadd.f32 0.0, %v1605
        %v1607 = vpop.f32.mrb[0].mxu0
        %v1608 = vpop.f32.mrb[0].mxu0
        %v1609 = vadd.f32 0.0, %v1608
        %v1610 = vpop.f32.mrb[0].mxu0
        %1611 = vmatprep.mubr.bf16.mxu0 0
        %1612 = vmatmul.mubr.bf16.gmra.mrb[0].mxu0 %v1489
        %v1613 = vpop.f32.mrb[0].mxu0
        %v1614 = vadd.f32 0.0, %v1613
        %v1615 = vpop.f32.mrb[0].mxu0
        %v1616 = vpop.f32.mrb[0].mxu0
        %v1617 = vadd.f32 0.0, %v1616
        %v1618 = vpop.f32.mrb[0].mxu0
        %1619 = vmatprep.mubr.bf16.mxu0 0
        %1620 = vmatmul.mubr.bf16.gmra.mrb[0].mxu0 %v1492
        %v1621 = vpop.f32.mrb[0].mxu0
        %v1622 = vadd.f32 0.0, %v1621
        %v1623 = vpop.f32.mrb[0].mxu0
        %v1624 = vpop.f32.mrb[0].mxu0
        %v1625 = vadd.f32 0.0, %v1624
        %v1626 = vpop.f32.mrb[0].mxu0
        %1627 = vmatprep.mubr.bf16.mxu0 0
        %1628 = vmatmul.mubr.bf16.gmra.mrb[0].mxu0 %v1495
        %v1629 = vpop.f32.mrb[0].mxu0
        %v1630 = vadd.f32 0.0, %v1629
        %v1631 = vpop.f32.mrb[0].mxu0
        %v1632 = vpop.f32.mrb[0].mxu0
        %v1633 = vadd.f32 0.0, %v1632
        %v1634 = vpop.f32.mrb[0].mxu0
        %1635 = vmatprep.mubr.bf16.mxu0 0
        %1636 = vmatmul.mubr.bf16.gmra.mrb[0].mxu0 %v1498
        %v1637 = vpop.f32.mrb[0].mxu0
        %v1638 = vadd.f32 0.0, %v1637
        %v1639 = vpop.f32.mrb[0].mxu0
        %v1640 = vpop.f32.mrb[0].mxu0
        %v1641 = vadd.f32 0.0, %v1640
        %v1642 = vpop.f32.mrb[0].mxu0
        %1643 = vmatprep.mubr.bf16.mxu0 0
        %1644 = vmatmul.mubr.bf16.gmra.mrb[0].mxu0 %v1501
        %v1645 = vpop.f32.mrb[0].mxu0
        %v1646 = vadd.f32 0.0, %v1645
        %v1647 = vpop.f32.mrb[0].mxu0
        %v1648 = vpop.f32.mrb[0].mxu0
        %v1649 = vadd.f32 0.0, %v1648
        %v1650 = vpop.f32.mrb[0].mxu0
        %1651 = vmatprep.mubr.bf16.mxu0 0
        %1652 = vmatmul.mubr.bf16.gmra.mrb[0].mxu0 %v1504
        %v1653 = vpop.f32.mrb[0].mxu0
        %v1654 = vadd.f32 0.0, %v1653
        %v1655 = vpop.f32.mrb[0].mxu0
        %v1656 = vpop.f32.mrb[0].mxu0
        %v1657 = vadd.f32 0.0, %v1656
        %v1658 = vpop.f32.mrb[0].mxu0
        %1659 = vmatprep.mubr.bf16.mxu0 0
        %1660 = vmatmul.mubr.bf16.gmra.mrb[0].mxu0 %v1507
        %v1661 = vpop.f32.mrb[0].mxu0
        %v1662 = vadd.f32 0.0, %v1661
        %v1663 = vpop.f32.mrb[0].mxu0
        %v1664 = vpop.f32.mrb[0].mxu0
        %v1665 = vadd.f32 0.0, %v1664
        %v1666 = vpop.f32.mrb[0].mxu0
        %1667 = vmatprep.mubr.bf16.mxu0 0
        %1668 = vmatmul.mubr.bf16.gmra.mrb[0].mxu0 %v1510
        %v1669 = vpop.f32.mrb[0].mxu0
        %v1670 = vadd.f32 0.0, %v1669
        %v1671 = vpop.f32.mrb[0].mxu0
        %v1672 = vpop.f32.mrb[0].mxu0
        %v1673 = vadd.f32 0.0, %v1672
        %v1674 = vpop.f32.mrb[0].mxu0
        %1675 = vdwg.mxu0
        %v1676 = vadd.f32 %v1125, %v1550
        %v1677 = vadd.f32 %v1128, %v1553
        %v1678 = vadd.f32 %v1133, %v1558
        %v1679 = vadd.f32 %v1136, %v1561
        %v1680 = vadd.f32 %v1141, %v1566
        %v1681 = vadd.f32 %v1144, %v1569
        %v1682 = vadd.f32 %v1149, %v1574
        %v1683 = vadd.f32 %v1152, %v1577
        %v1684 = vadd.f32 %v1157, %v1582
        %v1685 = vadd.f32 %v1160, %v1585
        %v1686 = vadd.f32 %v1165, %v1590
        %v1687 = vadd.f32 %v1168, %v1593
        %v1688 = vadd.f32 %v1173, %v1598
        %v1689 = vadd.f32 %v1176, %v1601
        %v1690 = vadd.f32 %v1181, %v1606
        %v1691 = vadd.f32 %v1184, %v1609
        %v1692 = vadd.f32 %v1189, %v1614
        %v1693 = vadd.f32 %v1192, %v1617
        %v1694 = vadd.f32 %v1197, %v1622
        %v1695 = vadd.f32 %v1200, %v1625
        %v1696 = vadd.f32 %v1205, %v1630
        %v1697 = vadd.f32 %v1208, %v1633
        %v1698 = vadd.f32 %v1213, %v1638
        %v1699 = vadd.f32 %v1216, %v1641
        %v1700 = vadd.f32 %v1221, %v1646
        %v1701 = vadd.f32 %v1224, %v1649
        %v1702 = vadd.f32 %v1229, %v1654
        %v1703 = vadd.f32 %v1232, %v1657
        %v1704 = vadd.f32 %v1237, %v1662
        %v1705 = vadd.f32 %v1240, %v1665
        %v1706 = vadd.f32 %v1245, %v1670
        %v1707 = vadd.f32 %v1248, %v1673
        %s1708 = scalar_lea.vmem %s245, 12
        %v1709 = vld [vmem:[%s1708] sm:$0xf]
        %v1710 = vld [vmem:[%s1708 + $0x4] sm:$0xf]
        %v1711 = vld [vmem:[%s1708 + $0xc] sm:$0xf]
        %v1712 = vld [vmem:[%s1708 + $0x10] sm:$0xf]
        %v1713 = vld [vmem:[%s1708 + $0x18] sm:$0xf]
        %v1714 = vld [vmem:[%s1708 + $0x1c] sm:$0xf]
        %v1715 = vld [vmem:[%s1708 + $0x24] sm:$0xf]
        %v1716 = vld [vmem:[%s1708 + $0x28] sm:$0xf]
        %v1717 = vld [vmem:[%s1708 + $0x30] sm:$0xf]
        %v1718 = vld [vmem:[%s1708 + $0x34] sm:$0xf]
        %v1719 = vld [vmem:[%s1708 + $0x3c] sm:$0xf]
        %v1720 = vld [vmem:[%s1708 + $0x40] sm:$0xf]
        %v1721 = vld [vmem:[%s1708 + $0x48] sm:$0xf]
        %v1722 = vld [vmem:[%s1708 + $0x4c] sm:$0xf]
        %v1723 = vld [vmem:[%s1708 + $0x54] sm:$0xf]
        %v1724 = vld [vmem:[%s1708 + $0x58] sm:$0xf]
        %v1725 = vld [vmem:[%s1708 + $0x60] sm:$0xf]
        %v1726 = vld [vmem:[%s1708 + $0x64] sm:$0xf]
        %v1727 = vld [vmem:[%s1708 + $0x6c] sm:$0xf]
        %v1728 = vld [vmem:[%s1708 + $0x70] sm:$0xf]
        %v1729 = vld [vmem:[%s1708 + $0x78] sm:$0xf]
        %v1730 = vld [vmem:[%s1708 + $0x7c] sm:$0xf]
        %v1731 = vld [vmem:[%s1708 + $0x84] sm:$0xf]
        %v1732 = vld [vmem:[%s1708 + $0x88] sm:$0xf]
        %v1733 = vld [vmem:[%s1708 + $0x90] sm:$0xf]
        %v1734 = vld [vmem:[%s1708 + $0x94] sm:$0xf]
        %v1735 = vld [vmem:[%s1708 + $0x9c] sm:$0xf]
        %v1736 = vld [vmem:[%s1708 + $0xa0] sm:$0xf]
        %v1737 = vld [vmem:[%s1708 + $0xa8] sm:$0xf]
        %v1738 = vld [vmem:[%s1708 + $0xac] sm:$0xf]
        %v1739 = vld [vmem:[%s1708 + $0xb4] sm:$0xf]
        %v1740 = vld [vmem:[%s1708 + $0xb8] sm:$0xf]
        %s1741 = scalar_lea.vmem %s249, 6
        %v1742 = vld [vmem:[%s1741] sm:$0x3]
        %v1775 = vunpack.c.l.b16 %v1709
        %v1776 = vunpack.c.l.b16 %v1710
        %v1777 = vunpack.c.l.b16 %v1711
        %v1778 = vunpack.c.l.b16 %v1712
        %v1779 = vunpack.c.l.b16 %v1713
        %v1780 = vunpack.c.l.b16 %v1714
        %v1781 = vunpack.c.l.b16 %v1715
        %v1782 = vunpack.c.l.b16 %v1716
        %v1783 = vunpack.c.l.b16 %v1717
        %v1784 = vunpack.c.l.b16 %v1718
        %v1785 = vunpack.c.l.b16 %v1719
        %v1786 = vunpack.c.l.b16 %v1720
        %v1787 = vunpack.c.l.b16 %v1721
        %v1788 = vunpack.c.l.b16 %v1722
        %v1789 = vunpack.c.l.b16 %v1723
        %v1790 = vunpack.c.l.b16 %v1724
        %v1791 = vunpack.c.l.b16 %v1725
        %v1792 = vunpack.c.l.b16 %v1726
        %v1793 = vunpack.c.l.b16 %v1727
        %v1794 = vunpack.c.l.b16 %v1728
        %v1795 = vunpack.c.l.b16 %v1729
        %v1796 = vunpack.c.l.b16 %v1730
        %v1797 = vunpack.c.l.b16 %v1731
        %v1798 = vunpack.c.l.b16 %v1732
        %v1799 = vunpack.c.l.b16 %v1733
        %v1800 = vunpack.c.l.b16 %v1734
        %v1801 = vunpack.c.l.b16 %v1735
        %v1802 = vunpack.c.l.b16 %v1736
        %v1803 = vunpack.c.l.b16 %v1737
        %v1804 = vunpack.c.l.b16 %v1738
        %v1805 = vunpack.c.l.b16 %v1739
        %v1806 = vunpack.c.l.b16 %v1740
        %v1807 = vpack.c.b16 %v1776, %v1775
        %v1808 = vpack.c.b16 %v1778, %v1777
        %v1809 = vpack.c.b16 %v1780, %v1779
        %v1810 = vpack.c.b16 %v1782, %v1781
        %v1811 = vpack.c.b16 %v1784, %v1783
        %v1812 = vpack.c.b16 %v1786, %v1785
        %v1813 = vpack.c.b16 %v1788, %v1787
        %v1814 = vpack.c.b16 %v1790, %v1789
        %v1815 = vpack.c.b16 %v1792, %v1791
        %v1816 = vpack.c.b16 %v1794, %v1793
        %v1817 = vpack.c.b16 %v1796, %v1795
        %v1818 = vpack.c.b16 %v1798, %v1797
        %v1819 = vpack.c.b16 %v1800, %v1799
        %v1820 = vpack.c.b16 %v1802, %v1801
        %v1821 = vpack.c.b16 %v1804, %v1803
        %v1822 = vpack.c.b16 %v1806, %v1805
        %v1824 = vsel %vm745, %v1807, 0
        %v1827 = vsel %vm745, %v1808, 0
        %v1830 = vsel %vm745, %v1809, 0
        %v1833 = vsel %vm745, %v1810, 0
        %v1836 = vsel %vm745, %v1811, 0
        %v1839 = vsel %vm745, %v1812, 0
        %v1842 = vsel %vm745, %v1813, 0
        %v1845 = vsel %vm745, %v1814, 0
        %v1848 = vsel %vm745, %v1815, 0
        %v1851 = vsel %vm745, %v1816, 0
        %v1854 = vsel %vm745, %v1817, 0
        %v1857 = vsel %vm745, %v1818, 0
        %v1860 = vsel %vm745, %v1819, 0
        %v1863 = vsel %vm745, %v1820, 0
        %v1866 = vsel %vm745, %v1821, 0
        %v1869 = vsel %vm745, %v1822, 0
        %v1872 = vsel %vm794, %v1742, 0
        %1874 = vmatprep.subr.bf16.mxu0 0
        %1875 = vmatpush1.bf16.msra.mxu0 %v1872
        %1876 = vmatprep.subr.bf16.mxu0 0
        %1877 = vmatpush1.bf16.msra.mxu0 0
        %1878 = vmatprep.subr.bf16.mxu0 0
        %1879 = vmatpush1.bf16.msra.mxu0 0
        %1880 = vmatprep.subr.bf16.mxu0 0
        %1881 = vmatpush1.bf16.msra.mxu0 0
        %1882 = vmatprep.subr.bf16.mxu0 0
        %1883 = vmatpush1.bf16.msra.mxu0 0
        %1884 = vmatprep.subr.bf16.mxu0 0
        %1885 = vmatpush1.bf16.msra.mxu0 0
        %1886 = vmatprep.subr.bf16.mxu0 0
        %1887 = vmatpush1.bf16.msra.mxu0 0
        %1888 = vmatprep.subr.bf16.mxu0 0
        %1889 = vmatpush1.bf16.msra.mxu0 0
        %1890 = vmatprep.subr.bf16.mxu0 0
        %1891 = vmatpush1.bf16.msra.mxu0 0
        %1892 = vmatprep.subr.bf16.mxu0 0
        %1893 = vmatpush1.bf16.msra.mxu0 0
        %1894 = vmatprep.subr.bf16.mxu0 0
        %1895 = vmatpush1.bf16.msra.mxu0 0
        %1896 = vmatprep.subr.bf16.mxu0 0
        %1897 = vmatpush1.bf16.msra.mxu0 0
        %1898 = vmatprep.subr.bf16.mxu0 0
        %1899 = vmatpush1.bf16.msra.mxu0 0
        %1900 = vmatprep.subr.bf16.mxu0 0
        %1901 = vmatpush1.bf16.msra.mxu0 0
        %1902 = vmatprep.subr.bf16.mxu0 0
        %1903 = vmatpush1.bf16.msra.mxu0 0
        %1904 = vmatprep.subr.bf16.mxu0 0
        %1905 = vmatpush1.bf16.msra.mxu0 0
        %1906 = vmatprep.mubr.bf16.mxu0 0
        %1907 = vmatmul.mubr.bf16.gmra.mrb[0].mxu0 %v1824
        %v1908 = vpop.f32.mrb[0].mxu0
        %v1909 = vadd.f32 0.0, %v1908
        %v1910 = vpop.f32.mrb[0].mxu0
        %v1911 = vpop.f32.mrb[0].mxu0
        %v1912 = vadd.f32 0.0, %v1911
        %v1913 = vpop.f32.mrb[0].mxu0
        %1914 = vmatprep.mubr.bf16.mxu0 0
        %1915 = vmatmul.mubr.bf16.gmra.mrb[0].mxu0 %v1827
        %v1916 = vpop.f32.mrb[0].mxu0
        %v1917 = vadd.f32 0.0, %v1916
        %v1918 = vpop.f32.mrb[0].mxu0
        %v1919 = vpop.f32.mrb[0].mxu0
        %v1920 = vadd.f32 0.0, %v1919
        %v1921 = vpop.f32.mrb[0].mxu0
        %1922 = vmatprep.mubr.bf16.mxu0 0
        %1923 = vmatmul.mubr.bf16.gmra.mrb[0].mxu0 %v1830
        %v1924 = vpop.f32.mrb[0].mxu0
        %v1925 = vadd.f32 0.0, %v1924
        %v1926 = vpop.f32.mrb[0].mxu0
        %v1927 = vpop.f32.mrb[0].mxu0
        %v1928 = vadd.f32 0.0, %v1927
        %v1929 = vpop.f32.mrb[0].mxu0
        %1930 = vmatprep.mubr.bf16.mxu0 0
        %1931 = vmatmul.mubr.bf16.gmra.mrb[0].mxu0 %v1833
        %v1932 = vpop.f32.mrb[0].mxu0
        %v1933 = vadd.f32 0.0, %v1932
        %v1934 = vpop.f32.mrb[0].mxu0
        %v1935 = vpop.f32.mrb[0].mxu0
        %v1936 = vadd.f32 0.0, %v1935
        %v1937 = vpop.f32.mrb[0].mxu0
        %1938 = vmatprep.mubr.bf16.mxu0 0
        %1939 = vmatmul.mubr.bf16.gmra.mrb[0].mxu0 %v1836
        %v1940 = vpop.f32.mrb[0].mxu0
        %v1941 = vadd.f32 0.0, %v1940
        %v1942 = vpop.f32.mrb[0].mxu0
        %v1943 = vpop.f32.mrb[0].mxu0
        %v1944 = vadd.f32 0.0, %v1943
        %v1945 = vpop.f32.mrb[0].mxu0
        %1946 = vmatprep.mubr.bf16.mxu0 0
        %1947 = vmatmul.mubr.bf16.gmra.mrb[0].mxu0 %v1839
        %v1948 = vpop.f32.mrb[0].mxu0
        %v1949 = vadd.f32 0.0, %v1948
        %v1950 = vpop.f32.mrb[0].mxu0
        %v1951 = vpop.f32.mrb[0].mxu0
        %v1952 = vadd.f32 0.0, %v1951
        %v1953 = vpop.f32.mrb[0].mxu0
        %1954 = vmatprep.mubr.bf16.mxu0 0
        %1955 = vmatmul.mubr.bf16.gmra.mrb[0].mxu0 %v1842
        %v1956 = vpop.f32.mrb[0].mxu0
        %v1957 = vadd.f32 0.0, %v1956
        %v1958 = vpop.f32.mrb[0].mxu0
        %v1959 = vpop.f32.mrb[0].mxu0
        %v1960 = vadd.f32 0.0, %v1959
        %v1961 = vpop.f32.mrb[0].mxu0
        %1962 = vmatprep.mubr.bf16.mxu0 0
        %1963 = vmatmul.mubr.bf16.gmra.mrb[0].mxu0 %v1845
        %v1964 = vpop.f32.mrb[0].mxu0
        %v1965 = vadd.f32 0.0, %v1964
        %v1966 = vpop.f32.mrb[0].mxu0
        %v1967 = vpop.f32.mrb[0].mxu0
        %v1968 = vadd.f32 0.0, %v1967
        %v1969 = vpop.f32.mrb[0].mxu0
        %1970 = vmatprep.mubr.bf16.mxu0 0
        %1971 = vmatmul.mubr.bf16.gmra.mrb[0].mxu0 %v1848
        %v1972 = vpop.f32.mrb[0].mxu0
        %v1973 = vadd.f32 0.0, %v1972
        %v1974 = vpop.f32.mrb[0].mxu0
        %v1975 = vpop.f32.mrb[0].mxu0
        %v1976 = vadd.f32 0.0, %v1975
        %v1977 = vpop.f32.mrb[0].mxu0
        %1978 = vmatprep.mubr.bf16.mxu0 0
        %1979 = vmatmul.mubr.bf16.gmra.mrb[0].mxu0 %v1851
        %v1980 = vpop.f32.mrb[0].mxu0
        %v1981 = vadd.f32 0.0, %v1980
        %v1982 = vpop.f32.mrb[0].mxu0
        %v1983 = vpop.f32.mrb[0].mxu0
        %v1984 = vadd.f32 0.0, %v1983
        %v1985 = vpop.f32.mrb[0].mxu0
        %1986 = vmatprep.mubr.bf16.mxu0 0
        %1987 = vmatmul.mubr.bf16.gmra.mrb[0].mxu0 %v1854
        %v1988 = vpop.f32.mrb[0].mxu0
        %v1989 = vadd.f32 0.0, %v1988
        %v1990 = vpop.f32.mrb[0].mxu0
        %v1991 = vpop.f32.mrb[0].mxu0
        %v1992 = vadd.f32 0.0, %v1991
        %v1993 = vpop.f32.mrb[0].mxu0
        %1994 = vmatprep.mubr.bf16.mxu0 0
        %1995 = vmatmul.mubr.bf16.gmra.mrb[0].mxu0 %v1857
        %v1996 = vpop.f32.mrb[0].mxu0
        %v1997 = vadd.f32 0.0, %v1996
        %v1998 = vpop.f32.mrb[0].mxu0
        %v1999 = vpop.f32.mrb[0].mxu0
        %v2000 = vadd.f32 0.0, %v1999
        %v2001 = vpop.f32.mrb[0].mxu0
        %2002 = vmatprep.mubr.bf16.mxu0 0
        %2003 = vmatmul.mubr.bf16.gmra.mrb[0].mxu0 %v1860
        %v2004 = vpop.f32.mrb[0].mxu0
        %v2005 = vadd.f32 0.0, %v2004
        %v2006 = vpop.f32.mrb[0].mxu0
        %v2007 = vpop.f32.mrb[0].mxu0
        %v2008 = vadd.f32 0.0, %v2007
        %v2009 = vpop.f32.mrb[0].mxu0
        %2010 = vmatprep.mubr.bf16.mxu0 0
        %2011 = vmatmul.mubr.bf16.gmra.mrb[0].mxu0 %v1863
        %v2012 = vpop.f32.mrb[0].mxu0
        %v2013 = vadd.f32 0.0, %v2012
        %v2014 = vpop.f32.mrb[0].mxu0
        %v2015 = vpop.f32.mrb[0].mxu0
        %v2016 = vadd.f32 0.0, %v2015
        %v2017 = vpop.f32.mrb[0].mxu0
        %2018 = vmatprep.mubr.bf16.mxu0 0
        %2019 = vmatmul.mubr.bf16.gmra.mrb[0].mxu0 %v1866
        %v2020 = vpop.f32.mrb[0].mxu0
        %v2021 = vadd.f32 0.0, %v2020
        %v2022 = vpop.f32.mrb[0].mxu0
        %v2023 = vpop.f32.mrb[0].mxu0
        %v2024 = vadd.f32 0.0, %v2023
        %v2025 = vpop.f32.mrb[0].mxu0
        %2026 = vmatprep.mubr.bf16.mxu0 0
        %2027 = vmatmul.mubr.bf16.gmra.mrb[0].mxu0 %v1869
        %v2028 = vpop.f32.mrb[0].mxu0
        %v2029 = vadd.f32 0.0, %v2028
        %v2030 = vpop.f32.mrb[0].mxu0
        %v2031 = vpop.f32.mrb[0].mxu0
        %v2032 = vadd.f32 0.0, %v2031
        %v2033 = vpop.f32.mrb[0].mxu0
        %2034 = vdwg.mxu0
        %v2035 = vadd.f32 %v1676, %v1909
        %v2036 = vadd.f32 %v1677, %v1912
        %v2037 = vadd.f32 %v1678, %v1917
        %v2038 = vadd.f32 %v1679, %v1920
        %v2039 = vadd.f32 %v1680, %v1925
        %v2040 = vadd.f32 %v1681, %v1928
        %v2041 = vadd.f32 %v1682, %v1933
        %v2042 = vadd.f32 %v1683, %v1936
        %v2043 = vadd.f32 %v1684, %v1941
        %v2044 = vadd.f32 %v1685, %v1944
        %v2045 = vadd.f32 %v1686, %v1949
        %v2046 = vadd.f32 %v1687, %v1952
        %v2047 = vadd.f32 %v1688, %v1957
        %v2048 = vadd.f32 %v1689, %v1960
        %v2049 = vadd.f32 %v1690, %v1965
        %v2050 = vadd.f32 %v1691, %v1968
        %v2051 = vadd.f32 %v1692, %v1973
        %v2052 = vadd.f32 %v1693, %v1976
        %v2053 = vadd.f32 %v1694, %v1981
        %v2054 = vadd.f32 %v1695, %v1984
        %v2055 = vadd.f32 %v1696, %v1989
        %v2056 = vadd.f32 %v1697, %v1992
        %v2057 = vadd.f32 %v1698, %v1997
        %v2058 = vadd.f32 %v1699, %v2000
        %v2059 = vadd.f32 %v1700, %v2005
        %v2060 = vadd.f32 %v1701, %v2008
        %v2061 = vadd.f32 %v1702, %v2013
        %v2062 = vadd.f32 %v1703, %v2016
        %v2063 = vadd.f32 %v1704, %v2021
        %v2064 = vadd.f32 %v1705, %v2024
        %v2065 = vadd.f32 %v1706, %v2029
        %v2066 = vadd.f32 %v1707, %v2032
        %v2067 = vld [vmem:[%s1708] sm:$0xf]
        %v2068 = vld [vmem:[%s1708 + $0x4] sm:$0xf]
        %v2069 = vld [vmem:[%s1708 + $0x8] sm:$0x1]
        %v2070 = vld [vmem:[%s1708 + $0xc] sm:$0xf]
        %v2071 = vld [vmem:[%s1708 + $0x10] sm:$0xf]
        %v2072 = vld [vmem:[%s1708 + $0x14] sm:$0x1]
        %v2073 = vld [vmem:[%s1708 + $0x18] sm:$0xf]
        %v2074 = vld [vmem:[%s1708 + $0x1c] sm:$0xf]
        %v2075 = vld [vmem:[%s1708 + $0x20] sm:$0x1]
        %v2076 = vld [vmem:[%s1708 + $0x24] sm:$0xf]
        %v2077 = vld [vmem:[%s1708 + $0x28] sm:$0xf]
        %v2078 = vld [vmem:[%s1708 + $0x2c] sm:$0x1]
        %v2079 = vld [vmem:[%s1708 + $0x30] sm:$0xf]
        %v2080 = vld [vmem:[%s1708 + $0x34] sm:$0xf]
        %v2081 = vld [vmem:[%s1708 + $0x38] sm:$0x1]
        %v2082 = vld [vmem:[%s1708 + $0x3c] sm:$0xf]
        %v2083 = vld [vmem:[%s1708 + $0x40] sm:$0xf]
        %v2084 = vld [vmem:[%s1708 + $0x44] sm:$0x1]
        %v2085 = vld [vmem:[%s1708 + $0x48] sm:$0xf]
        %v2086 = vld [vmem:[%s1708 + $0x4c] sm:$0xf]
        %v2087 = vld [vmem:[%s1708 + $0x50] sm:$0x1]
        %v2088 = vld [vmem:[%s1708 + $0x54] sm:$0xf]
        %v2089 = vld [vmem:[%s1708 + $0x58] sm:$0xf]
        %v2090 = vld [vmem:[%s1708 + $0x5c] sm:$0x1]
        %v2091 = vld [vmem:[%s1708 + $0x60] sm:$0xf]
        %v2092 = vld [vmem:[%s1708 + $0x64] sm:$0xf]
        %v2093 = vld [vmem:[%s1708 + $0x68] sm:$0x1]
        %v2094 = vld [vmem:[%s1708 + $0x6c] sm:$0xf]
        %v2095 = vld [vmem:[%s1708 + $0x70] sm:$0xf]
        %v2096 = vld [vmem:[%s1708 + $0x74] sm:$0x1]
        %v2097 = vld [vmem:[%s1708 + $0x78] sm:$0xf]
        %v2098 = vld [vmem:[%s1708 + $0x7c] sm:$0xf]
        %v2099 = vld [vmem:[%s1708 + $0x80] sm:$0x1]
        %v2100 = vld [vmem:[%s1708 + $0x84] sm:$0xf]
        %v2101 = vld [vmem:[%s1708 + $0x88] sm:$0xf]
        %v2102 = vld [vmem:[%s1708 + $0x8c] sm:$0x1]
        %v2103 = vld [vmem:[%s1708 + $0x90] sm:$0xf]
        %v2104 = vld [vmem:[%s1708 + $0x94] sm:$0xf]
        %v2105 = vld [vmem:[%s1708 + $0x98] sm:$0x1]
        %v2106 = vld [vmem:[%s1708 + $0x9c] sm:$0xf]
        %v2107 = vld [vmem:[%s1708 + $0xa0] sm:$0xf]
        %v2108 = vld [vmem:[%s1708 + $0xa4] sm:$0x1]
        %v2109 = vld [vmem:[%s1708 + $0xa8] sm:$0xf]
        %v2110 = vld [vmem:[%s1708 + $0xac] sm:$0xf]
        %v2111 = vld [vmem:[%s1708 + $0xb0] sm:$0x1]
        %v2112 = vld [vmem:[%s1708 + $0xb4] sm:$0xf]
        %v2113 = vld [vmem:[%s1708 + $0xb8] sm:$0xf]
        %v2114 = vld [vmem:[%s1708 + $0xbc] sm:$0x1]
        %v2116 = vshrl.u32 %v2067, 16
        %v2118 = vrot.slane %v2116, 4
        %v2119 = vshll.u32 %v2067, 16
        %v2121 = vrot.slane %v2119, 5
        %v2122 = vor.u32 %v2118, %v2121
        %v2123 = vrot.slane %v2122, 4
        %v2125 = vshll.u32 %v2068, 16
        %v2127 = vrot.slane %v2125, 5
        %v2128 = vsel %vm310, %v2123, %v2127
        %v2129 = vshrl.u32 %v2068, 16
        %v2131 = vrot.slane %v2129, 4
        %v2132 = vor.u32 %v2131, %v2127
        %v2133 = vrot.slane %v2132, 4
        %v2135 = vshll.u32 %v2069, 16
        %v2137 = vrot.slane %v2135, 5
        %v2138 = vsel %vm310, %v2133, %v2137
        %v2140 = vshrl.u32 %v2070, 16
        %v2142 = vrot.slane %v2140, 4
        %v2143 = vshll.u32 %v2070, 16
        %v2145 = vrot.slane %v2143, 5
        %v2146 = vor.u32 %v2142, %v2145
        %v2147 = vrot.slane %v2146, 4
        %v2149 = vshll.u32 %v2071, 16
        %v2151 = vrot.slane %v2149, 5
        %v2152 = vsel %vm310, %v2147, %v2151
        %v2153 = vshrl.u32 %v2071, 16
        %v2155 = vrot.slane %v2153, 4
        %v2156 = vor.u32 %v2155, %v2151
        %v2157 = vrot.slane %v2156, 4
        %v2159 = vshll.u32 %v2072, 16
        %v2161 = vrot.slane %v2159, 5
        %v2162 = vsel %vm310, %v2157, %v2161
        %v2164 = vshrl.u32 %v2073, 16
        %v2166 = vrot.slane %v2164, 4
        %v2167 = vshll.u32 %v2073, 16
        %v2169 = vrot.slane %v2167, 5
        %v2170 = vor.u32 %v2166, %v2169
        %v2171 = vrot.slane %v2170, 4
        %v2173 = vshll.u32 %v2074, 16
        %v2175 = vrot.slane %v2173, 5
        %v2176 = vsel %vm310, %v2171, %v2175
        %v2177 = vshrl.u32 %v2074, 16
        %v2179 = vrot.slane %v2177, 4
        %v2180 = vor.u32 %v2179, %v2175
        %v2181 = vrot.slane %v2180, 4
        %v2183 = vshll.u32 %v2075, 16
        %v2185 = vrot.slane %v2183, 5
        %v2186 = vsel %vm310, %v2181, %v2185
        %v2188 = vshrl.u32 %v2076, 16
        %v2190 = vrot.slane %v2188, 4
        %v2191 = vshll.u32 %v2076, 16
        %v2193 = vrot.slane %v2191, 5
        %v2194 = vor.u32 %v2190, %v2193
        %v2195 = vrot.slane %v2194, 4
        %v2197 = vshll.u32 %v2077, 16
        %v2199 = vrot.slane %v2197, 5
        %v2200 = vsel %vm310, %v2195, %v2199
        %v2201 = vshrl.u32 %v2077, 16
        %v2203 = vrot.slane %v2201, 4
        %v2204 = vor.u32 %v2203, %v2199
        %v2205 = vrot.slane %v2204, 4
        %v2207 = vshll.u32 %v2078, 16
        %v2209 = vrot.slane %v2207, 5
        %v2210 = vsel %vm310, %v2205, %v2209
        %v2212 = vshrl.u32 %v2079, 16
        %v2214 = vrot.slane %v2212, 4
        %v2215 = vshll.u32 %v2079, 16
        %v2217 = vrot.slane %v2215, 5
        %v2218 = vor.u32 %v2214, %v2217
        %v2219 = vrot.slane %v2218, 4
        %v2221 = vshll.u32 %v2080, 16
        %v2223 = vrot.slane %v2221, 5
        %v2224 = vsel %vm310, %v2219, %v2223
        %v2225 = vshrl.u32 %v2080, 16
        %v2227 = vrot.slane %v2225, 4
        %v2228 = vor.u32 %v2227, %v2223
        %v2229 = vrot.slane %v2228, 4
        %v2231 = vshll.u32 %v2081, 16
        %v2233 = vrot.slane %v2231, 5
        %v2234 = vsel %vm310, %v2229, %v2233
        %v2236 = vshrl.u32 %v2082, 16
        %v2238 = vrot.slane %v2236, 4
        %v2239 = vshll.u32 %v2082, 16
        %v2241 = vrot.slane %v2239, 5
        %v2242 = vor.u32 %v2238, %v2241
        %v2243 = vrot.slane %v2242, 4
        %v2245 = vshll.u32 %v2083, 16
        %v2247 = vrot.slane %v2245, 5
        %v2248 = vsel %vm310, %v2243, %v2247
        %v2249 = vshrl.u32 %v2083, 16
        %v2251 = vrot.slane %v2249, 4
        %v2252 = vor.u32 %v2251, %v2247
        %v2253 = vrot.slane %v2252, 4
        %v2255 = vshll.u32 %v2084, 16
        %v2257 = vrot.slane %v2255, 5
        %v2258 = vsel %vm310, %v2253, %v2257
        %v2260 = vshrl.u32 %v2085, 16
        %v2262 = vrot.slane %v2260, 4
        %v2263 = vshll.u32 %v2085, 16
        %v2265 = vrot.slane %v2263, 5
        %v2266 = vor.u32 %v2262, %v2265
        %v2267 = vrot.slane %v2266, 4
        %v2269 = vshll.u32 %v2086, 16
        %v2271 = vrot.slane %v2269, 5
        %v2272 = vsel %vm310, %v2267, %v2271
        %v2273 = vshrl.u32 %v2086, 16
        %v2275 = vrot.slane %v2273, 4
        %v2276 = vor.u32 %v2275, %v2271
        %v2277 = vrot.slane %v2276, 4
        %v2279 = vshll.u32 %v2087, 16
        %v2281 = vrot.slane %v2279, 5
        %v2282 = vsel %vm310, %v2277, %v2281
        %v2284 = vshrl.u32 %v2088, 16
        %v2286 = vrot.slane %v2284, 4
        %v2287 = vshll.u32 %v2088, 16
        %v2289 = vrot.slane %v2287, 5
        %v2290 = vor.u32 %v2286, %v2289
        %v2291 = vrot.slane %v2290, 4
        %v2293 = vshll.u32 %v2089, 16
        %v2295 = vrot.slane %v2293, 5
        %v2296 = vsel %vm310, %v2291, %v2295
        %v2297 = vshrl.u32 %v2089, 16
        %v2299 = vrot.slane %v2297, 4
        %v2300 = vor.u32 %v2299, %v2295
        %v2301 = vrot.slane %v2300, 4
        %v2303 = vshll.u32 %v2090, 16
        %v2305 = vrot.slane %v2303, 5
        %v2306 = vsel %vm310, %v2301, %v2305
        %v2308 = vshrl.u32 %v2091, 16
        %v2310 = vrot.slane %v2308, 4
        %v2311 = vshll.u32 %v2091, 16
        %v2313 = vrot.slane %v2311, 5
        %v2314 = vor.u32 %v2310, %v2313
        %v2315 = vrot.slane %v2314, 4
        %v2317 = vshll.u32 %v2092, 16
        %v2319 = vrot.slane %v2317, 5
        %v2320 = vsel %vm310, %v2315, %v2319
        %v2321 = vshrl.u32 %v2092, 16
        %v2323 = vrot.slane %v2321, 4
        %v2324 = vor.u32 %v2323, %v2319
        %v2325 = vrot.slane %v2324, 4
        %v2327 = vshll.u32 %v2093, 16
        %v2329 = vrot.slane %v2327, 5
        %v2330 = vsel %vm310, %v2325, %v2329
        %v2332 = vshrl.u32 %v2094, 16
        %v2334 = vrot.slane %v2332, 4
        %v2335 = vshll.u32 %v2094, 16
        %v2337 = vrot.slane %v2335, 5
        %v2338 = vor.u32 %v2334, %v2337
        %v2339 = vrot.slane %v2338, 4
        %v2341 = vshll.u32 %v2095, 16
        %v2343 = vrot.slane %v2341, 5
        %v2344 = vsel %vm310, %v2339, %v2343
        %v2345 = vshrl.u32 %v2095, 16
        %v2347 = vrot.slane %v2345, 4
        %v2348 = vor.u32 %v2347, %v2343
        %v2349 = vrot.slane %v2348, 4
        %v2351 = vshll.u32 %v2096, 16
        %v2353 = vrot.slane %v2351, 5
        %v2354 = vsel %vm310, %v2349, %v2353
        %v2356 = vshrl.u32 %v2097, 16
        %v2358 = vrot.slane %v2356, 4
        %v2359 = vshll.u32 %v2097, 16
        %v2361 = vrot.slane %v2359, 5
        %v2362 = vor.u32 %v2358, %v2361
        %v2363 = vrot.slane %v2362, 4
        %v2365 = vshll.u32 %v2098, 16
        %v2367 = vrot.slane %v2365, 5
        %v2368 = vsel %vm310, %v2363, %v2367
        %v2369 = vshrl.u32 %v2098, 16
        %v2371 = vrot.slane %v2369, 4
        %v2372 = vor.u32 %v2371, %v2367
        %v2373 = vrot.slane %v2372, 4
        %v2375 = vshll.u32 %v2099, 16
        %v2377 = vrot.slane %v2375, 5
        %v2378 = vsel %vm310, %v2373, %v2377
        %v2380 = vshrl.u32 %v2100, 16
        %v2382 = vrot.slane %v2380, 4
        %v2383 = vshll.u32 %v2100, 16
        %v2385 = vrot.slane %v2383, 5
        %v2386 = vor.u32 %v2382, %v2385
        %v2387 = vrot.slane %v2386, 4
        %v2389 = vshll.u32 %v2101, 16
        %v2391 = vrot.slane %v2389, 5
        %v2392 = vsel %vm310, %v2387, %v2391
        %v2393 = vshrl.u32 %v2101, 16
        %v2395 = vrot.slane %v2393, 4
        %v2396 = vor.u32 %v2395, %v2391
        %v2397 = vrot.slane %v2396, 4
        %v2399 = vshll.u32 %v2102, 16
        %v2401 = vrot.slane %v2399, 5
        %v2402 = vsel %vm310, %v2397, %v2401
        %v2404 = vshrl.u32 %v2103, 16
        %v2406 = vrot.slane %v2404, 4
        %v2407 = vshll.u32 %v2103, 16
        %v2409 = vrot.slane %v2407, 5
        %v2410 = vor.u32 %v2406, %v2409
        %v2411 = vrot.slane %v2410, 4
        %v2413 = vshll.u32 %v2104, 16
        %v2415 = vrot.slane %v2413, 5
        %v2416 = vsel %vm310, %v2411, %v2415
        %v2417 = vshrl.u32 %v2104, 16
        %v2419 = vrot.slane %v2417, 4
        %v2420 = vor.u32 %v2419, %v2415
        %v2421 = vrot.slane %v2420, 4
        %v2423 = vshll.u32 %v2105, 16
        %v2425 = vrot.slane %v2423, 5
        %v2426 = vsel %vm310, %v2421, %v2425
        %v2428 = vshrl.u32 %v2106, 16
        %v2430 = vrot.slane %v2428, 4
        %v2431 = vshll.u32 %v2106, 16
        %v2433 = vrot.slane %v2431, 5
        %v2434 = vor.u32 %v2430, %v2433
        %v2435 = vrot.slane %v2434, 4
        %v2437 = vshll.u32 %v2107, 16
        %v2439 = vrot.slane %v2437, 5
        %v2440 = vsel %vm310, %v2435, %v2439
        %v2441 = vshrl.u32 %v2107, 16
        %v2443 = vrot.slane %v2441, 4
        %v2444 = vor.u32 %v2443, %v2439
        %v2445 = vrot.slane %v2444, 4
        %v2447 = vshll.u32 %v2108, 16
        %v2449 = vrot.slane %v2447, 5
        %v2450 = vsel %vm310, %v2445, %v2449
        %v2452 = vshrl.u32 %v2109, 16
        %v2454 = vrot.slane %v2452, 4
        %v2455 = vshll.u32 %v2109, 16
        %v2457 = vrot.slane %v2455, 5
        %v2458 = vor.u32 %v2454, %v2457
        %v2459 = vrot.slane %v2458, 4
        %v2461 = vshll.u32 %v2110, 16
        %v2463 = vrot.slane %v2461, 5
        %v2464 = vsel %vm310, %v2459, %v2463
        %v2465 = vshrl.u32 %v2110, 16
        %v2467 = vrot.slane %v2465, 4
        %v2468 = vor.u32 %v2467, %v2463
        %v2469 = vrot.slane %v2468, 4
        %v2471 = vshll.u32 %v2111, 16
        %v2473 = vrot.slane %v2471, 5
        %v2474 = vsel %vm310, %v2469, %v2473
        %v2476 = vshrl.u32 %v2112, 16
        %v2478 = vrot.slane %v2476, 4
        %v2479 = vshll.u32 %v2112, 16
        %v2481 = vrot.slane %v2479, 5
        %v2482 = vor.u32 %v2478, %v2481
        %v2483 = vrot.slane %v2482, 4
        %v2485 = vshll.u32 %v2113, 16
        %v2487 = vrot.slane %v2485, 5
        %v2488 = vsel %vm310, %v2483, %v2487
        %v2489 = vshrl.u32 %v2113, 16
        %v2491 = vrot.slane %v2489, 4
        %v2492 = vor.u32 %v2491, %v2487
        %v2493 = vrot.slane %v2492, 4
        %v2495 = vshll.u32 %v2114, 16
        %v2497 = vrot.slane %v2495, 5
        %v2498 = vsel %vm310, %v2493, %v2497
        %s2499 = scalar_lea.vmem %s249, 8
        %v2500 = vld [vmem:[%s2499] sm:$0x3]
        %v2501 = vunpack.c.l.b16 %v2128
        %v2502 = vunpack.c.l.b16 %v2138
        %v2503 = vunpack.c.l.b16 %v2152
        %v2504 = vunpack.c.l.b16 %v2162
        %v2505 = vunpack.c.l.b16 %v2176
        %v2506 = vunpack.c.l.b16 %v2186
        %v2507 = vunpack.c.l.b16 %v2200
        %v2508 = vunpack.c.l.b16 %v2210
        %v2509 = vunpack.c.l.b16 %v2224
        %v2510 = vunpack.c.l.b16 %v2234
        %v2511 = vunpack.c.l.b16 %v2248
        %v2512 = vunpack.c.l.b16 %v2258
        %v2513 = vunpack.c.l.b16 %v2272
        %v2514 = vunpack.c.l.b16 %v2282
        %v2515 = vunpack.c.l.b16 %v2296
        %v2516 = vunpack.c.l.b16 %v2306
        %v2517 = vunpack.c.l.b16 %v2320
        %v2518 = vunpack.c.l.b16 %v2330
        %v2519 = vunpack.c.l.b16 %v2344
        %v2520 = vunpack.c.l.b16 %v2354
        %v2521 = vunpack.c.l.b16 %v2368
        %v2522 = vunpack.c.l.b16 %v2378
        %v2523 = vunpack.c.l.b16 %v2392
        %v2524 = vunpack.c.l.b16 %v2402
        %v2525 = vunpack.c.l.b16 %v2416
        %v2526 = vunpack.c.l.b16 %v2426
        %v2527 = vunpack.c.l.b16 %v2440
        %v2528 = vunpack.c.l.b16 %v2450
        %v2529 = vunpack.c.l.b16 %v2464
        %v2530 = vunpack.c.l.b16 %v2474
        %v2531 = vunpack.c.l.b16 %v2488
        %v2532 = vunpack.c.l.b16 %v2498
        %v2533 = vpack.c.b16 %v2502, %v2501
        %v2534 = vpack.c.b16 %v2504, %v2503
        %v2535 = vpack.c.b16 %v2506, %v2505
        %v2536 = vpack.c.b16 %v2508, %v2507
        %v2537 = vpack.c.b16 %v2510, %v2509
        %v2538 = vpack.c.b16 %v2512, %v2511
        %v2539 = vpack.c.b16 %v2514, %v2513
        %v2540 = vpack.c.b16 %v2516, %v2515
        %v2541 = vpack.c.b16 %v2518, %v2517
        %v2542 = vpack.c.b16 %v2520, %v2519
        %v2543 = vpack.c.b16 %v2522, %v2521
        %v2544 = vpack.c.b16 %v2524, %v2523
        %v2545 = vpack.c.b16 %v2526, %v2525
        %v2546 = vpack.c.b16 %v2528, %v2527
        %v2547 = vpack.c.b16 %v2530, %v2529
        %v2548 = vpack.c.b16 %v2532, %v2531
        %v2550 = vsel %vm745, %v2533, 0
        %v2553 = vsel %vm745, %v2534, 0
        %v2556 = vsel %vm745, %v2535, 0
        %v2559 = vsel %vm745, %v2536, 0
        %v2562 = vsel %vm745, %v2537, 0
        %v2565 = vsel %vm745, %v2538, 0
        %v2568 = vsel %vm745, %v2539, 0
        %v2571 = vsel %vm745, %v2540, 0
        %v2574 = vsel %vm745, %v2541, 0
        %v2577 = vsel %vm745, %v2542, 0
        %v2580 = vsel %vm745, %v2543, 0
        %v2583 = vsel %vm745, %v2544, 0
        %v2586 = vsel %vm745, %v2545, 0
        %v2589 = vsel %vm745, %v2546, 0
        %v2592 = vsel %vm745, %v2547, 0
        %v2595 = vsel %vm745, %v2548, 0
        %v2598 = vsel %vm794, %v2500, 0
        %2600 = vmatprep.subr.bf16.mxu0 0
        %2601 = vmatpush1.bf16.msra.mxu0 %v2598
        %2602 = vmatprep.subr.bf16.mxu0 0
        %2603 = vmatpush1.bf16.msra.mxu0 0
        %2604 = vmatprep.subr.bf16.mxu0 0
        %2605 = vmatpush1.bf16.msra.mxu0 0
        %2606 = vmatprep.subr.bf16.mxu0 0
        %2607 = vmatpush1.bf16.msra.mxu0 0
        %2608 = vmatprep.subr.bf16.mxu0 0
        %2609 = vmatpush1.bf16.msra.mxu0 0
        %2610 = vmatprep.subr.bf16.mxu0 0
        %2611 = vmatpush1.bf16.msra.mxu0 0
        %2612 = vmatprep.subr.bf16.mxu0 0
        %2613 = vmatpush1.bf16.msra.mxu0 0
        %2614 = vmatprep.subr.bf16.mxu0 0
        %2615 = vmatpush1.bf16.msra.mxu0 0
        %2616 = vmatprep.subr.bf16.mxu0 0
        %2617 = vmatpush1.bf16.msra.mxu0 0
        %2618 = vmatprep.subr.bf16.mxu0 0
        %2619 = vmatpush1.bf16.msra.mxu0 0
        %2620 = vmatprep.subr.bf16.mxu0 0
        %2621 = vmatpush1.bf16.msra.mxu0 0
        %2622 = vmatprep.subr.bf16.mxu0 0
        %2623 = vmatpush1.bf16.msra.mxu0 0
        %2624 = vmatprep.subr.bf16.mxu0 0
        %2625 = vmatpush1.bf16.msra.mxu0 0
        %2626 = vmatprep.subr.bf16.mxu0 0
        %2627 = vmatpush1.bf16.msra.mxu0 0
        %2628 = vmatprep.subr.bf16.mxu0 0
        %2629 = vmatpush1.bf16.msra.mxu0 0
        %2630 = vmatprep.subr.bf16.mxu0 0
        %2631 = vmatpush1.bf16.msra.mxu0 0
        %2632 = vmatprep.mubr.bf16.mxu0 0
        %2633 = vmatmul.mubr.bf16.gmra.mrb[0].mxu0 %v2550
        %v2634 = vpop.f32.mrb[0].mxu0
        %v2635 = vadd.f32 0.0, %v2634
        %v2636 = vpop.f32.mrb[0].mxu0
        %v2637 = vpop.f32.mrb[0].mxu0
        %v2638 = vadd.f32 0.0, %v2637
        %v2639 = vpop.f32.mrb[0].mxu0
        %2640 = vmatprep.mubr.bf16.mxu0 0
        %2641 = vmatmul.mubr.bf16.gmra.mrb[0].mxu0 %v2553
        %v2642 = vpop.f32.mrb[0].mxu0
        %v2643 = vadd.f32 0.0, %v2642
        %v2644 = vpop.f32.mrb[0].mxu0
        %v2645 = vpop.f32.mrb[0].mxu0
        %v2646 = vadd.f32 0.0, %v2645
        %v2647 = vpop.f32.mrb[0].mxu0
        %2648 = vmatprep.mubr.bf16.mxu0 0
        %2649 = vmatmul.mubr.bf16.gmra.mrb[0].mxu0 %v2556
        %v2650 = vpop.f32.mrb[0].mxu0
        %v2651 = vadd.f32 0.0, %v2650
        %v2652 = vpop.f32.mrb[0].mxu0
        %v2653 = vpop.f32.mrb[0].mxu0
        %v2654 = vadd.f32 0.0, %v2653
        %v2655 = vpop.f32.mrb[0].mxu0
        %2656 = vmatprep.mubr.bf16.mxu0 0
        %2657 = vmatmul.mubr.bf16.gmra.mrb[0].mxu0 %v2559
        %v2658 = vpop.f32.mrb[0].mxu0
        %v2659 = vadd.f32 0.0, %v2658
        %v2660 = vpop.f32.mrb[0].mxu0
        %v2661 = vpop.f32.mrb[0].mxu0
        %v2662 = vadd.f32 0.0, %v2661
        %v2663 = vpop.f32.mrb[0].mxu0
        %2664 = vmatprep.mubr.bf16.mxu0 0
        %2665 = vmatmul.mubr.bf16.gmra.mrb[0].mxu0 %v2562
        %v2666 = vpop.f32.mrb[0].mxu0
        %v2667 = vadd.f32 0.0, %v2666
        %v2668 = vpop.f32.mrb[0].mxu0
        %v2669 = vpop.f32.mrb[0].mxu0
        %v2670 = vadd.f32 0.0, %v2669
        %v2671 = vpop.f32.mrb[0].mxu0
        %2672 = vmatprep.mubr.bf16.mxu0 0
        %2673 = vmatmul.mubr.bf16.gmra.mrb[0].mxu0 %v2565
        %v2674 = vpop.f32.mrb[0].mxu0
        %v2675 = vadd.f32 0.0, %v2674
        %v2676 = vpop.f32.mrb[0].mxu0
        %v2677 = vpop.f32.mrb[0].mxu0
        %v2678 = vadd.f32 0.0, %v2677
        %v2679 = vpop.f32.mrb[0].mxu0
        %2680 = vmatprep.mubr.bf16.mxu0 0
        %2681 = vmatmul.mubr.bf16.gmra.mrb[0].mxu0 %v2568
        %v2682 = vpop.f32.mrb[0].mxu0
        %v2683 = vadd.f32 0.0, %v2682
        %v2684 = vpop.f32.mrb[0].mxu0
        %v2685 = vpop.f32.mrb[0].mxu0
        %v2686 = vadd.f32 0.0, %v2685
        %v2687 = vpop.f32.mrb[0].mxu0
        %2688 = vmatprep.mubr.bf16.mxu0 0
        %2689 = vmatmul.mubr.bf16.gmra.mrb[0].mxu0 %v2571
        %v2690 = vpop.f32.mrb[0].mxu0
        %v2691 = vadd.f32 0.0, %v2690
        %v2692 = vpop.f32.mrb[0].mxu0
        %v2693 = vpop.f32.mrb[0].mxu0
        %v2694 = vadd.f32 0.0, %v2693
        %v2695 = vpop.f32.mrb[0].mxu0
        %2696 = vmatprep.mubr.bf16.mxu0 0
        %2697 = vmatmul.mubr.bf16.gmra.mrb[0].mxu0 %v2574
        %v2698 = vpop.f32.mrb[0].mxu0
        %v2699 = vadd.f32 0.0, %v2698
        %v2700 = vpop.f32.mrb[0].mxu0
        %v2701 = vpop.f32.mrb[0].mxu0
        %v2702 = vadd.f32 0.0, %v2701
        %v2703 = vpop.f32.mrb[0].mxu0
        %2704 = vmatprep.mubr.bf16.mxu0 0
        %2705 = vmatmul.mubr.bf16.gmra.mrb[0].mxu0 %v2577
        %v2706 = vpop.f32.mrb[0].mxu0
        %v2707 = vadd.f32 0.0, %v2706
        %v2708 = vpop.f32.mrb[0].mxu0
        %v2709 = vpop.f32.mrb[0].mxu0
        %v2710 = vadd.f32 0.0, %v2709
        %v2711 = vpop.f32.mrb[0].mxu0
        %2712 = vmatprep.mubr.bf16.mxu0 0
        %2713 = vmatmul.mubr.bf16.gmra.mrb[0].mxu0 %v2580
        %v2714 = vpop.f32.mrb[0].mxu0
        %v2715 = vadd.f32 0.0, %v2714
        %v2716 = vpop.f32.mrb[0].mxu0
        %v2717 = vpop.f32.mrb[0].mxu0
        %v2718 = vadd.f32 0.0, %v2717
        %v2719 = vpop.f32.mrb[0].mxu0
        %2720 = vmatprep.mubr.bf16.mxu0 0
        %2721 = vmatmul.mubr.bf16.gmra.mrb[0].mxu0 %v2583
        %v2722 = vpop.f32.mrb[0].mxu0
        %v2723 = vadd.f32 0.0, %v2722
        %v2724 = vpop.f32.mrb[0].mxu0
        %v2725 = vpop.f32.mrb[0].mxu0
        %v2726 = vadd.f32 0.0, %v2725
        %v2727 = vpop.f32.mrb[0].mxu0
        %2728 = vmatprep.mubr.bf16.mxu0 0
        %2729 = vmatmul.mubr.bf16.gmra.mrb[0].mxu0 %v2586
        %v2730 = vpop.f32.mrb[0].mxu0
        %v2731 = vadd.f32 0.0, %v2730
        %v2732 = vpop.f32.mrb[0].mxu0
        %v2733 = vpop.f32.mrb[0].mxu0
        %v2734 = vadd.f32 0.0, %v2733
        %v2735 = vpop.f32.mrb[0].mxu0
        %2736 = vmatprep.mubr.bf16.mxu0 0
        %2737 = vmatmul.mubr.bf16.gmra.mrb[0].mxu0 %v2589
        %v2738 = vpop.f32.mrb[0].mxu0
        %v2739 = vadd.f32 0.0, %v2738
        %v2740 = vpop.f32.mrb[0].mxu0
        %v2741 = vpop.f32.mrb[0].mxu0
        %v2742 = vadd.f32 0.0, %v2741
        %v2743 = vpop.f32.mrb[0].mxu0
        %2744 = vmatprep.mubr.bf16.mxu0 0
        %2745 = vmatmul.mubr.bf16.gmra.mrb[0].mxu0 %v2592
        %v2746 = vpop.f32.mrb[0].mxu0
        %v2747 = vadd.f32 0.0, %v2746
        %v2748 = vpop.f32.mrb[0].mxu0
        %v2749 = vpop.f32.mrb[0].mxu0
        %v2750 = vadd.f32 0.0, %v2749
        %v2751 = vpop.f32.mrb[0].mxu0
        %2752 = vmatprep.mubr.bf16.mxu0 0
        %2753 = vmatmul.mubr.bf16.gmra.mrb[0].mxu0 %v2595
        %v2754 = vpop.f32.mrb[0].mxu0
        %v2755 = vadd.f32 0.0, %v2754
        %v2756 = vpop.f32.mrb[0].mxu0
        %v2757 = vpop.f32.mrb[0].mxu0
        %v2758 = vadd.f32 0.0, %v2757
        %v2759 = vpop.f32.mrb[0].mxu0
        %2760 = vdwg.mxu0
        %v2761 = vadd.f32 %v2035, %v2635
        %v2762 = vadd.f32 %v2036, %v2638
        %v2763 = vadd.f32 %v2037, %v2643
        %v2764 = vadd.f32 %v2038, %v2646
        %v2765 = vadd.f32 %v2039, %v2651
        %v2766 = vadd.f32 %v2040, %v2654
        %v2767 = vadd.f32 %v2041, %v2659
        %v2768 = vadd.f32 %v2042, %v2662
        %v2769 = vadd.f32 %v2043, %v2667
        %v2770 = vadd.f32 %v2044, %v2670
        %v2771 = vadd.f32 %v2045, %v2675
        %v2772 = vadd.f32 %v2046, %v2678
        %v2773 = vadd.f32 %v2047, %v2683
        %v2774 = vadd.f32 %v2048, %v2686
        %v2775 = vadd.f32 %v2049, %v2691
        %v2776 = vadd.f32 %v2050, %v2694
        %v2777 = vadd.f32 %v2051, %v2699
        %v2778 = vadd.f32 %v2052, %v2702
        %v2779 = vadd.f32 %v2053, %v2707
        %v2780 = vadd.f32 %v2054, %v2710
        %v2781 = vadd.f32 %v2055, %v2715
        %v2782 = vadd.f32 %v2056, %v2718
        %v2783 = vadd.f32 %v2057, %v2723
        %v2784 = vadd.f32 %v2058, %v2726
        %v2785 = vadd.f32 %v2059, %v2731
        %v2786 = vadd.f32 %v2060, %v2734
        %v2787 = vadd.f32 %v2061, %v2739
        %v2788 = vadd.f32 %v2062, %v2742
        %v2789 = vadd.f32 %v2063, %v2747
        %v2790 = vadd.f32 %v2064, %v2750
        %v2791 = vadd.f32 %v2065, %v2755
        %v2792 = vadd.f32 %v2066, %v2758
        %v2793 = vld [vmem:[%s1708] sm:$0xe]
        %v2794 = vld [vmem:[%s1708 + $0xc] sm:$0xe]
        %v2795 = vld [vmem:[%s1708 + $0x18] sm:$0xe]
        %v2796 = vld [vmem:[%s1708 + $0x24] sm:$0xe]
        %v2797 = vld [vmem:[%s1708 + $0x30] sm:$0xe]
        %v2798 = vld [vmem:[%s1708 + $0x3c] sm:$0xe]
        %v2799 = vld [vmem:[%s1708 + $0x48] sm:$0xe]
        %v2800 = vld [vmem:[%s1708 + $0x54] sm:$0xe]
        %v2801 = vld [vmem:[%s1708 + $0x60] sm:$0xe]
        %v2802 = vld [vmem:[%s1708 + $0x6c] sm:$0xe]
        %v2803 = vld [vmem:[%s1708 + $0x78] sm:$0xe]
        %v2804 = vld [vmem:[%s1708 + $0x84] sm:$0xe]
        %v2805 = vld [vmem:[%s1708 + $0x90] sm:$0xe]
        %v2806 = vld [vmem:[%s1708 + $0x9c] sm:$0xe]
        %v2807 = vld [vmem:[%s1708 + $0xa8] sm:$0xe]
        %v2808 = vld [vmem:[%s1708 + $0xb4] sm:$0xe]
        %v2857 = vrot.slane %v2793, 5
        %v2858 = vrot.slane %v2857, 4
        %v2859 = vrot.slane %v2068, 5
        %v2860 = vsel %vm1301, %v2858, %v2859
        %v2861 = vrot.slane %v2859, 4
        %v2862 = vrot.slane %v2069, 5
        %v2863 = vsel %vm1301, %v2861, %v2862
        %v2864 = vrot.slane %v2794, 5
        %v2865 = vrot.slane %v2864, 4
        %v2866 = vrot.slane %v2071, 5
        %v2867 = vsel %vm1301, %v2865, %v2866
        %v2868 = vrot.slane %v2866, 4
        %v2869 = vrot.slane %v2072, 5
        %v2870 = vsel %vm1301, %v2868, %v2869
        %v2871 = vrot.slane %v2795, 5
        %v2872 = vrot.slane %v2871, 4
        %v2873 = vrot.slane %v2074, 5
        %v2874 = vsel %vm1301, %v2872, %v2873
        %v2875 = vrot.slane %v2873, 4
        %v2876 = vrot.slane %v2075, 5
        %v2877 = vsel %vm1301, %v2875, %v2876
        %v2878 = vrot.slane %v2796, 5
        %v2879 = vrot.slane %v2878, 4
        %v2880 = vrot.slane %v2077, 5
        %v2881 = vsel %vm1301, %v2879, %v2880
        %v2882 = vrot.slane %v2880, 4
        %v2883 = vrot.slane %v2078, 5
        %v2884 = vsel %vm1301, %v2882, %v2883
        %v2885 = vrot.slane %v2797, 5
        %v2886 = vrot.slane %v2885, 4
        %v2887 = vrot.slane %v2080, 5
        %v2888 = vsel %vm1301, %v2886, %v2887
        %v2889 = vrot.slane %v2887, 4
        %v2890 = vrot.slane %v2081, 5
        %v2891 = vsel %vm1301, %v2889, %v2890
        %v2892 = vrot.slane %v2798, 5
        %v2893 = vrot.slane %v2892, 4
        %v2894 = vrot.slane %v2083, 5
        %v2895 = vsel %vm1301, %v2893, %v2894
        %v2896 = vrot.slane %v2894, 4
        %v2897 = vrot.slane %v2084, 5
        %v2898 = vsel %vm1301, %v2896, %v2897
        %v2899 = vrot.slane %v2799, 5
        %v2900 = vrot.slane %v2899, 4
        %v2901 = vrot.slane %v2086, 5
        %v2902 = vsel %vm1301, %v2900, %v2901
        %v2903 = vrot.slane %v2901, 4
        %v2904 = vrot.slane %v2087, 5
        %v2905 = vsel %vm1301, %v2903, %v2904
        %v2906 = vrot.slane %v2800, 5
        %v2907 = vrot.slane %v2906, 4
        %v2908 = vrot.slane %v2089, 5
        %v2909 = vsel %vm1301, %v2907, %v2908
        %v2910 = vrot.slane %v2908, 4
        %v2911 = vrot.slane %v2090, 5
        %v2912 = vsel %vm1301, %v2910, %v2911
        %v2913 = vrot.slane %v2801, 5
        %v2914 = vrot.slane %v2913, 4
        %v2915 = vrot.slane %v2092, 5
        %v2916 = vsel %vm1301, %v2914, %v2915
        %v2917 = vrot.slane %v2915, 4
        %v2918 = vrot.slane %v2093, 5
        %v2919 = vsel %vm1301, %v2917, %v2918
        %v2920 = vrot.slane %v2802, 5
        %v2921 = vrot.slane %v2920, 4
        %v2922 = vrot.slane %v2095, 5
        %v2923 = vsel %vm1301, %v2921, %v2922
        %v2924 = vrot.slane %v2922, 4
        %v2925 = vrot.slane %v2096, 5
        %v2926 = vsel %vm1301, %v2924, %v2925
        %v2927 = vrot.slane %v2803, 5
        %v2928 = vrot.slane %v2927, 4
        %v2929 = vrot.slane %v2098, 5
        %v2930 = vsel %vm1301, %v2928, %v2929
        %v2931 = vrot.slane %v2929, 4
        %v2932 = vrot.slane %v2099, 5
        %v2933 = vsel %vm1301, %v2931, %v2932
        %v2934 = vrot.slane %v2804, 5
        %v2935 = vrot.slane %v2934, 4
        %v2936 = vrot.slane %v2101, 5
        %v2937 = vsel %vm1301, %v2935, %v2936
        %v2938 = vrot.slane %v2936, 4
        %v2939 = vrot.slane %v2102, 5
        %v2940 = vsel %vm1301, %v2938, %v2939
        %v2941 = vrot.slane %v2805, 5
        %v2942 = vrot.slane %v2941, 4
        %v2943 = vrot.slane %v2104, 5
        %v2944 = vsel %vm1301, %v2942, %v2943
        %v2945 = vrot.slane %v2943, 4
        %v2946 = vrot.slane %v2105, 5
        %v2947 = vsel %vm1301, %v2945, %v2946
        %v2948 = vrot.slane %v2806, 5
        %v2949 = vrot.slane %v2948, 4
        %v2950 = vrot.slane %v2107, 5
        %v2951 = vsel %vm1301, %v2949, %v2950
        %v2952 = vrot.slane %v2950, 4
        %v2953 = vrot.slane %v2108, 5
        %v2954 = vsel %vm1301, %v2952, %v2953
        %v2955 = vrot.slane %v2807, 5
        %v2956 = vrot.slane %v2955, 4
        %v2957 = vrot.slane %v2110, 5
        %v2958 = vsel %vm1301, %v2956, %v2957
        %v2959 = vrot.slane %v2957, 4
        %v2960 = vrot.slane %v2111, 5
        %v2961 = vsel %vm1301, %v2959, %v2960
        %v2962 = vrot.slane %v2808, 5
        %v2963 = vrot.slane %v2962, 4
        %v2964 = vrot.slane %v2113, 5
        %v2965 = vsel %vm1301, %v2963, %v2964
        %v2966 = vrot.slane %v2964, 4
        %v2967 = vrot.slane %v2114, 5
        %v2968 = vsel %vm1301, %v2966, %v2967
        %s2969 = scalar_lea.vmem %s249, 10
        %v2970 = vld [vmem:[%s2969] sm:$0x3]
        %v2971 = vunpack.c.l.b16 %v2860
        %v2972 = vunpack.c.l.b16 %v2863
        %v2973 = vunpack.c.l.b16 %v2867
        %v2974 = vunpack.c.l.b16 %v2870
        %v2975 = vunpack.c.l.b16 %v2874
        %v2976 = vunpack.c.l.b16 %v2877
        %v2977 = vunpack.c.l.b16 %v2881
        %v2978 = vunpack.c.l.b16 %v2884
        %v2979 = vunpack.c.l.b16 %v2888
        %v2980 = vunpack.c.l.b16 %v2891
        %v2981 = vunpack.c.l.b16 %v2895
        %v2982 = vunpack.c.l.b16 %v2898
        %v2983 = vunpack.c.l.b16 %v2902
        %v2984 = vunpack.c.l.b16 %v2905
        %v2985 = vunpack.c.l.b16 %v2909
        %v2986 = vunpack.c.l.b16 %v2912
        %v2987 = vunpack.c.l.b16 %v2916
        %v2988 = vunpack.c.l.b16 %v2919
        %v2989 = vunpack.c.l.b16 %v2923
        %v2990 = vunpack.c.l.b16 %v2926
        %v2991 = vunpack.c.l.b16 %v2930
        %v2992 = vunpack.c.l.b16 %v2933
        %v2993 = vunpack.c.l.b16 %v2937
        %v2994 = vunpack.c.l.b16 %v2940
        %v2995 = vunpack.c.l.b16 %v2944
        %v2996 = vunpack.c.l.b16 %v2947
        %v2997 = vunpack.c.l.b16 %v2951
        %v2998 = vunpack.c.l.b16 %v2954
        %v2999 = vunpack.c.l.b16 %v2958
        %v3000 = vunpack.c.l.b16 %v2961
        %v3001 = vunpack.c.l.b16 %v2965
        %v3002 = vunpack.c.l.b16 %v2968
        %v3003 = vpack.c.b16 %v2972, %v2971
        %v3004 = vpack.c.b16 %v2974, %v2973
        %v3005 = vpack.c.b16 %v2976, %v2975
        %v3006 = vpack.c.b16 %v2978, %v2977
        %v3007 = vpack.c.b16 %v2980, %v2979
        %v3008 = vpack.c.b16 %v2982, %v2981
        %v3009 = vpack.c.b16 %v2984, %v2983
        %v3010 = vpack.c.b16 %v2986, %v2985
        %v3011 = vpack.c.b16 %v2988, %v2987
        %v3012 = vpack.c.b16 %v2990, %v2989
        %v3013 = vpack.c.b16 %v2992, %v2991
        %v3014 = vpack.c.b16 %v2994, %v2993
        %v3015 = vpack.c.b16 %v2996, %v2995
        %v3016 = vpack.c.b16 %v2998, %v2997
        %v3017 = vpack.c.b16 %v3000, %v2999
        %v3018 = vpack.c.b16 %v3002, %v3001
        %v3020 = vsel %vm745, %v3003, 0
        %v3023 = vsel %vm745, %v3004, 0
        %v3026 = vsel %vm745, %v3005, 0
        %v3029 = vsel %vm745, %v3006, 0
        %v3032 = vsel %vm745, %v3007, 0
        %v3035 = vsel %vm745, %v3008, 0
        %v3038 = vsel %vm745, %v3009, 0
        %v3041 = vsel %vm745, %v3010, 0
        %v3044 = vsel %vm745, %v3011, 0
        %v3047 = vsel %vm745, %v3012, 0
        %v3050 = vsel %vm745, %v3013, 0
        %v3053 = vsel %vm745, %v3014, 0
        %v3056 = vsel %vm745, %v3015, 0
        %v3059 = vsel %vm745, %v3016, 0
        %v3062 = vsel %vm745, %v3017, 0
        %v3065 = vsel %vm745, %v3018, 0
        %v3068 = vsel %vm794, %v2970, 0
        %3070 = vmatprep.subr.bf16.mxu0 0
        %3071 = vmatpush1.bf16.msra.mxu0 %v3068
        %3072 = vmatprep.subr.bf16.mxu0 0
        %3073 = vmatpush1.bf16.msra.mxu0 0
        %3074 = vmatprep.subr.bf16.mxu0 0
        %3075 = vmatpush1.bf16.msra.mxu0 0
        %3076 = vmatprep.subr.bf16.mxu0 0
        %3077 = vmatpush1.bf16.msra.mxu0 0
        %3078 = vmatprep.subr.bf16.mxu0 0
        %3079 = vmatpush1.bf16.msra.mxu0 0
        %3080 = vmatprep.subr.bf16.mxu0 0
        %3081 = vmatpush1.bf16.msra.mxu0 0
        %3082 = vmatprep.subr.bf16.mxu0 0
        %3083 = vmatpush1.bf16.msra.mxu0 0
        %3084 = vmatprep.subr.bf16.mxu0 0
        %3085 = vmatpush1.bf16.msra.mxu0 0
        %3086 = vmatprep.subr.bf16.mxu0 0
        %3087 = vmatpush1.bf16.msra.mxu0 0
        %3088 = vmatprep.subr.bf16.mxu0 0
        %3089 = vmatpush1.bf16.msra.mxu0 0
        %3090 = vmatprep.subr.bf16.mxu0 0
        %3091 = vmatpush1.bf16.msra.mxu0 0
        %3092 = vmatprep.subr.bf16.mxu0 0
        %3093 = vmatpush1.bf16.msra.mxu0 0
        %3094 = vmatprep.subr.bf16.mxu0 0
        %3095 = vmatpush1.bf16.msra.mxu0 0
        %3096 = vmatprep.subr.bf16.mxu0 0
        %3097 = vmatpush1.bf16.msra.mxu0 0
        %3098 = vmatprep.subr.bf16.mxu0 0
        %3099 = vmatpush1.bf16.msra.mxu0 0
        %3100 = vmatprep.subr.bf16.mxu0 0
        %3101 = vmatpush1.bf16.msra.mxu0 0
        %3102 = vmatprep.mubr.bf16.mxu0 0
        %3103 = vmatmul.mubr.bf16.gmra.mrb[0].mxu0 %v3020
        %v3104 = vpop.f32.mrb[0].mxu0
        %v3105 = vadd.f32 0.0, %v3104
        %v3106 = vpop.f32.mrb[0].mxu0
        %v3107 = vpop.f32.mrb[0].mxu0
        %v3108 = vadd.f32 0.0, %v3107
        %v3109 = vpop.f32.mrb[0].mxu0
        %3110 = vmatprep.mubr.bf16.mxu0 0
        %3111 = vmatmul.mubr.bf16.gmra.mrb[0].mxu0 %v3023
        %v3112 = vpop.f32.mrb[0].mxu0
        %v3113 = vadd.f32 0.0, %v3112
        %v3114 = vpop.f32.mrb[0].mxu0
        %v3115 = vpop.f32.mrb[0].mxu0
        %v3116 = vadd.f32 0.0, %v3115
        %v3117 = vpop.f32.mrb[0].mxu0
        %3118 = vmatprep.mubr.bf16.mxu0 0
        %3119 = vmatmul.mubr.bf16.gmra.mrb[0].mxu0 %v3026
        %v3120 = vpop.f32.mrb[0].mxu0
        %v3121 = vadd.f32 0.0, %v3120
        %v3122 = vpop.f32.mrb[0].mxu0
        %v3123 = vpop.f32.mrb[0].mxu0
        %v3124 = vadd.f32 0.0, %v3123
        %v3125 = vpop.f32.mrb[0].mxu0
        %3126 = vmatprep.mubr.bf16.mxu0 0
        %3127 = vmatmul.mubr.bf16.gmra.mrb[0].mxu0 %v3029
        %v3128 = vpop.f32.mrb[0].mxu0
        %v3129 = vadd.f32 0.0, %v3128
        %v3130 = vpop.f32.mrb[0].mxu0
        %v3131 = vpop.f32.mrb[0].mxu0
        %v3132 = vadd.f32 0.0, %v3131
        %v3133 = vpop.f32.mrb[0].mxu0
        %3134 = vmatprep.mubr.bf16.mxu0 0
        %3135 = vmatmul.mubr.bf16.gmra.mrb[0].mxu0 %v3032
        %v3136 = vpop.f32.mrb[0].mxu0
        %v3137 = vadd.f32 0.0, %v3136
        %v3138 = vpop.f32.mrb[0].mxu0
        %v3139 = vpop.f32.mrb[0].mxu0
        %v3140 = vadd.f32 0.0, %v3139
        %v3141 = vpop.f32.mrb[0].mxu0
        %3142 = vmatprep.mubr.bf16.mxu0 0
        %3143 = vmatmul.mubr.bf16.gmra.mrb[0].mxu0 %v3035
        %v3144 = vpop.f32.mrb[0].mxu0
        %v3145 = vadd.f32 0.0, %v3144
        %v3146 = vpop.f32.mrb[0].mxu0
        %v3147 = vpop.f32.mrb[0].mxu0
        %v3148 = vadd.f32 0.0, %v3147
        %v3149 = vpop.f32.mrb[0].mxu0
        %3150 = vmatprep.mubr.bf16.mxu0 0
        %3151 = vmatmul.mubr.bf16.gmra.mrb[0].mxu0 %v3038
        %v3152 = vpop.f32.mrb[0].mxu0
        %v3153 = vadd.f32 0.0, %v3152
        %v3154 = vpop.f32.mrb[0].mxu0
        %v3155 = vpop.f32.mrb[0].mxu0
        %v3156 = vadd.f32 0.0, %v3155
        %v3157 = vpop.f32.mrb[0].mxu0
        %3158 = vmatprep.mubr.bf16.mxu0 0
        %3159 = vmatmul.mubr.bf16.gmra.mrb[0].mxu0 %v3041
        %v3160 = vpop.f32.mrb[0].mxu0
        %v3161 = vadd.f32 0.0, %v3160
        %v3162 = vpop.f32.mrb[0].mxu0
        %v3163 = vpop.f32.mrb[0].mxu0
        %v3164 = vadd.f32 0.0, %v3163
        %v3165 = vpop.f32.mrb[0].mxu0
        %3166 = vmatprep.mubr.bf16.mxu0 0
        %3167 = vmatmul.mubr.bf16.gmra.mrb[0].mxu0 %v3044
        %v3168 = vpop.f32.mrb[0].mxu0
        %v3169 = vadd.f32 0.0, %v3168
        %v3170 = vpop.f32.mrb[0].mxu0
        %v3171 = vpop.f32.mrb[0].mxu0
        %v3172 = vadd.f32 0.0, %v3171
        %v3173 = vpop.f32.mrb[0].mxu0
        %3174 = vmatprep.mubr.bf16.mxu0 0
        %3175 = vmatmul.mubr.bf16.gmra.mrb[0].mxu0 %v3047
        %v3176 = vpop.f32.mrb[0].mxu0
        %v3177 = vadd.f32 0.0, %v3176
        %v3178 = vpop.f32.mrb[0].mxu0
        %v3179 = vpop.f32.mrb[0].mxu0
        %v3180 = vadd.f32 0.0, %v3179
        %v3181 = vpop.f32.mrb[0].mxu0
        %3182 = vmatprep.mubr.bf16.mxu0 0
        %3183 = vmatmul.mubr.bf16.gmra.mrb[0].mxu0 %v3050
        %v3184 = vpop.f32.mrb[0].mxu0
        %v3185 = vadd.f32 0.0, %v3184
        %v3186 = vpop.f32.mrb[0].mxu0
        %v3187 = vpop.f32.mrb[0].mxu0
        %v3188 = vadd.f32 0.0, %v3187
        %v3189 = vpop.f32.mrb[0].mxu0
        %3190 = vmatprep.mubr.bf16.mxu0 0
        %3191 = vmatmul.mubr.bf16.gmra.mrb[0].mxu0 %v3053
        %v3192 = vpop.f32.mrb[0].mxu0
        %v3193 = vadd.f32 0.0, %v3192
        %v3194 = vpop.f32.mrb[0].mxu0
        %v3195 = vpop.f32.mrb[0].mxu0
        %v3196 = vadd.f32 0.0, %v3195
        %v3197 = vpop.f32.mrb[0].mxu0
        %3198 = vmatprep.mubr.bf16.mxu0 0
        %3199 = vmatmul.mubr.bf16.gmra.mrb[0].mxu0 %v3056
        %v3200 = vpop.f32.mrb[0].mxu0
        %v3201 = vadd.f32 0.0, %v3200
        %v3202 = vpop.f32.mrb[0].mxu0
        %v3203 = vpop.f32.mrb[0].mxu0
        %v3204 = vadd.f32 0.0, %v3203
        %v3205 = vpop.f32.mrb[0].mxu0
        %3206 = vmatprep.mubr.bf16.mxu0 0
        %3207 = vmatmul.mubr.bf16.gmra.mrb[0].mxu0 %v3059
        %v3208 = vpop.f32.mrb[0].mxu0
        %v3209 = vadd.f32 0.0, %v3208
        %v3210 = vpop.f32.mrb[0].mxu0
        %v3211 = vpop.f32.mrb[0].mxu0
        %v3212 = vadd.f32 0.0, %v3211
        %v3213 = vpop.f32.mrb[0].mxu0
        %3214 = vmatprep.mubr.bf16.mxu0 0
        %3215 = vmatmul.mubr.bf16.gmra.mrb[0].mxu0 %v3062
        %v3216 = vpop.f32.mrb[0].mxu0
        %v3217 = vadd.f32 0.0, %v3216
        %v3218 = vpop.f32.mrb[0].mxu0
        %v3219 = vpop.f32.mrb[0].mxu0
        %v3220 = vadd.f32 0.0, %v3219
        %v3221 = vpop.f32.mrb[0].mxu0
        %3222 = vmatprep.mubr.bf16.mxu0 0
        %3223 = vmatmul.mubr.bf16.gmra.mrb[0].mxu0 %v3065
        %v3224 = vpop.f32.mrb[0].mxu0
        %v3225 = vadd.f32 0.0, %v3224
        %v3226 = vpop.f32.mrb[0].mxu0
        %v3227 = vpop.f32.mrb[0].mxu0
        %v3228 = vadd.f32 0.0, %v3227
        %v3229 = vpop.f32.mrb[0].mxu0
        %3230 = vdwg.mxu0
        %v3231 = vadd.f32 %v2761, %v3105
        %v3232 = vadd.f32 %v2762, %v3108
        %v3233 = vadd.f32 %v2763, %v3113
        %v3234 = vadd.f32 %v2764, %v3116
        %v3235 = vadd.f32 %v2765, %v3121
        %v3236 = vadd.f32 %v2766, %v3124
        %v3237 = vadd.f32 %v2767, %v3129
        %v3238 = vadd.f32 %v2768, %v3132
        %v3239 = vadd.f32 %v2769, %v3137
        %v3240 = vadd.f32 %v2770, %v3140
        %v3241 = vadd.f32 %v2771, %v3145
        %v3242 = vadd.f32 %v2772, %v3148
        %v3243 = vadd.f32 %v2773, %v3153
        %v3244 = vadd.f32 %v2774, %v3156
        %v3245 = vadd.f32 %v2775, %v3161
        %v3246 = vadd.f32 %v2776, %v3164
        %v3247 = vadd.f32 %v2777, %v3169
        %v3248 = vadd.f32 %v2778, %v3172
        %v3249 = vadd.f32 %v2779, %v3177
        %v3250 = vadd.f32 %v2780, %v3180
        %v3251 = vadd.f32 %v2781, %v3185
        %v3252 = vadd.f32 %v2782, %v3188
        %v3253 = vadd.f32 %v2783, %v3193
        %v3254 = vadd.f32 %v2784, %v3196
        %v3255 = vadd.f32 %v2785, %v3201
        %v3256 = vadd.f32 %v2786, %v3204
        %v3257 = vadd.f32 %v2787, %v3209
        %v3258 = vadd.f32 %v2788, %v3212
        %v3259 = vadd.f32 %v2789, %v3217
        %v3260 = vadd.f32 %v2790, %v3220
        %v3261 = vadd.f32 %v2791, %v3225
        %v3262 = vadd.f32 %v2792, %v3228
        %s3263 = scalar_lea.vmem %s245, 24
        %v3264 = vld [vmem:[%s3263] sm:$0xf]
        %v3265 = vld [vmem:[%s3263 + $0x4] sm:$0xf]
        %v3266 = vld [vmem:[%s3263 + $0xc] sm:$0xf]
        %v3267 = vld [vmem:[%s3263 + $0x10] sm:$0xf]
        %v3268 = vld [vmem:[%s3263 + $0x18] sm:$0xf]
        %v3269 = vld [vmem:[%s3263 + $0x1c] sm:$0xf]
        %v3270 = vld [vmem:[%s3263 + $0x24] sm:$0xf]
        %v3271 = vld [vmem:[%s3263 + $0x28] sm:$0xf]
        %v3272 = vld [vmem:[%s3263 + $0x30] sm:$0xf]
        %v3273 = vld [vmem:[%s3263 + $0x34] sm:$0xf]
        %v3274 = vld [vmem:[%s3263 + $0x3c] sm:$0xf]
        %v3275 = vld [vmem:[%s3263 + $0x40] sm:$0xf]
        %v3276 = vld [vmem:[%s3263 + $0x48] sm:$0xf]
        %v3277 = vld [vmem:[%s3263 + $0x4c] sm:$0xf]
        %v3278 = vld [vmem:[%s3263 + $0x54] sm:$0xf]
        %v3279 = vld [vmem:[%s3263 + $0x58] sm:$0xf]
        %v3280 = vld [vmem:[%s3263 + $0x60] sm:$0xf]
        %v3281 = vld [vmem:[%s3263 + $0x64] sm:$0xf]
        %v3282 = vld [vmem:[%s3263 + $0x6c] sm:$0xf]
        %v3283 = vld [vmem:[%s3263 + $0x70] sm:$0xf]
        %v3284 = vld [vmem:[%s3263 + $0x78] sm:$0xf]
        %v3285 = vld [vmem:[%s3263 + $0x7c] sm:$0xf]
        %v3286 = vld [vmem:[%s3263 + $0x84] sm:$0xf]
        %v3287 = vld [vmem:[%s3263 + $0x88] sm:$0xf]
        %v3288 = vld [vmem:[%s3263 + $0x90] sm:$0xf]
        %v3289 = vld [vmem:[%s3263 + $0x94] sm:$0xf]
        %v3290 = vld [vmem:[%s3263 + $0x9c] sm:$0xf]
        %v3291 = vld [vmem:[%s3263 + $0xa0] sm:$0xf]
        %v3292 = vld [vmem:[%s3263 + $0xa8] sm:$0xf]
        %v3293 = vld [vmem:[%s3263 + $0xac] sm:$0xf]
        %v3294 = vld [vmem:[%s3263 + $0xb4] sm:$0xf]
        %v3295 = vld [vmem:[%s3263 + $0xb8] sm:$0xf]
        %s3296 = scalar_lea.vmem %s249, 12
        %v3297 = vld [vmem:[%s3296] sm:$0x3]
        %v3330 = vunpack.c.l.b16 %v3264
        %v3331 = vunpack.c.l.b16 %v3265
        %v3332 = vunpack.c.l.b16 %v3266
        %v3333 = vunpack.c.l.b16 %v3267
        %v3334 = vunpack.c.l.b16 %v3268
        %v3335 = vunpack.c.l.b16 %v3269
        %v3336 = vunpack.c.l.b16 %v3270
        %v3337 = vunpack.c.l.b16 %v3271
        %v3338 = vunpack.c.l.b16 %v3272
        %v3339 = vunpack.c.l.b16 %v3273
        %v3340 = vunpack.c.l.b16 %v3274
        %v3341 = vunpack.c.l.b16 %v3275
        %v3342 = vunpack.c.l.b16 %v3276
        %v3343 = vunpack.c.l.b16 %v3277
        %v3344 = vunpack.c.l.b16 %v3278
        %v3345 = vunpack.c.l.b16 %v3279
        %v3346 = vunpack.c.l.b16 %v3280
        %v3347 = vunpack.c.l.b16 %v3281
        %v3348 = vunpack.c.l.b16 %v3282
        %v3349 = vunpack.c.l.b16 %v3283
        %v3350 = vunpack.c.l.b16 %v3284
        %v3351 = vunpack.c.l.b16 %v3285
        %v3352 = vunpack.c.l.b16 %v3286
        %v3353 = vunpack.c.l.b16 %v3287
        %v3354 = vunpack.c.l.b16 %v3288
        %v3355 = vunpack.c.l.b16 %v3289
        %v3356 = vunpack.c.l.b16 %v3290
        %v3357 = vunpack.c.l.b16 %v3291
        %v3358 = vunpack.c.l.b16 %v3292
        %v3359 = vunpack.c.l.b16 %v3293
        %v3360 = vunpack.c.l.b16 %v3294
        %v3361 = vunpack.c.l.b16 %v3295
        %v3362 = vpack.c.b16 %v3331, %v3330
        %v3363 = vpack.c.b16 %v3333, %v3332
        %v3364 = vpack.c.b16 %v3335, %v3334
        %v3365 = vpack.c.b16 %v3337, %v3336
        %v3366 = vpack.c.b16 %v3339, %v3338
        %v3367 = vpack.c.b16 %v3341, %v3340
        %v3368 = vpack.c.b16 %v3343, %v3342
        %v3369 = vpack.c.b16 %v3345, %v3344
        %v3370 = vpack.c.b16 %v3347, %v3346
        %v3371 = vpack.c.b16 %v3349, %v3348
        %v3372 = vpack.c.b16 %v3351, %v3350
        %v3373 = vpack.c.b16 %v3353, %v3352
        %v3374 = vpack.c.b16 %v3355, %v3354
        %v3375 = vpack.c.b16 %v3357, %v3356
        %v3376 = vpack.c.b16 %v3359, %v3358
        %v3377 = vpack.c.b16 %v3361, %v3360
        %v3379 = vsel %vm745, %v3362, 0
        %v3382 = vsel %vm745, %v3363, 0
        %v3385 = vsel %vm745, %v3364, 0
        %v3388 = vsel %vm745, %v3365, 0
        %v3391 = vsel %vm745, %v3366, 0
        %v3394 = vsel %vm745, %v3367, 0
        %v3397 = vsel %vm745, %v3368, 0
        %v3400 = vsel %vm745, %v3369, 0
        %v3403 = vsel %vm745, %v3370, 0
        %v3406 = vsel %vm745, %v3371, 0
        %v3409 = vsel %vm745, %v3372, 0
        %v3412 = vsel %vm745, %v3373, 0
        %v3415 = vsel %vm745, %v3374, 0
        %v3418 = vsel %vm745, %v3375, 0
        %v3421 = vsel %vm745, %v3376, 0
        %v3424 = vsel %vm745, %v3377, 0
        %v3427 = vsel %vm794, %v3297, 0
        %3429 = vmatprep.subr.bf16.mxu0 0
        %3430 = vmatpush1.bf16.msra.mxu0 %v3427
        %3431 = vmatprep.subr.bf16.mxu0 0
        %3432 = vmatpush1.bf16.msra.mxu0 0
        %3433 = vmatprep.subr.bf16.mxu0 0
        %3434 = vmatpush1.bf16.msra.mxu0 0
        %3435 = vmatprep.subr.bf16.mxu0 0
        %3436 = vmatpush1.bf16.msra.mxu0 0
        %3437 = vmatprep.subr.bf16.mxu0 0
        %3438 = vmatpush1.bf16.msra.mxu0 0
        %3439 = vmatprep.subr.bf16.mxu0 0
        %3440 = vmatpush1.bf16.msra.mxu0 0
        %3441 = vmatprep.subr.bf16.mxu0 0
        %3442 = vmatpush1.bf16.msra.mxu0 0
        %3443 = vmatprep.subr.bf16.mxu0 0
        %3444 = vmatpush1.bf16.msra.mxu0 0
        %3445 = vmatprep.subr.bf16.mxu0 0
        %3446 = vmatpush1.bf16.msra.mxu0 0
        %3447 = vmatprep.subr.bf16.mxu0 0
        %3448 = vmatpush1.bf16.msra.mxu0 0
        %3449 = vmatprep.subr.bf16.mxu0 0
        %3450 = vmatpush1.bf16.msra.mxu0 0
        %3451 = vmatprep.subr.bf16.mxu0 0
        %3452 = vmatpush1.bf16.msra.mxu0 0
        %3453 = vmatprep.subr.bf16.mxu0 0
        %3454 = vmatpush1.bf16.msra.mxu0 0
        %3455 = vmatprep.subr.bf16.mxu0 0
        %3456 = vmatpush1.bf16.msra.mxu0 0
        %3457 = vmatprep.subr.bf16.mxu0 0
        %3458 = vmatpush1.bf16.msra.mxu0 0
        %3459 = vmatprep.subr.bf16.mxu0 0
        %3460 = vmatpush1.bf16.msra.mxu0 0
        %3461 = vmatprep.mubr.bf16.mxu0 0
        %3462 = vmatmul.mubr.bf16.gmra.mrb[0].mxu0 %v3379
        %v3463 = vpop.f32.mrb[0].mxu0
        %v3464 = vadd.f32 0.0, %v3463
        %v3465 = vpop.f32.mrb[0].mxu0
        %v3466 = vpop.f32.mrb[0].mxu0
        %v3467 = vadd.f32 0.0, %v3466
        %v3468 = vpop.f32.mrb[0].mxu0
        %3469 = vmatprep.mubr.bf16.mxu0 0
        %3470 = vmatmul.mubr.bf16.gmra.mrb[0].mxu0 %v3382
        %v3471 = vpop.f32.mrb[0].mxu0
        %v3472 = vadd.f32 0.0, %v3471
        %v3473 = vpop.f32.mrb[0].mxu0
        %v3474 = vpop.f32.mrb[0].mxu0
        %v3475 = vadd.f32 0.0, %v3474
        %v3476 = vpop.f32.mrb[0].mxu0
        %3477 = vmatprep.mubr.bf16.mxu0 0
        %3478 = vmatmul.mubr.bf16.gmra.mrb[0].mxu0 %v3385
        %v3479 = vpop.f32.mrb[0].mxu0
        %v3480 = vadd.f32 0.0, %v3479
        %v3481 = vpop.f32.mrb[0].mxu0
        %v3482 = vpop.f32.mrb[0].mxu0
        %v3483 = vadd.f32 0.0, %v3482
        %v3484 = vpop.f32.mrb[0].mxu0
        %3485 = vmatprep.mubr.bf16.mxu0 0
        %3486 = vmatmul.mubr.bf16.gmra.mrb[0].mxu0 %v3388
        %v3487 = vpop.f32.mrb[0].mxu0
        %v3488 = vadd.f32 0.0, %v3487
        %v3489 = vpop.f32.mrb[0].mxu0
        %v3490 = vpop.f32.mrb[0].mxu0
        %v3491 = vadd.f32 0.0, %v3490
        %v3492 = vpop.f32.mrb[0].mxu0
        %3493 = vmatprep.mubr.bf16.mxu0 0
        %3494 = vmatmul.mubr.bf16.gmra.mrb[0].mxu0 %v3391
        %v3495 = vpop.f32.mrb[0].mxu0
        %v3496 = vadd.f32 0.0, %v3495
        %v3497 = vpop.f32.mrb[0].mxu0
        %v3498 = vpop.f32.mrb[0].mxu0
        %v3499 = vadd.f32 0.0, %v3498
        %v3500 = vpop.f32.mrb[0].mxu0
        %3501 = vmatprep.mubr.bf16.mxu0 0
        %3502 = vmatmul.mubr.bf16.gmra.mrb[0].mxu0 %v3394
        %v3503 = vpop.f32.mrb[0].mxu0
        %v3504 = vadd.f32 0.0, %v3503
        %v3505 = vpop.f32.mrb[0].mxu0
        %v3506 = vpop.f32.mrb[0].mxu0
        %v3507 = vadd.f32 0.0, %v3506
        %v3508 = vpop.f32.mrb[0].mxu0
        %3509 = vmatprep.mubr.bf16.mxu0 0
        %3510 = vmatmul.mubr.bf16.gmra.mrb[0].mxu0 %v3397
        %v3511 = vpop.f32.mrb[0].mxu0
        %v3512 = vadd.f32 0.0, %v3511
        %v3513 = vpop.f32.mrb[0].mxu0
        %v3514 = vpop.f32.mrb[0].mxu0
        %v3515 = vadd.f32 0.0, %v3514
        %v3516 = vpop.f32.mrb[0].mxu0
        %3517 = vmatprep.mubr.bf16.mxu0 0
        %3518 = vmatmul.mubr.bf16.gmra.mrb[0].mxu0 %v3400
        %v3519 = vpop.f32.mrb[0].mxu0
        %v3520 = vadd.f32 0.0, %v3519
        %v3521 = vpop.f32.mrb[0].mxu0
        %v3522 = vpop.f32.mrb[0].mxu0
        %v3523 = vadd.f32 0.0, %v3522
        %v3524 = vpop.f32.mrb[0].mxu0
        %3525 = vmatprep.mubr.bf16.mxu0 0
        %3526 = vmatmul.mubr.bf16.gmra.mrb[0].mxu0 %v3403
        %v3527 = vpop.f32.mrb[0].mxu0
        %v3528 = vadd.f32 0.0, %v3527
        %v3529 = vpop.f32.mrb[0].mxu0
        %v3530 = vpop.f32.mrb[0].mxu0
        %v3531 = vadd.f32 0.0, %v3530
        %v3532 = vpop.f32.mrb[0].mxu0
        %3533 = vmatprep.mubr.bf16.mxu0 0
        %3534 = vmatmul.mubr.bf16.gmra.mrb[0].mxu0 %v3406
        %v3535 = vpop.f32.mrb[0].mxu0
        %v3536 = vadd.f32 0.0, %v3535
        %v3537 = vpop.f32.mrb[0].mxu0
        %v3538 = vpop.f32.mrb[0].mxu0
        %v3539 = vadd.f32 0.0, %v3538
        %v3540 = vpop.f32.mrb[0].mxu0
        %3541 = vmatprep.mubr.bf16.mxu0 0
        %3542 = vmatmul.mubr.bf16.gmra.mrb[0].mxu0 %v3409
        %v3543 = vpop.f32.mrb[0].mxu0
        %v3544 = vadd.f32 0.0, %v3543
        %v3545 = vpop.f32.mrb[0].mxu0
        %v3546 = vpop.f32.mrb[0].mxu0
        %v3547 = vadd.f32 0.0, %v3546
        %v3548 = vpop.f32.mrb[0].mxu0
        %3549 = vmatprep.mubr.bf16.mxu0 0
        %3550 = vmatmul.mubr.bf16.gmra.mrb[0].mxu0 %v3412
        %v3551 = vpop.f32.mrb[0].mxu0
        %v3552 = vadd.f32 0.0, %v3551
        %v3553 = vpop.f32.mrb[0].mxu0
        %v3554 = vpop.f32.mrb[0].mxu0
        %v3555 = vadd.f32 0.0, %v3554
        %v3556 = vpop.f32.mrb[0].mxu0
        %3557 = vmatprep.mubr.bf16.mxu0 0
        %3558 = vmatmul.mubr.bf16.gmra.mrb[0].mxu0 %v3415
        %v3559 = vpop.f32.mrb[0].mxu0
        %v3560 = vadd.f32 0.0, %v3559
        %v3561 = vpop.f32.mrb[0].mxu0
        %v3562 = vpop.f32.mrb[0].mxu0
        %v3563 = vadd.f32 0.0, %v3562
        %v3564 = vpop.f32.mrb[0].mxu0
        %3565 = vmatprep.mubr.bf16.mxu0 0
        %3566 = vmatmul.mubr.bf16.gmra.mrb[0].mxu0 %v3418
        %v3567 = vpop.f32.mrb[0].mxu0
        %v3568 = vadd.f32 0.0, %v3567
        %v3569 = vpop.f32.mrb[0].mxu0
        %v3570 = vpop.f32.mrb[0].mxu0
        %v3571 = vadd.f32 0.0, %v3570
        %v3572 = vpop.f32.mrb[0].mxu0
        %3573 = vmatprep.mubr.bf16.mxu0 0
        %3574 = vmatmul.mubr.bf16.gmra.mrb[0].mxu0 %v3421
        %v3575 = vpop.f32.mrb[0].mxu0
        %v3576 = vadd.f32 0.0, %v3575
        %v3577 = vpop.f32.mrb[0].mxu0
        %v3578 = vpop.f32.mrb[0].mxu0
        %v3579 = vadd.f32 0.0, %v3578
        %v3580 = vpop.f32.mrb[0].mxu0
        %3581 = vmatprep.mubr.bf16.mxu0 0
        %3582 = vmatmul.mubr.bf16.gmra.mrb[0].mxu0 %v3424
        %v3583 = vpop.f32.mrb[0].mxu0
        %v3584 = vadd.f32 0.0, %v3583
        %v3585 = vpop.f32.mrb[0].mxu0
        %v3586 = vpop.f32.mrb[0].mxu0
        %v3587 = vadd.f32 0.0, %v3586
        %v3588 = vpop.f32.mrb[0].mxu0
        %3589 = vdwg.mxu0
        %v3590 = vadd.f32 %v3231, %v3464
        %v3591 = vadd.f32 %v3232, %v3467
        %v3592 = vadd.f32 %v3233, %v3472
        %v3593 = vadd.f32 %v3234, %v3475
        %v3594 = vadd.f32 %v3235, %v3480
        %v3595 = vadd.f32 %v3236, %v3483
        %v3596 = vadd.f32 %v3237, %v3488
        %v3597 = vadd.f32 %v3238, %v3491
        %v3598 = vadd.f32 %v3239, %v3496
        %v3599 = vadd.f32 %v3240, %v3499
        %v3600 = vadd.f32 %v3241, %v3504
        %v3601 = vadd.f32 %v3242, %v3507
        %v3602 = vadd.f32 %v3243, %v3512
        %v3603 = vadd.f32 %v3244, %v3515
        %v3604 = vadd.f32 %v3245, %v3520
        %v3605 = vadd.f32 %v3246, %v3523
        %v3606 = vadd.f32 %v3247, %v3528
        %v3607 = vadd.f32 %v3248, %v3531
        %v3608 = vadd.f32 %v3249, %v3536
        %v3609 = vadd.f32 %v3250, %v3539
        %v3610 = vadd.f32 %v3251, %v3544
        %v3611 = vadd.f32 %v3252, %v3547
        %v3612 = vadd.f32 %v3253, %v3552
        %v3613 = vadd.f32 %v3254, %v3555
        %v3614 = vadd.f32 %v3255, %v3560
        %v3615 = vadd.f32 %v3256, %v3563
        %v3616 = vadd.f32 %v3257, %v3568
        %v3617 = vadd.f32 %v3258, %v3571
        %v3618 = vadd.f32 %v3259, %v3576
        %v3619 = vadd.f32 %v3260, %v3579
        %v3620 = vadd.f32 %v3261, %v3584
        %v3621 = vadd.f32 %v3262, %v3587
        %v3622 = vld [vmem:[%s3263] sm:$0xf]
        %v3623 = vld [vmem:[%s3263 + $0x4] sm:$0xf]
        %v3624 = vld [vmem:[%s3263 + $0x8] sm:$0x1]
        %v3625 = vld [vmem:[%s3263 + $0xc] sm:$0xf]
        %v3626 = vld [vmem:[%s3263 + $0x10] sm:$0xf]
        %v3627 = vld [vmem:[%s3263 + $0x14] sm:$0x1]
        %v3628 = vld [vmem:[%s3263 + $0x18] sm:$0xf]
        %v3629 = vld [vmem:[%s3263 + $0x1c] sm:$0xf]
        %v3630 = vld [vmem:[%s3263 + $0x20] sm:$0x1]
        %v3631 = vld [vmem:[%s3263 + $0x24] sm:$0xf]
        %v3632 = vld [vmem:[%s3263 + $0x28] sm:$0xf]
        %v3633 = vld [vmem:[%s3263 + $0x2c] sm:$0x1]
        %v3634 = vld [vmem:[%s3263 + $0x30] sm:$0xf]
        %v3635 = vld [vmem:[%s3263 + $0x34] sm:$0xf]
        %v3636 = vld [vmem:[%s3263 + $0x38] sm:$0x1]
        %v3637 = vld [vmem:[%s3263 + $0x3c] sm:$0xf]
        %v3638 = vld [vmem:[%s3263 + $0x40] sm:$0xf]
        %v3639 = vld [vmem:[%s3263 + $0x44] sm:$0x1]
        %v3640 = vld [vmem:[%s3263 + $0x48] sm:$0xf]
        %v3641 = vld [vmem:[%s3263 + $0x4c] sm:$0xf]
        %v3642 = vld [vmem:[%s3263 + $0x50] sm:$0x1]
        %v3643 = vld [vmem:[%s3263 + $0x54] sm:$0xf]
        %v3644 = vld [vmem:[%s3263 + $0x58] sm:$0xf]
        %v3645 = vld [vmem:[%s3263 + $0x5c] sm:$0x1]
        %v3646 = vld [vmem:[%s3263 + $0x60] sm:$0xf]
        %v3647 = vld [vmem:[%s3263 + $0x64] sm:$0xf]
        %v3648 = vld [vmem:[%s3263 + $0x68] sm:$0x1]
        %v3649 = vld [vmem:[%s3263 + $0x6c] sm:$0xf]
        %v3650 = vld [vmem:[%s3263 + $0x70] sm:$0xf]
        %v3651 = vld [vmem:[%s3263 + $0x74] sm:$0x1]
        %v3652 = vld [vmem:[%s3263 + $0x78] sm:$0xf]
        %v3653 = vld [vmem:[%s3263 + $0x7c] sm:$0xf]
        %v3654 = vld [vmem:[%s3263 + $0x80] sm:$0x1]
        %v3655 = vld [vmem:[%s3263 + $0x84] sm:$0xf]
        %v3656 = vld [vmem:[%s3263 + $0x88] sm:$0xf]
        %v3657 = vld [vmem:[%s3263 + $0x8c] sm:$0x1]
        %v3658 = vld [vmem:[%s3263 + $0x90] sm:$0xf]
        %v3659 = vld [vmem:[%s3263 + $0x94] sm:$0xf]
        %v3660 = vld [vmem:[%s3263 + $0x98] sm:$0x1]
        %v3661 = vld [vmem:[%s3263 + $0x9c] sm:$0xf]
        %v3662 = vld [vmem:[%s3263 + $0xa0] sm:$0xf]
        %v3663 = vld [vmem:[%s3263 + $0xa4] sm:$0x1]
        %v3664 = vld [vmem:[%s3263 + $0xa8] sm:$0xf]
        %v3665 = vld [vmem:[%s3263 + $0xac] sm:$0xf]
        %v3666 = vld [vmem:[%s3263 + $0xb0] sm:$0x1]
        %v3667 = vld [vmem:[%s3263 + $0xb4] sm:$0xf]
        %v3668 = vld [vmem:[%s3263 + $0xb8] sm:$0xf]
        %v3669 = vld [vmem:[%s3263 + $0xbc] sm:$0x1]
        %v3671 = vshrl.u32 %v3622, 16
        %v3673 = vrot.slane %v3671, 4
        %v3674 = vshll.u32 %v3622, 16
        %v3676 = vrot.slane %v3674, 5
        %v3677 = vor.u32 %v3673, %v3676
        %v3678 = vrot.slane %v3677, 4
        %v3680 = vshll.u32 %v3623, 16
        %v3682 = vrot.slane %v3680, 5
        %v3683 = vsel %vm310, %v3678, %v3682
        %v3684 = vshrl.u32 %v3623, 16
        %v3686 = vrot.slane %v3684, 4
        %v3687 = vor.u32 %v3686, %v3682
        %v3688 = vrot.slane %v3687, 4
        %v3690 = vshll.u32 %v3624, 16
        %v3692 = vrot.slane %v3690, 5
        %v3693 = vsel %vm310, %v3688, %v3692
        %v3695 = vshrl.u32 %v3625, 16
        %v3697 = vrot.slane %v3695, 4
        %v3698 = vshll.u32 %v3625, 16
        %v3700 = vrot.slane %v3698, 5
        %v3701 = vor.u32 %v3697, %v3700
        %v3702 = vrot.slane %v3701, 4
        %v3704 = vshll.u32 %v3626, 16
        %v3706 = vrot.slane %v3704, 5
        %v3707 = vsel %vm310, %v3702, %v3706
        %v3708 = vshrl.u32 %v3626, 16
        %v3710 = vrot.slane %v3708, 4
        %v3711 = vor.u32 %v3710, %v3706
        %v3712 = vrot.slane %v3711, 4
        %v3714 = vshll.u32 %v3627, 16
        %v3716 = vrot.slane %v3714, 5
        %v3717 = vsel %vm310, %v3712, %v3716
        %v3719 = vshrl.u32 %v3628, 16
        %v3721 = vrot.slane %v3719, 4
        %v3722 = vshll.u32 %v3628, 16
        %v3724 = vrot.slane %v3722, 5
        %v3725 = vor.u32 %v3721, %v3724
        %v3726 = vrot.slane %v3725, 4
        %v3728 = vshll.u32 %v3629, 16
        %v3730 = vrot.slane %v3728, 5
        %v3731 = vsel %vm310, %v3726, %v3730
        %v3732 = vshrl.u32 %v3629, 16
        %v3734 = vrot.slane %v3732, 4
        %v3735 = vor.u32 %v3734, %v3730
        %v3736 = vrot.slane %v3735, 4
        %v3738 = vshll.u32 %v3630, 16
        %v3740 = vrot.slane %v3738, 5
        %v3741 = vsel %vm310, %v3736, %v3740
        %v3743 = vshrl.u32 %v3631, 16
        %v3745 = vrot.slane %v3743, 4
        %v3746 = vshll.u32 %v3631, 16
        %v3748 = vrot.slane %v3746, 5
        %v3749 = vor.u32 %v3745, %v3748
        %v3750 = vrot.slane %v3749, 4
        %v3752 = vshll.u32 %v3632, 16
        %v3754 = vrot.slane %v3752, 5
        %v3755 = vsel %vm310, %v3750, %v3754
        %v3756 = vshrl.u32 %v3632, 16
        %v3758 = vrot.slane %v3756, 4
        %v3759 = vor.u32 %v3758, %v3754
        %v3760 = vrot.slane %v3759, 4
        %v3762 = vshll.u32 %v3633, 16
        %v3764 = vrot.slane %v3762, 5
        %v3765 = vsel %vm310, %v3760, %v3764
        %v3767 = vshrl.u32 %v3634, 16
        %v3769 = vrot.slane %v3767, 4
        %v3770 = vshll.u32 %v3634, 16
        %v3772 = vrot.slane %v3770, 5
        %v3773 = vor.u32 %v3769, %v3772
        %v3774 = vrot.slane %v3773, 4
        %v3776 = vshll.u32 %v3635, 16
        %v3778 = vrot.slane %v3776, 5
        %v3779 = vsel %vm310, %v3774, %v3778
        %v3780 = vshrl.u32 %v3635, 16
        %v3782 = vrot.slane %v3780, 4
        %v3783 = vor.u32 %v3782, %v3778
        %v3784 = vrot.slane %v3783, 4
        %v3786 = vshll.u32 %v3636, 16
        %v3788 = vrot.slane %v3786, 5
        %v3789 = vsel %vm310, %v3784, %v3788
        %v3791 = vshrl.u32 %v3637, 16
        %v3793 = vrot.slane %v3791, 4
        %v3794 = vshll.u32 %v3637, 16
        %v3796 = vrot.slane %v3794, 5
        %v3797 = vor.u32 %v3793, %v3796
        %v3798 = vrot.slane %v3797, 4
        %v3800 = vshll.u32 %v3638, 16
        %v3802 = vrot.slane %v3800, 5
        %v3803 = vsel %vm310, %v3798, %v3802
        %v3804 = vshrl.u32 %v3638, 16
        %v3806 = vrot.slane %v3804, 4
        %v3807 = vor.u32 %v3806, %v3802
        %v3808 = vrot.slane %v3807, 4
        %v3810 = vshll.u32 %v3639, 16
        %v3812 = vrot.slane %v3810, 5
        %v3813 = vsel %vm310, %v3808, %v3812
        %v3815 = vshrl.u32 %v3640, 16
        %v3817 = vrot.slane %v3815, 4
        %v3818 = vshll.u32 %v3640, 16
        %v3820 = vrot.slane %v3818, 5
        %v3821 = vor.u32 %v3817, %v3820
        %v3822 = vrot.slane %v3821, 4
        %v3824 = vshll.u32 %v3641, 16
        %v3826 = vrot.slane %v3824, 5
        %v3827 = vsel %vm310, %v3822, %v3826
        %v3828 = vshrl.u32 %v3641, 16
        %v3830 = vrot.slane %v3828, 4
        %v3831 = vor.u32 %v3830, %v3826
        %v3832 = vrot.slane %v3831, 4
        %v3834 = vshll.u32 %v3642, 16
        %v3836 = vrot.slane %v3834, 5
        %v3837 = vsel %vm310, %v3832, %v3836
        %v3839 = vshrl.u32 %v3643, 16
        %v3841 = vrot.slane %v3839, 4
        %v3842 = vshll.u32 %v3643, 16
        %v3844 = vrot.slane %v3842, 5
        %v3845 = vor.u32 %v3841, %v3844
        %v3846 = vrot.slane %v3845, 4
        %v3848 = vshll.u32 %v3644, 16
        %v3850 = vrot.slane %v3848, 5
        %v3851 = vsel %vm310, %v3846, %v3850
        %v3852 = vshrl.u32 %v3644, 16
        %v3854 = vrot.slane %v3852, 4
        %v3855 = vor.u32 %v3854, %v3850
        %v3856 = vrot.slane %v3855, 4
        %v3858 = vshll.u32 %v3645, 16
        %v3860 = vrot.slane %v3858, 5
        %v3861 = vsel %vm310, %v3856, %v3860
        %v3863 = vshrl.u32 %v3646, 16
        %v3865 = vrot.slane %v3863, 4
        %v3866 = vshll.u32 %v3646, 16
        %v3868 = vrot.slane %v3866, 5
        %v3869 = vor.u32 %v3865, %v3868
        %v3870 = vrot.slane %v3869, 4
        %v3872 = vshll.u32 %v3647, 16
        %v3874 = vrot.slane %v3872, 5
        %v3875 = vsel %vm310, %v3870, %v3874
        %v3876 = vshrl.u32 %v3647, 16
        %v3878 = vrot.slane %v3876, 4
        %v3879 = vor.u32 %v3878, %v3874
        %v3880 = vrot.slane %v3879, 4
        %v3882 = vshll.u32 %v3648, 16
        %v3884 = vrot.slane %v3882, 5
        %v3885 = vsel %vm310, %v3880, %v3884
        %v3887 = vshrl.u32 %v3649, 16
        %v3889 = vrot.slane %v3887, 4
        %v3890 = vshll.u32 %v3649, 16
        %v3892 = vrot.slane %v3890, 5
        %v3893 = vor.u32 %v3889, %v3892
        %v3894 = vrot.slane %v3893, 4
        %v3896 = vshll.u32 %v3650, 16
        %v3898 = vrot.slane %v3896, 5
        %v3899 = vsel %vm310, %v3894, %v3898
        %v3900 = vshrl.u32 %v3650, 16
        %v3902 = vrot.slane %v3900, 4
        %v3903 = vor.u32 %v3902, %v3898
        %v3904 = vrot.slane %v3903, 4
        %v3906 = vshll.u32 %v3651, 16
        %v3908 = vrot.slane %v3906, 5
        %v3909 = vsel %vm310, %v3904, %v3908
        %v3911 = vshrl.u32 %v3652, 16
        %v3913 = vrot.slane %v3911, 4
        %v3914 = vshll.u32 %v3652, 16
        %v3916 = vrot.slane %v3914, 5
        %v3917 = vor.u32 %v3913, %v3916
        %v3918 = vrot.slane %v3917, 4
        %v3920 = vshll.u32 %v3653, 16
        %v3922 = vrot.slane %v3920, 5
        %v3923 = vsel %vm310, %v3918, %v3922
        %v3924 = vshrl.u32 %v3653, 16
        %v3926 = vrot.slane %v3924, 4
        %v3927 = vor.u32 %v3926, %v3922
        %v3928 = vrot.slane %v3927, 4
        %v3930 = vshll.u32 %v3654, 16
        %v3932 = vrot.slane %v3930, 5
        %v3933 = vsel %vm310, %v3928, %v3932
        %v3935 = vshrl.u32 %v3655, 16
        %v3937 = vrot.slane %v3935, 4
        %v3938 = vshll.u32 %v3655, 16
        %v3940 = vrot.slane %v3938, 5
        %v3941 = vor.u32 %v3937, %v3940
        %v3942 = vrot.slane %v3941, 4
        %v3944 = vshll.u32 %v3656, 16
        %v3946 = vrot.slane %v3944, 5
        %v3947 = vsel %vm310, %v3942, %v3946
        %v3948 = vshrl.u32 %v3656, 16
        %v3950 = vrot.slane %v3948, 4
        %v3951 = vor.u32 %v3950, %v3946
        %v3952 = vrot.slane %v3951, 4
        %v3954 = vshll.u32 %v3657, 16
        %v3956 = vrot.slane %v3954, 5
        %v3957 = vsel %vm310, %v3952, %v3956
        %v3959 = vshrl.u32 %v3658, 16
        %v3961 = vrot.slane %v3959, 4
        %v3962 = vshll.u32 %v3658, 16
        %v3964 = vrot.slane %v3962, 5
        %v3965 = vor.u32 %v3961, %v3964
        %v3966 = vrot.slane %v3965, 4
        %v3968 = vshll.u32 %v3659, 16
        %v3970 = vrot.slane %v3968, 5
        %v3971 = vsel %vm310, %v3966, %v3970
        %v3972 = vshrl.u32 %v3659, 16
        %v3974 = vrot.slane %v3972, 4
        %v3975 = vor.u32 %v3974, %v3970
        %v3976 = vrot.slane %v3975, 4
        %v3978 = vshll.u32 %v3660, 16
        %v3980 = vrot.slane %v3978, 5
        %v3981 = vsel %vm310, %v3976, %v3980
        %v3983 = vshrl.u32 %v3661, 16
        %v3985 = vrot.slane %v3983, 4
        %v3986 = vshll.u32 %v3661, 16
        %v3988 = vrot.slane %v3986, 5
        %v3989 = vor.u32 %v3985, %v3988
        %v3990 = vrot.slane %v3989, 4
        %v3992 = vshll.u32 %v3662, 16
        %v3994 = vrot.slane %v3992, 5
        %v3995 = vsel %vm310, %v3990, %v3994
        %v3996 = vshrl.u32 %v3662, 16
        %v3998 = vrot.slane %v3996, 4
        %v3999 = vor.u32 %v3998, %v3994
        %v4000 = vrot.slane %v3999, 4
        %v4002 = vshll.u32 %v3663, 16
        %v4004 = vrot.slane %v4002, 5
        %v4005 = vsel %vm310, %v4000, %v4004
        %v4007 = vshrl.u32 %v3664, 16
        %v4009 = vrot.slane %v4007, 4
        %v4010 = vshll.u32 %v3664, 16
        %v4012 = vrot.slane %v4010, 5
        %v4013 = vor.u32 %v4009, %v4012
        %v4014 = vrot.slane %v4013, 4
        %v4016 = vshll.u32 %v3665, 16
        %v4018 = vrot.slane %v4016, 5
        %v4019 = vsel %vm310, %v4014, %v4018
        %v4020 = vshrl.u32 %v3665, 16
        %v4022 = vrot.slane %v4020, 4
        %v4023 = vor.u32 %v4022, %v4018
        %v4024 = vrot.slane %v4023, 4
        %v4026 = vshll.u32 %v3666, 16
        %v4028 = vrot.slane %v4026, 5
        %v4029 = vsel %vm310, %v4024, %v4028
        %v4031 = vshrl.u32 %v3667, 16
        %v4033 = vrot.slane %v4031, 4
        %v4034 = vshll.u32 %v3667, 16
        %v4036 = vrot.slane %v4034, 5
        %v4037 = vor.u32 %v4033, %v4036
        %v4038 = vrot.slane %v4037, 4
        %v4040 = vshll.u32 %v3668, 16
        %v4042 = vrot.slane %v4040, 5
        %v4043 = vsel %vm310, %v4038, %v4042
        %v4044 = vshrl.u32 %v3668, 16
        %v4046 = vrot.slane %v4044, 4
        %v4047 = vor.u32 %v4046, %v4042
        %v4048 = vrot.slane %v4047, 4
        %v4050 = vshll.u32 %v3669, 16
        %v4052 = vrot.slane %v4050, 5
        %v4053 = vsel %vm310, %v4048, %v4052
        %s4054 = scalar_lea.vmem %s249, 14
        %v4055 = vld [vmem:[%s4054] sm:$0x3]
        %v4056 = vunpack.c.l.b16 %v3683
        %v4057 = vunpack.c.l.b16 %v3693
        %v4058 = vunpack.c.l.b16 %v3707
        %v4059 = vunpack.c.l.b16 %v3717
        %v4060 = vunpack.c.l.b16 %v3731
        %v4061 = vunpack.c.l.b16 %v3741
        %v4062 = vunpack.c.l.b16 %v3755
        %v4063 = vunpack.c.l.b16 %v3765
        %v4064 = vunpack.c.l.b16 %v3779
        %v4065 = vunpack.c.l.b16 %v3789
        %v4066 = vunpack.c.l.b16 %v3803
        %v4067 = vunpack.c.l.b16 %v3813
        %v4068 = vunpack.c.l.b16 %v3827
        %v4069 = vunpack.c.l.b16 %v3837
        %v4070 = vunpack.c.l.b16 %v3851
        %v4071 = vunpack.c.l.b16 %v3861
        %v4072 = vunpack.c.l.b16 %v3875
        %v4073 = vunpack.c.l.b16 %v3885
        %v4074 = vunpack.c.l.b16 %v3899
        %v4075 = vunpack.c.l.b16 %v3909
        %v4076 = vunpack.c.l.b16 %v3923
        %v4077 = vunpack.c.l.b16 %v3933
        %v4078 = vunpack.c.l.b16 %v3947
        %v4079 = vunpack.c.l.b16 %v3957
        %v4080 = vunpack.c.l.b16 %v3971
        %v4081 = vunpack.c.l.b16 %v3981
        %v4082 = vunpack.c.l.b16 %v3995
        %v4083 = vunpack.c.l.b16 %v4005
        %v4084 = vunpack.c.l.b16 %v4019
        %v4085 = vunpack.c.l.b16 %v4029
        %v4086 = vunpack.c.l.b16 %v4043
        %v4087 = vunpack.c.l.b16 %v4053
        %v4088 = vpack.c.b16 %v4057, %v4056
        %v4089 = vpack.c.b16 %v4059, %v4058
        %v4090 = vpack.c.b16 %v4061, %v4060
        %v4091 = vpack.c.b16 %v4063, %v4062
        %v4092 = vpack.c.b16 %v4065, %v4064
        %v4093 = vpack.c.b16 %v4067, %v4066
        %v4094 = vpack.c.b16 %v4069, %v4068
        %v4095 = vpack.c.b16 %v4071, %v4070
        %v4096 = vpack.c.b16 %v4073, %v4072
        %v4097 = vpack.c.b16 %v4075, %v4074
        %v4098 = vpack.c.b16 %v4077, %v4076
        %v4099 = vpack.c.b16 %v4079, %v4078
        %v4100 = vpack.c.b16 %v4081, %v4080
        %v4101 = vpack.c.b16 %v4083, %v4082
        %v4102 = vpack.c.b16 %v4085, %v4084
        %v4103 = vpack.c.b16 %v4087, %v4086
        %v4105 = vsel %vm745, %v4088, 0
        %v4108 = vsel %vm745, %v4089, 0
        %v4111 = vsel %vm745, %v4090, 0
        %v4114 = vsel %vm745, %v4091, 0
        %v4117 = vsel %vm745, %v4092, 0
        %v4120 = vsel %vm745, %v4093, 0
        %v4123 = vsel %vm745, %v4094, 0
        %v4126 = vsel %vm745, %v4095, 0
        %v4129 = vsel %vm745, %v4096, 0
        %v4132 = vsel %vm745, %v4097, 0
        %v4135 = vsel %vm745, %v4098, 0
        %v4138 = vsel %vm745, %v4099, 0
        %v4141 = vsel %vm745, %v4100, 0
        %v4144 = vsel %vm745, %v4101, 0
        %v4147 = vsel %vm745, %v4102, 0
        %v4150 = vsel %vm745, %v4103, 0
        %v4153 = vsel %vm794, %v4055, 0
        %4155 = vmatprep.subr.bf16.mxu0 0
        %4156 = vmatpush1.bf16.msra.mxu0 %v4153
        %4157 = vmatprep.subr.bf16.mxu0 0
        %4158 = vmatpush1.bf16.msra.mxu0 0
        %4159 = vmatprep.subr.bf16.mxu0 0
        %4160 = vmatpush1.bf16.msra.mxu0 0
        %4161 = vmatprep.subr.bf16.mxu0 0
        %4162 = vmatpush1.bf16.msra.mxu0 0
        %4163 = vmatprep.subr.bf16.mxu0 0
        %4164 = vmatpush1.bf16.msra.mxu0 0
        %4165 = vmatprep.subr.bf16.mxu0 0
        %4166 = vmatpush1.bf16.msra.mxu0 0
        %4167 = vmatprep.subr.bf16.mxu0 0
        %4168 = vmatpush1.bf16.msra.mxu0 0
        %4169 = vmatprep.subr.bf16.mxu0 0
        %4170 = vmatpush1.bf16.msra.mxu0 0
        %4171 = vmatprep.subr.bf16.mxu0 0
        %4172 = vmatpush1.bf16.msra.mxu0 0
        %4173 = vmatprep.subr.bf16.mxu0 0
        %4174 = vmatpush1.bf16.msra.mxu0 0
        %4175 = vmatprep.subr.bf16.mxu0 0
        %4176 = vmatpush1.bf16.msra.mxu0 0
        %4177 = vmatprep.subr.bf16.mxu0 0
        %4178 = vmatpush1.bf16.msra.mxu0 0
        %4179 = vmatprep.subr.bf16.mxu0 0
        %4180 = vmatpush1.bf16.msra.mxu0 0
        %4181 = vmatprep.subr.bf16.mxu0 0
        %4182 = vmatpush1.bf16.msra.mxu0 0
        %4183 = vmatprep.subr.bf16.mxu0 0
        %4184 = vmatpush1.bf16.msra.mxu0 0
        %4185 = vmatprep.subr.bf16.mxu0 0
        %4186 = vmatpush1.bf16.msra.mxu0 0
        %4187 = vmatprep.mubr.bf16.mxu0 0
        %4188 = vmatmul.mubr.bf16.gmra.mrb[0].mxu0 %v4105
        %v4189 = vpop.f32.mrb[0].mxu0
        %v4190 = vadd.f32 0.0, %v4189
        %v4191 = vpop.f32.mrb[0].mxu0
        %v4192 = vpop.f32.mrb[0].mxu0
        %v4193 = vadd.f32 0.0, %v4192
        %v4194 = vpop.f32.mrb[0].mxu0
        %4195 = vmatprep.mubr.bf16.mxu0 0
        %4196 = vmatmul.mubr.bf16.gmra.mrb[0].mxu0 %v4108
        %v4197 = vpop.f32.mrb[0].mxu0
        %v4198 = vadd.f32 0.0, %v4197
        %v4199 = vpop.f32.mrb[0].mxu0
        %v4200 = vpop.f32.mrb[0].mxu0
        %v4201 = vadd.f32 0.0, %v4200
        %v4202 = vpop.f32.mrb[0].mxu0
        %4203 = vmatprep.mubr.bf16.mxu0 0
        %4204 = vmatmul.mubr.bf16.gmra.mrb[0].mxu0 %v4111
        %v4205 = vpop.f32.mrb[0].mxu0
        %v4206 = vadd.f32 0.0, %v4205
        %v4207 = vpop.f32.mrb[0].mxu0
        %v4208 = vpop.f32.mrb[0].mxu0
        %v4209 = vadd.f32 0.0, %v4208
        %v4210 = vpop.f32.mrb[0].mxu0
        %4211 = vmatprep.mubr.bf16.mxu0 0
        %4212 = vmatmul.mubr.bf16.gmra.mrb[0].mxu0 %v4114
        %v4213 = vpop.f32.mrb[0].mxu0
        %v4214 = vadd.f32 0.0, %v4213
        %v4215 = vpop.f32.mrb[0].mxu0
        %v4216 = vpop.f32.mrb[0].mxu0
        %v4217 = vadd.f32 0.0, %v4216
        %v4218 = vpop.f32.mrb[0].mxu0
        %4219 = vmatprep.mubr.bf16.mxu0 0
        %4220 = vmatmul.mubr.bf16.gmra.mrb[0].mxu0 %v4117
        %v4221 = vpop.f32.mrb[0].mxu0
        %v4222 = vadd.f32 0.0, %v4221
        %v4223 = vpop.f32.mrb[0].mxu0
        %v4224 = vpop.f32.mrb[0].mxu0
        %v4225 = vadd.f32 0.0, %v4224
        %v4226 = vpop.f32.mrb[0].mxu0
        %4227 = vmatprep.mubr.bf16.mxu0 0
        %4228 = vmatmul.mubr.bf16.gmra.mrb[0].mxu0 %v4120
        %v4229 = vpop.f32.mrb[0].mxu0
        %v4230 = vadd.f32 0.0, %v4229
        %v4231 = vpop.f32.mrb[0].mxu0
        %v4232 = vpop.f32.mrb[0].mxu0
        %v4233 = vadd.f32 0.0, %v4232
        %v4234 = vpop.f32.mrb[0].mxu0
        %4235 = vmatprep.mubr.bf16.mxu0 0
        %4236 = vmatmul.mubr.bf16.gmra.mrb[0].mxu0 %v4123
        %v4237 = vpop.f32.mrb[0].mxu0
        %v4238 = vadd.f32 0.0, %v4237
        %v4239 = vpop.f32.mrb[0].mxu0
        %v4240 = vpop.f32.mrb[0].mxu0
        %v4241 = vadd.f32 0.0, %v4240
        %v4242 = vpop.f32.mrb[0].mxu0
        %4243 = vmatprep.mubr.bf16.mxu0 0
        %4244 = vmatmul.mubr.bf16.gmra.mrb[0].mxu0 %v4126
        %v4245 = vpop.f32.mrb[0].mxu0
        %v4246 = vadd.f32 0.0, %v4245
        %v4247 = vpop.f32.mrb[0].mxu0
        %v4248 = vpop.f32.mrb[0].mxu0
        %v4249 = vadd.f32 0.0, %v4248
        %v4250 = vpop.f32.mrb[0].mxu0
        %4251 = vmatprep.mubr.bf16.mxu0 0
        %4252 = vmatmul.mubr.bf16.gmra.mrb[0].mxu0 %v4129
        %v4253 = vpop.f32.mrb[0].mxu0
        %v4254 = vadd.f32 0.0, %v4253
        %v4255 = vpop.f32.mrb[0].mxu0
        %v4256 = vpop.f32.mrb[0].mxu0
        %v4257 = vadd.f32 0.0, %v4256
        %v4258 = vpop.f32.mrb[0].mxu0
        %4259 = vmatprep.mubr.bf16.mxu0 0
        %4260 = vmatmul.mubr.bf16.gmra.mrb[0].mxu0 %v4132
        %v4261 = vpop.f32.mrb[0].mxu0
        %v4262 = vadd.f32 0.0, %v4261
        %v4263 = vpop.f32.mrb[0].mxu0
        %v4264 = vpop.f32.mrb[0].mxu0
        %v4265 = vadd.f32 0.0, %v4264
        %v4266 = vpop.f32.mrb[0].mxu0
        %4267 = vmatprep.mubr.bf16.mxu0 0
        %4268 = vmatmul.mubr.bf16.gmra.mrb[0].mxu0 %v4135
        %v4269 = vpop.f32.mrb[0].mxu0
        %v4270 = vadd.f32 0.0, %v4269
        %v4271 = vpop.f32.mrb[0].mxu0
        %v4272 = vpop.f32.mrb[0].mxu0
        %v4273 = vadd.f32 0.0, %v4272
        %v4274 = vpop.f32.mrb[0].mxu0
        %4275 = vmatprep.mubr.bf16.mxu0 0
        %4276 = vmatmul.mubr.bf16.gmra.mrb[0].mxu0 %v4138
        %v4277 = vpop.f32.mrb[0].mxu0
        %v4278 = vadd.f32 0.0, %v4277
        %v4279 = vpop.f32.mrb[0].mxu0
        %v4280 = vpop.f32.mrb[0].mxu0
        %v4281 = vadd.f32 0.0, %v4280
        %v4282 = vpop.f32.mrb[0].mxu0
        %4283 = vmatprep.mubr.bf16.mxu0 0
        %4284 = vmatmul.mubr.bf16.gmra.mrb[0].mxu0 %v4141
        %v4285 = vpop.f32.mrb[0].mxu0
        %v4286 = vadd.f32 0.0, %v4285
        %v4287 = vpop.f32.mrb[0].mxu0
        %v4288 = vpop.f32.mrb[0].mxu0
        %v4289 = vadd.f32 0.0, %v4288
        %v4290 = vpop.f32.mrb[0].mxu0
        %4291 = vmatprep.mubr.bf16.mxu0 0
        %4292 = vmatmul.mubr.bf16.gmra.mrb[0].mxu0 %v4144
        %v4293 = vpop.f32.mrb[0].mxu0
        %v4294 = vadd.f32 0.0, %v4293
        %v4295 = vpop.f32.mrb[0].mxu0
        %v4296 = vpop.f32.mrb[0].mxu0
        %v4297 = vadd.f32 0.0, %v4296
        %v4298 = vpop.f32.mrb[0].mxu0
        %4299 = vmatprep.mubr.bf16.mxu0 0
        %4300 = vmatmul.mubr.bf16.gmra.mrb[0].mxu0 %v4147
        %v4301 = vpop.f32.mrb[0].mxu0
        %v4302 = vadd.f32 0.0, %v4301
        %v4303 = vpop.f32.mrb[0].mxu0
        %v4304 = vpop.f32.mrb[0].mxu0
        %v4305 = vadd.f32 0.0, %v4304
        %v4306 = vpop.f32.mrb[0].mxu0
        %4307 = vmatprep.mubr.bf16.mxu0 0
        %4308 = vmatmul.mubr.bf16.gmra.mrb[0].mxu0 %v4150
        %v4309 = vpop.f32.mrb[0].mxu0
        %v4310 = vadd.f32 0.0, %v4309
        %v4311 = vpop.f32.mrb[0].mxu0
        %v4312 = vpop.f32.mrb[0].mxu0
        %v4313 = vadd.f32 0.0, %v4312
        %v4314 = vpop.f32.mrb[0].mxu0
        %4315 = vdwg.mxu0
        %v4316 = vadd.f32 %v3590, %v4190
        %v4317 = vadd.f32 %v3591, %v4193
        %v4318 = vadd.f32 %v3592, %v4198
        %v4319 = vadd.f32 %v3593, %v4201
        %v4320 = vadd.f32 %v3594, %v4206
        %v4321 = vadd.f32 %v3595, %v4209
        %v4322 = vadd.f32 %v3596, %v4214
        %v4323 = vadd.f32 %v3597, %v4217
        %v4324 = vadd.f32 %v3598, %v4222
        %v4325 = vadd.f32 %v3599, %v4225
        %v4326 = vadd.f32 %v3600, %v4230
        %v4327 = vadd.f32 %v3601, %v4233
        %v4328 = vadd.f32 %v3602, %v4238
        %v4329 = vadd.f32 %v3603, %v4241
        %v4330 = vadd.f32 %v3604, %v4246
        %v4331 = vadd.f32 %v3605, %v4249
        %v4332 = vadd.f32 %v3606, %v4254
        %v4333 = vadd.f32 %v3607, %v4257
        %v4334 = vadd.f32 %v3608, %v4262
        %v4335 = vadd.f32 %v3609, %v4265
        %v4336 = vadd.f32 %v3610, %v4270
        %v4337 = vadd.f32 %v3611, %v4273
        %v4338 = vadd.f32 %v3612, %v4278
        %v4339 = vadd.f32 %v3613, %v4281
        %v4340 = vadd.f32 %v3614, %v4286
        %v4341 = vadd.f32 %v3615, %v4289
        %v4342 = vadd.f32 %v3616, %v4294
        %v4343 = vadd.f32 %v3617, %v4297
        %v4344 = vadd.f32 %v3618, %v4302
        %v4345 = vadd.f32 %v3619, %v4305
        %v4346 = vadd.f32 %v3620, %v4310
        %v4347 = vadd.f32 %v3621, %v4313
        %v4348 = vld [vmem:[%s3263] sm:$0xe]
        %v4349 = vld [vmem:[%s3263 + $0xc] sm:$0xe]
        %v4350 = vld [vmem:[%s3263 + $0x18] sm:$0xe]
        %v4351 = vld [vmem:[%s3263 + $0x24] sm:$0xe]
        %v4352 = vld [vmem:[%s3263 + $0x30] sm:$0xe]
        %v4353 = vld [vmem:[%s3263 + $0x3c] sm:$0xe]
        %v4354 = vld [vmem:[%s3263 + $0x48] sm:$0xe]
        %v4355 = vld [vmem:[%s3263 + $0x54] sm:$0xe]
        %v4356 = vld [vmem:[%s3263 + $0x60] sm:$0xe]
        %v4357 = vld [vmem:[%s3263 + $0x6c] sm:$0xe]
        %v4358 = vld [vmem:[%s3263 + $0x78] sm:$0xe]
        %v4359 = vld [vmem:[%s3263 + $0x84] sm:$0xe]
        %v4360 = vld [vmem:[%s3263 + $0x90] sm:$0xe]
        %v4361 = vld [vmem:[%s3263 + $0x9c] sm:$0xe]
        %v4362 = vld [vmem:[%s3263 + $0xa8] sm:$0xe]
        %v4363 = vld [vmem:[%s3263 + $0xb4] sm:$0xe]
        %v4412 = vrot.slane %v4348, 5
        %v4413 = vrot.slane %v4412, 4
        %v4414 = vrot.slane %v3623, 5
        %v4415 = vsel %vm1301, %v4413, %v4414
        %v4416 = vrot.slane %v4414, 4
        %v4417 = vrot.slane %v3624, 5
        %v4418 = vsel %vm1301, %v4416, %v4417
        %v4419 = vrot.slane %v4349, 5
        %v4420 = vrot.slane %v4419, 4
        %v4421 = vrot.slane %v3626, 5
        %v4422 = vsel %vm1301, %v4420, %v4421
        %v4423 = vrot.slane %v4421, 4
        %v4424 = vrot.slane %v3627, 5
        %v4425 = vsel %vm1301, %v4423, %v4424
        %v4426 = vrot.slane %v4350, 5
        %v4427 = vrot.slane %v4426, 4
        %v4428 = vrot.slane %v3629, 5
        %v4429 = vsel %vm1301, %v4427, %v4428
        %v4430 = vrot.slane %v4428, 4
        %v4431 = vrot.slane %v3630, 5
        %v4432 = vsel %vm1301, %v4430, %v4431
        %v4433 = vrot.slane %v4351, 5
        %v4434 = vrot.slane %v4433, 4
        %v4435 = vrot.slane %v3632, 5
        %v4436 = vsel %vm1301, %v4434, %v4435
        %v4437 = vrot.slane %v4435, 4
        %v4438 = vrot.slane %v3633, 5
        %v4439 = vsel %vm1301, %v4437, %v4438
        %v4440 = vrot.slane %v4352, 5
        %v4441 = vrot.slane %v4440, 4
        %v4442 = vrot.slane %v3635, 5
        %v4443 = vsel %vm1301, %v4441, %v4442
        %v4444 = vrot.slane %v4442, 4
        %v4445 = vrot.slane %v3636, 5
        %v4446 = vsel %vm1301, %v4444, %v4445
        %v4447 = vrot.slane %v4353, 5
        %v4448 = vrot.slane %v4447, 4
        %v4449 = vrot.slane %v3638, 5
        %v4450 = vsel %vm1301, %v4448, %v4449
        %v4451 = vrot.slane %v4449, 4
        %v4452 = vrot.slane %v3639, 5
        %v4453 = vsel %vm1301, %v4451, %v4452
        %v4454 = vrot.slane %v4354, 5
        %v4455 = vrot.slane %v4454, 4
        %v4456 = vrot.slane %v3641, 5
        %v4457 = vsel %vm1301, %v4455, %v4456
        %v4458 = vrot.slane %v4456, 4
        %v4459 = vrot.slane %v3642, 5
        %v4460 = vsel %vm1301, %v4458, %v4459
        %v4461 = vrot.slane %v4355, 5
        %v4462 = vrot.slane %v4461, 4
        %v4463 = vrot.slane %v3644, 5
        %v4464 = vsel %vm1301, %v4462, %v4463
        %v4465 = vrot.slane %v4463, 4
        %v4466 = vrot.slane %v3645, 5
        %v4467 = vsel %vm1301, %v4465, %v4466
        %v4468 = vrot.slane %v4356, 5
        %v4469 = vrot.slane %v4468, 4
        %v4470 = vrot.slane %v3647, 5
        %v4471 = vsel %vm1301, %v4469, %v4470
        %v4472 = vrot.slane %v4470, 4
        %v4473 = vrot.slane %v3648, 5
        %v4474 = vsel %vm1301, %v4472, %v4473
        %v4475 = vrot.slane %v4357, 5
        %v4476 = vrot.slane %v4475, 4
        %v4477 = vrot.slane %v3650, 5
        %v4478 = vsel %vm1301, %v4476, %v4477
        %v4479 = vrot.slane %v4477, 4
        %v4480 = vrot.slane %v3651, 5
        %v4481 = vsel %vm1301, %v4479, %v4480
        %v4482 = vrot.slane %v4358, 5
        %v4483 = vrot.slane %v4482, 4
        %v4484 = vrot.slane %v3653, 5
        %v4485 = vsel %vm1301, %v4483, %v4484
        %v4486 = vrot.slane %v4484, 4
        %v4487 = vrot.slane %v3654, 5
        %v4488 = vsel %vm1301, %v4486, %v4487
        %v4489 = vrot.slane %v4359, 5
        %v4490 = vrot.slane %v4489, 4
        %v4491 = vrot.slane %v3656, 5
        %v4492 = vsel %vm1301, %v4490, %v4491
        %v4493 = vrot.slane %v4491, 4
        %v4494 = vrot.slane %v3657, 5
        %v4495 = vsel %vm1301, %v4493, %v4494
        %v4496 = vrot.slane %v4360, 5
        %v4497 = vrot.slane %v4496, 4
        %v4498 = vrot.slane %v3659, 5
        %v4499 = vsel %vm1301, %v4497, %v4498
        %v4500 = vrot.slane %v4498, 4
        %v4501 = vrot.slane %v3660, 5
        %v4502 = vsel %vm1301, %v4500, %v4501
        %v4503 = vrot.slane %v4361, 5
        %v4504 = vrot.slane %v4503, 4
        %v4505 = vrot.slane %v3662, 5
        %v4506 = vsel %vm1301, %v4504, %v4505
        %v4507 = vrot.slane %v4505, 4
        %v4508 = vrot.slane %v3663, 5
        %v4509 = vsel %vm1301, %v4507, %v4508
        %v4510 = vrot.slane %v4362, 5
        %v4511 = vrot.slane %v4510, 4
        %v4512 = vrot.slane %v3665, 5
        %v4513 = vsel %vm1301, %v4511, %v4512
        %v4514 = vrot.slane %v4512, 4
        %v4515 = vrot.slane %v3666, 5
        %v4516 = vsel %vm1301, %v4514, %v4515
        %v4517 = vrot.slane %v4363, 5
        %v4518 = vrot.slane %v4517, 4
        %v4519 = vrot.slane %v3668, 5
        %v4520 = vsel %vm1301, %v4518, %v4519
        %v4521 = vrot.slane %v4519, 4
        %v4522 = vrot.slane %v3669, 5
        %v4523 = vsel %vm1301, %v4521, %v4522
        %s4524 = scalar_lea.vmem %s249, 16
        %v4525 = vld [vmem:[%s4524] sm:$0x3]
        %v4526 = vunpack.c.l.b16 %v4415
        %v4527 = vunpack.c.l.b16 %v4418
        %v4528 = vunpack.c.l.b16 %v4422
        %v4529 = vunpack.c.l.b16 %v4425
        %v4530 = vunpack.c.l.b16 %v4429
        %v4531 = vunpack.c.l.b16 %v4432
        %v4532 = vunpack.c.l.b16 %v4436
        %v4533 = vunpack.c.l.b16 %v4439
        %v4534 = vunpack.c.l.b16 %v4443
        %v4535 = vunpack.c.l.b16 %v4446
        %v4536 = vunpack.c.l.b16 %v4450
        %v4537 = vunpack.c.l.b16 %v4453
        %v4538 = vunpack.c.l.b16 %v4457
        %v4539 = vunpack.c.l.b16 %v4460
        %v4540 = vunpack.c.l.b16 %v4464
        %v4541 = vunpack.c.l.b16 %v4467
        %v4542 = vunpack.c.l.b16 %v4471
        %v4543 = vunpack.c.l.b16 %v4474
        %v4544 = vunpack.c.l.b16 %v4478
        %v4545 = vunpack.c.l.b16 %v4481
        %v4546 = vunpack.c.l.b16 %v4485
        %v4547 = vunpack.c.l.b16 %v4488
        %v4548 = vunpack.c.l.b16 %v4492
        %v4549 = vunpack.c.l.b16 %v4495
        %v4550 = vunpack.c.l.b16 %v4499
        %v4551 = vunpack.c.l.b16 %v4502
        %v4552 = vunpack.c.l.b16 %v4506
        %v4553 = vunpack.c.l.b16 %v4509
        %v4554 = vunpack.c.l.b16 %v4513
        %v4555 = vunpack.c.l.b16 %v4516
        %v4556 = vunpack.c.l.b16 %v4520
        %v4557 = vunpack.c.l.b16 %v4523
        %v4558 = vpack.c.b16 %v4527, %v4526
        %v4559 = vpack.c.b16 %v4529, %v4528
        %v4560 = vpack.c.b16 %v4531, %v4530
        %v4561 = vpack.c.b16 %v4533, %v4532
        %v4562 = vpack.c.b16 %v4535, %v4534
        %v4563 = vpack.c.b16 %v4537, %v4536
        %v4564 = vpack.c.b16 %v4539, %v4538
        %v4565 = vpack.c.b16 %v4541, %v4540
        %v4566 = vpack.c.b16 %v4543, %v4542
        %v4567 = vpack.c.b16 %v4545, %v4544
        %v4568 = vpack.c.b16 %v4547, %v4546
        %v4569 = vpack.c.b16 %v4549, %v4548
        %v4570 = vpack.c.b16 %v4551, %v4550
        %v4571 = vpack.c.b16 %v4553, %v4552
        %v4572 = vpack.c.b16 %v4555, %v4554
        %v4573 = vpack.c.b16 %v4557, %v4556
        %v4575 = vsel %vm745, %v4558, 0
        %v4578 = vsel %vm745, %v4559, 0
        %v4581 = vsel %vm745, %v4560, 0
        %v4584 = vsel %vm745, %v4561, 0
        %v4587 = vsel %vm745, %v4562, 0
        %v4590 = vsel %vm745, %v4563, 0
        %v4593 = vsel %vm745, %v4564, 0
        %v4596 = vsel %vm745, %v4565, 0
        %v4599 = vsel %vm745, %v4566, 0
        %v4602 = vsel %vm745, %v4567, 0
        %v4605 = vsel %vm745, %v4568, 0
        %v4608 = vsel %vm745, %v4569, 0
        %v4611 = vsel %vm745, %v4570, 0
        %v4614 = vsel %vm745, %v4571, 0
        %v4617 = vsel %vm745, %v4572, 0
        %v4620 = vsel %vm745, %v4573, 0
        %v4623 = vsel %vm794, %v4525, 0
        %4625 = vmatprep.subr.bf16.mxu0 0
        %4626 = vmatpush1.bf16.msra.mxu0 %v4623
        %4627 = vmatprep.subr.bf16.mxu0 0
        %4628 = vmatpush1.bf16.msra.mxu0 0
        %4629 = vmatprep.subr.bf16.mxu0 0
        %4630 = vmatpush1.bf16.msra.mxu0 0
        %4631 = vmatprep.subr.bf16.mxu0 0
        %4632 = vmatpush1.bf16.msra.mxu0 0
        %4633 = vmatprep.subr.bf16.mxu0 0
        %4634 = vmatpush1.bf16.msra.mxu0 0
        %4635 = vmatprep.subr.bf16.mxu0 0
        %4636 = vmatpush1.bf16.msra.mxu0 0
        %4637 = vmatprep.subr.bf16.mxu0 0
        %4638 = vmatpush1.bf16.msra.mxu0 0
        %4639 = vmatprep.subr.bf16.mxu0 0
        %4640 = vmatpush1.bf16.msra.mxu0 0
        %4641 = vmatprep.subr.bf16.mxu0 0
        %4642 = vmatpush1.bf16.msra.mxu0 0
        %4643 = vmatprep.subr.bf16.mxu0 0
        %4644 = vmatpush1.bf16.msra.mxu0 0
        %4645 = vmatprep.subr.bf16.mxu0 0
        %4646 = vmatpush1.bf16.msra.mxu0 0
        %4647 = vmatprep.subr.bf16.mxu0 0
        %4648 = vmatpush1.bf16.msra.mxu0 0
        %4649 = vmatprep.subr.bf16.mxu0 0
        %4650 = vmatpush1.bf16.msra.mxu0 0
        %4651 = vmatprep.subr.bf16.mxu0 0
        %4652 = vmatpush1.bf16.msra.mxu0 0
        %4653 = vmatprep.subr.bf16.mxu0 0
        %4654 = vmatpush1.bf16.msra.mxu0 0
        %4655 = vmatprep.subr.bf16.mxu0 0
        %4656 = vmatpush1.bf16.msra.mxu0 0
        %4657 = vmatprep.mubr.bf16.mxu0 0
        %4658 = vmatmul.mubr.bf16.gmra.mrb[0].mxu0 %v4575
        %v4659 = vpop.f32.mrb[0].mxu0
        %v4660 = vadd.f32 0.0, %v4659
        %v4661 = vpop.f32.mrb[0].mxu0
        %v4662 = vpop.f32.mrb[0].mxu0
        %v4663 = vadd.f32 0.0, %v4662
        %v4664 = vpop.f32.mrb[0].mxu0
        %4665 = vmatprep.mubr.bf16.mxu0 0
        %4666 = vmatmul.mubr.bf16.gmra.mrb[0].mxu0 %v4578
        %v4667 = vpop.f32.mrb[0].mxu0
        %v4668 = vadd.f32 0.0, %v4667
        %v4669 = vpop.f32.mrb[0].mxu0
        %v4670 = vpop.f32.mrb[0].mxu0
        %v4671 = vadd.f32 0.0, %v4670
        %v4672 = vpop.f32.mrb[0].mxu0
        %4673 = vmatprep.mubr.bf16.mxu0 0
        %4674 = vmatmul.mubr.bf16.gmra.mrb[0].mxu0 %v4581
        %v4675 = vpop.f32.mrb[0].mxu0
        %v4676 = vadd.f32 0.0, %v4675
        %v4677 = vpop.f32.mrb[0].mxu0
        %v4678 = vpop.f32.mrb[0].mxu0
        %v4679 = vadd.f32 0.0, %v4678
        %v4680 = vpop.f32.mrb[0].mxu0
        %4681 = vmatprep.mubr.bf16.mxu0 0
        %4682 = vmatmul.mubr.bf16.gmra.mrb[0].mxu0 %v4584
        %v4683 = vpop.f32.mrb[0].mxu0
        %v4684 = vadd.f32 0.0, %v4683
        %v4685 = vpop.f32.mrb[0].mxu0
        %v4686 = vpop.f32.mrb[0].mxu0
        %v4687 = vadd.f32 0.0, %v4686
        %v4688 = vpop.f32.mrb[0].mxu0
        %4689 = vmatprep.mubr.bf16.mxu0 0
        %4690 = vmatmul.mubr.bf16.gmra.mrb[0].mxu0 %v4587
        %v4691 = vpop.f32.mrb[0].mxu0
        %v4692 = vadd.f32 0.0, %v4691
        %v4693 = vpop.f32.mrb[0].mxu0
        %v4694 = vpop.f32.mrb[0].mxu0
        %v4695 = vadd.f32 0.0, %v4694
        %v4696 = vpop.f32.mrb[0].mxu0
        %4697 = vmatprep.mubr.bf16.mxu0 0
        %4698 = vmatmul.mubr.bf16.gmra.mrb[0].mxu0 %v4590
        %v4699 = vpop.f32.mrb[0].mxu0
        %v4700 = vadd.f32 0.0, %v4699
        %v4701 = vpop.f32.mrb[0].mxu0
        %v4702 = vpop.f32.mrb[0].mxu0
        %v4703 = vadd.f32 0.0, %v4702
        %v4704 = vpop.f32.mrb[0].mxu0
        %4705 = vmatprep.mubr.bf16.mxu0 0
        %4706 = vmatmul.mubr.bf16.gmra.mrb[0].mxu0 %v4593
        %v4707 = vpop.f32.mrb[0].mxu0
        %v4708 = vadd.f32 0.0, %v4707
        %v4709 = vpop.f32.mrb[0].mxu0
        %v4710 = vpop.f32.mrb[0].mxu0
        %v4711 = vadd.f32 0.0, %v4710
        %v4712 = vpop.f32.mrb[0].mxu0
        %4713 = vmatprep.mubr.bf16.mxu0 0
        %4714 = vmatmul.mubr.bf16.gmra.mrb[0].mxu0 %v4596
        %v4715 = vpop.f32.mrb[0].mxu0
        %v4716 = vadd.f32 0.0, %v4715
        %v4717 = vpop.f32.mrb[0].mxu0
        %v4718 = vpop.f32.mrb[0].mxu0
        %v4719 = vadd.f32 0.0, %v4718
        %v4720 = vpop.f32.mrb[0].mxu0
        %4721 = vmatprep.mubr.bf16.mxu0 0
        %4722 = vmatmul.mubr.bf16.gmra.mrb[0].mxu0 %v4599
        %v4723 = vpop.f32.mrb[0].mxu0
        %v4724 = vadd.f32 0.0, %v4723
        %v4725 = vpop.f32.mrb[0].mxu0
        %v4726 = vpop.f32.mrb[0].mxu0
        %v4727 = vadd.f32 0.0, %v4726
        %v4728 = vpop.f32.mrb[0].mxu0
        %4729 = vmatprep.mubr.bf16.mxu0 0
        %4730 = vmatmul.mubr.bf16.gmra.mrb[0].mxu0 %v4602
        %v4731 = vpop.f32.mrb[0].mxu0
        %v4732 = vadd.f32 0.0, %v4731
        %v4733 = vpop.f32.mrb[0].mxu0
        %v4734 = vpop.f32.mrb[0].mxu0
        %v4735 = vadd.f32 0.0, %v4734
        %v4736 = vpop.f32.mrb[0].mxu0
        %4737 = vmatprep.mubr.bf16.mxu0 0
        %4738 = vmatmul.mubr.bf16.gmra.mrb[0].mxu0 %v4605
        %v4739 = vpop.f32.mrb[0].mxu0
        %v4740 = vadd.f32 0.0, %v4739
        %v4741 = vpop.f32.mrb[0].mxu0
        %v4742 = vpop.f32.mrb[0].mxu0
        %v4743 = vadd.f32 0.0, %v4742
        %v4744 = vpop.f32.mrb[0].mxu0
        %4745 = vmatprep.mubr.bf16.mxu0 0
        %4746 = vmatmul.mubr.bf16.gmra.mrb[0].mxu0 %v4608
        %v4747 = vpop.f32.mrb[0].mxu0
        %v4748 = vadd.f32 0.0, %v4747
        %v4749 = vpop.f32.mrb[0].mxu0
        %v4750 = vpop.f32.mrb[0].mxu0
        %v4751 = vadd.f32 0.0, %v4750
        %v4752 = vpop.f32.mrb[0].mxu0
        %4753 = vmatprep.mubr.bf16.mxu0 0
        %4754 = vmatmul.mubr.bf16.gmra.mrb[0].mxu0 %v4611
        %v4755 = vpop.f32.mrb[0].mxu0
        %v4756 = vadd.f32 0.0, %v4755
        %v4757 = vpop.f32.mrb[0].mxu0
        %v4758 = vpop.f32.mrb[0].mxu0
        %v4759 = vadd.f32 0.0, %v4758
        %v4760 = vpop.f32.mrb[0].mxu0
        %4761 = vmatprep.mubr.bf16.mxu0 0
        %4762 = vmatmul.mubr.bf16.gmra.mrb[0].mxu0 %v4614
        %v4763 = vpop.f32.mrb[0].mxu0
        %v4764 = vadd.f32 0.0, %v4763
        %v4765 = vpop.f32.mrb[0].mxu0
        %v4766 = vpop.f32.mrb[0].mxu0
        %v4767 = vadd.f32 0.0, %v4766
        %v4768 = vpop.f32.mrb[0].mxu0
        %4769 = vmatprep.mubr.bf16.mxu0 0
        %4770 = vmatmul.mubr.bf16.gmra.mrb[0].mxu0 %v4617
        %v4771 = vpop.f32.mrb[0].mxu0
        %v4772 = vadd.f32 0.0, %v4771
        %v4773 = vpop.f32.mrb[0].mxu0
        %v4774 = vpop.f32.mrb[0].mxu0
        %v4775 = vadd.f32 0.0, %v4774
        %v4776 = vpop.f32.mrb[0].mxu0
        %4777 = vmatprep.mubr.bf16.mxu0 0
        %4778 = vmatmul.mubr.bf16.gmra.mrb[0].mxu0 %v4620
        %v4779 = vpop.f32.mrb[0].mxu0
        %v4780 = vadd.f32 0.0, %v4779
        %v4781 = vpop.f32.mrb[0].mxu0
        %v4782 = vpop.f32.mrb[0].mxu0
        %v4783 = vadd.f32 0.0, %v4782
        %v4784 = vpop.f32.mrb[0].mxu0
        %4785 = vdwg.mxu0
        %v4786 = vadd.f32 %v4316, %v4660
        %v4787 = vadd.f32 %v4317, %v4663
        %v4788 = vadd.f32 %v4318, %v4668
        %v4789 = vadd.f32 %v4319, %v4671
        %v4790 = vadd.f32 %v4320, %v4676
        %v4791 = vadd.f32 %v4321, %v4679
        %v4792 = vadd.f32 %v4322, %v4684
        %v4793 = vadd.f32 %v4323, %v4687
        %v4794 = vadd.f32 %v4324, %v4692
        %v4795 = vadd.f32 %v4325, %v4695
        %v4796 = vadd.f32 %v4326, %v4700
        %v4797 = vadd.f32 %v4327, %v4703
        %v4798 = vadd.f32 %v4328, %v4708
        %v4799 = vadd.f32 %v4329, %v4711
        %v4800 = vadd.f32 %v4330, %v4716
        %v4801 = vadd.f32 %v4331, %v4719
        %v4802 = vadd.f32 %v4332, %v4724
        %v4803 = vadd.f32 %v4333, %v4727
        %v4804 = vadd.f32 %v4334, %v4732
        %v4805 = vadd.f32 %v4335, %v4735
        %v4806 = vadd.f32 %v4336, %v4740
        %v4807 = vadd.f32 %v4337, %v4743
        %v4808 = vadd.f32 %v4338, %v4748
        %v4809 = vadd.f32 %v4339, %v4751
        %v4810 = vadd.f32 %v4340, %v4756
        %v4811 = vadd.f32 %v4341, %v4759
        %v4812 = vadd.f32 %v4342, %v4764
        %v4813 = vadd.f32 %v4343, %v4767
        %v4814 = vadd.f32 %v4344, %v4772
        %v4815 = vadd.f32 %v4345, %v4775
        %v4816 = vadd.f32 %v4346, %v4780
        %v4817 = vadd.f32 %v4347, %v4783
        %v4818 = vpack.c.bf16 %v4787, %v4786
        %v4819 = vpack.c.bf16 %v4789, %v4788
        %v4820 = vpack.c.bf16 %v4791, %v4790
        %v4821 = vpack.c.bf16 %v4793, %v4792
        %v4822 = vpack.c.bf16 %v4795, %v4794
        %v4823 = vpack.c.bf16 %v4797, %v4796
        %v4824 = vpack.c.bf16 %v4799, %v4798
        %v4825 = vpack.c.bf16 %v4801, %v4800
        %v4826 = vpack.c.bf16 %v4803, %v4802
        %v4827 = vpack.c.bf16 %v4805, %v4804
        %v4828 = vpack.c.bf16 %v4807, %v4806
        %v4829 = vpack.c.bf16 %v4809, %v4808
        %v4830 = vpack.c.bf16 %v4811, %v4810
        %v4831 = vpack.c.bf16 %v4813, %v4812
        %v4832 = vpack.c.bf16 %v4815, %v4814
        %v4833 = vpack.c.bf16 %v4817, %v4816
        %v4850 = vunpack.c.l.b16 %v4818
        %v4851 = vunpack.c.h.b16 %v4818
        %v4852 = vunpack.c.l.b16 %v4819
        %v4853 = vunpack.c.h.b16 %v4819
        %v4854 = vunpack.c.l.b16 %v4820
        %v4855 = vunpack.c.h.b16 %v4820
        %v4856 = vunpack.c.l.b16 %v4821
        %v4857 = vunpack.c.h.b16 %v4821
        %v4858 = vunpack.c.l.b16 %v4822
        %v4859 = vunpack.c.h.b16 %v4822
        %v4860 = vunpack.c.l.b16 %v4823
        %v4861 = vunpack.c.h.b16 %v4823
        %v4862 = vunpack.c.l.b16 %v4824
        %v4863 = vunpack.c.h.b16 %v4824
        %v4864 = vunpack.c.l.b16 %v4825
        %v4865 = vunpack.c.h.b16 %v4825
        %v4866 = vunpack.c.l.b16 %v4826
        %v4867 = vunpack.c.h.b16 %v4826
        %v4868 = vunpack.c.l.b16 %v4827
        %v4869 = vunpack.c.h.b16 %v4827
        %v4870 = vunpack.c.l.b16 %v4828
        %v4871 = vunpack.c.h.b16 %v4828
        %v4872 = vunpack.c.l.b16 %v4829
        %v4873 = vunpack.c.h.b16 %v4829
        %v4874 = vunpack.c.l.b16 %v4830
        %v4875 = vunpack.c.h.b16 %v4830
        %v4876 = vunpack.c.l.b16 %v4831
        %v4877 = vunpack.c.h.b16 %v4831
        %v4878 = vunpack.c.l.b16 %v4832
        %v4879 = vunpack.c.h.b16 %v4832
        %v4880 = vunpack.c.l.b16 %v4833
        %v4881 = vunpack.c.h.b16 %v4833
        %v4882 = vpack.c.b16 %v4850, %v4850
        %v4883 = vpack.c.b16 %v4851, %v4851
        %v4884 = vpack.c.b16 %v4852, %v4852
        %v4885 = vpack.c.b16 %v4853, %v4853
        %v4886 = vpack.c.b16 %v4854, %v4854
        %v4887 = vpack.c.b16 %v4855, %v4855
        %v4888 = vpack.c.b16 %v4856, %v4856
        %v4889 = vpack.c.b16 %v4857, %v4857
        %v4890 = vpack.c.b16 %v4858, %v4858
        %v4891 = vpack.c.b16 %v4859, %v4859
        %v4892 = vpack.c.b16 %v4860, %v4860
        %v4893 = vpack.c.b16 %v4861, %v4861
        %v4894 = vpack.c.b16 %v4862, %v4862
        %v4895 = vpack.c.b16 %v4863, %v4863
        %v4896 = vpack.c.b16 %v4864, %v4864
        %v4897 = vpack.c.b16 %v4865, %v4865
        %v4898 = vpack.c.b16 %v4866, %v4866
        %v4899 = vpack.c.b16 %v4867, %v4867
        %v4900 = vpack.c.b16 %v4868, %v4868
        %v4901 = vpack.c.b16 %v4869, %v4869
        %v4902 = vpack.c.b16 %v4870, %v4870
        %v4903 = vpack.c.b16 %v4871, %v4871
        %v4904 = vpack.c.b16 %v4872, %v4872
        %v4905 = vpack.c.b16 %v4873, %v4873
        %v4906 = vpack.c.b16 %v4874, %v4874
        %v4907 = vpack.c.b16 %v4875, %v4875
        %v4908 = vpack.c.b16 %v4876, %v4876
        %v4909 = vpack.c.b16 %v4877, %v4877
        %v4910 = vpack.c.b16 %v4878, %v4878
        %v4911 = vpack.c.b16 %v4879, %v4879
        %v4912 = vpack.c.b16 %v4880, %v4880
        %v4913 = vpack.c.b16 %v4881, %v4881
        %vm4946 = vcmask 60416
        %4947 = vst.msk [vmem:[%s257] sm:$0xf] %vm4946, %v4882
        %4948 = vst.msk [vmem:[%s257 + $0x4] sm:$0xf] %vm4946, %v4883
        %4949 = vst.msk [vmem:[%s257 + $0x8] sm:$0xf] %vm4946, %v4884
        %4950 = vst.msk [vmem:[%s257 + $0xc] sm:$0xf] %vm4946, %v4885
        %4951 = vst.msk [vmem:[%s257 + $0x10] sm:$0xf] %vm4946, %v4886
        %4952 = vst.msk [vmem:[%s257 + $0x14] sm:$0xf] %vm4946, %v4887
        %4953 = vst.msk [vmem:[%s257 + $0x18] sm:$0xf] %vm4946, %v4888
        %4954 = vst.msk [vmem:[%s257 + $0x1c] sm:$0xf] %vm4946, %v4889
        %4955 = vst.msk [vmem:[%s257 + $0x20] sm:$0xf] %vm4946, %v4890
        %4956 = vst.msk [vmem:[%s257 + $0x24] sm:$0xf] %vm4946, %v4891
        %4957 = vst.msk [vmem:[%s257 + $0x28] sm:$0xf] %vm4946, %v4892
        %4958 = vst.msk [vmem:[%s257 + $0x2c] sm:$0xf] %vm4946, %v4893
        %4959 = vst.msk [vmem:[%s257 + $0x30] sm:$0xf] %vm4946, %v4894
        %4960 = vst.msk [vmem:[%s257 + $0x34] sm:$0xf] %vm4946, %v4895
        %4961 = vst.msk [vmem:[%s257 + $0x38] sm:$0xf] %vm4946, %v4896
        %4962 = vst.msk [vmem:[%s257 + $0x3c] sm:$0xf] %vm4946, %v4897
        %4963 = vst.msk [vmem:[%s257 + $0x40] sm:$0xf] %vm4946, %v4898
        %4964 = vst.msk [vmem:[%s257 + $0x44] sm:$0xf] %vm4946, %v4899
        %4965 = vst.msk [vmem:[%s257 + $0x48] sm:$0xf] %vm4946, %v4900
        %4966 = vst.msk [vmem:[%s257 + $0x4c] sm:$0xf] %vm4946, %v4901
        %4967 = vst.msk [vmem:[%s257 + $0x50] sm:$0xf] %vm4946, %v4902
        %4968 = vst.msk [vmem:[%s257 + $0x54] sm:$0xf] %vm4946, %v4903
        %4969 = vst.msk [vmem:[%s257 + $0x58] sm:$0xf] %vm4946, %v4904
        %4970 = vst.msk [vmem:[%s257 + $0x5c] sm:$0xf] %vm4946, %v4905
        %4971 = vst.msk [vmem:[%s257 + $0x60] sm:$0xf] %vm4946, %v4906
        %4972 = vst.msk [vmem:[%s257 + $0x64] sm:$0xf] %vm4946, %v4907
        %4973 = vst.msk [vmem:[%s257 + $0x68] sm:$0xf] %vm4946, %v4908
        %4974 = vst.msk [vmem:[%s257 + $0x6c] sm:$0xf] %vm4946, %v4909
        %4975 = vst.msk [vmem:[%s257 + $0x70] sm:$0xf] %vm4946, %v4910
        %4976 = vst.msk [vmem:[%s257 + $0x74] sm:$0xf] %vm4946, %v4911
        %4977 = vst.msk [vmem:[%s257 + $0x78] sm:$0xf] %vm4946, %v4912
        %4978 = vst.msk [vmem:[%s257 + $0x7c] sm:$0xf] %vm4946, %v4913
        %vm4979 = vcmask 64512
        %v4980 = vsel %vm4979, %v4786, 0.0
        %v4981 = vsel %vm4979, %v4787, 0.0
        %v4982 = vadd.f32 %v4980, %v4981
        %v4983 = vsel %vm4979, %v4788, 0.0
        %v4984 = vadd.f32 %v4982, %v4983
        %v4985 = vsel %vm4979, %v4789, 0.0
        %v4986 = vadd.f32 %v4984, %v4985
        %v4987 = vsel %vm4979, %v4790, 0.0
        %v4988 = vadd.f32 %v4986, %v4987
        %v4989 = vsel %vm4979, %v4791, 0.0
        %v4990 = vadd.f32 %v4988, %v4989
        %v4991 = vsel %vm4979, %v4792, 0.0
        %v4992 = vadd.f32 %v4990, %v4991
        %v4993 = vsel %vm4979, %v4793, 0.0
        %v4994 = vadd.f32 %v4992, %v4993
        %v4995 = vsel %vm4979, %v4794, 0.0
        %v4996 = vadd.f32 %v4994, %v4995
        %v4997 = vsel %vm4979, %v4795, 0.0
        %v4998 = vadd.f32 %v4996, %v4997
        %v4999 = vsel %vm4979, %v4796, 0.0
        %v5000 = vadd.f32 %v4998, %v4999
        %v5001 = vsel %vm4979, %v4797, 0.0
        %v5002 = vadd.f32 %v5000, %v5001
        %v5003 = vsel %vm4979, %v4798, 0.0
        %v5004 = vadd.f32 %v5002, %v5003
        %v5005 = vsel %vm4979, %v4799, 0.0
        %v5006 = vadd.f32 %v5004, %v5005
        %v5007 = vsel %vm4979, %v4800, 0.0
        %v5008 = vadd.f32 %v5006, %v5007
        %v5009 = vsel %vm4979, %v4801, 0.0
        %v5010 = vadd.f32 %v5008, %v5009
        %v5011 = vsel %vm4979, %v4802, 0.0
        %v5012 = vadd.f32 %v5010, %v5011
        %v5013 = vsel %vm4979, %v4803, 0.0
        %v5014 = vadd.f32 %v5012, %v5013
        %v5015 = vsel %vm4979, %v4804, 0.0
        %v5016 = vadd.f32 %v5014, %v5015
        %v5017 = vsel %vm4979, %v4805, 0.0
        %v5018 = vadd.f32 %v5016, %v5017
        %v5019 = vsel %vm4979, %v4806, 0.0
        %v5020 = vadd.f32 %v5018, %v5019
        %v5021 = vsel %vm4979, %v4807, 0.0
        %v5022 = vadd.f32 %v5020, %v5021
        %v5023 = vsel %vm4979, %v4808, 0.0
        %v5024 = vadd.f32 %v5022, %v5023
        %v5025 = vsel %vm4979, %v4809, 0.0
        %v5026 = vadd.f32 %v5024, %v5025
        %v5027 = vsel %vm4979, %v4810, 0.0
        %v5028 = vadd.f32 %v5026, %v5027
        %v5029 = vsel %vm4979, %v4811, 0.0
        %v5030 = vadd.f32 %v5028, %v5029
        %v5031 = vsel %vm4979, %v4812, 0.0
        %v5032 = vadd.f32 %v5030, %v5031
        %v5033 = vsel %vm4979, %v4813, 0.0
        %v5034 = vadd.f32 %v5032, %v5033
        %v5035 = vsel %vm4979, %v4814, 0.0
        %v5036 = vadd.f32 %v5034, %v5035
        %v5037 = vsel %vm4979, %v4815, 0.0
        %v5038 = vadd.f32 %v5036, %v5037
        %v5039 = vsel %vm4979, %v4816, 0.0
        %v5040 = vadd.f32 %v5038, %v5039
        %v5041 = vsel %vm4979, %v4817, 0.0
        %v5042 = vadd.f32 %v5040, %v5041
        %v5043 = vrot.slane %v5042, 4
        %v5044 = vadd.f32 %v5042, %v5043
        %v5045 = vrot.slane %v5044, 2
        %v5046 = vadd.f32 %v5044, %v5045
        %v5047 = vrot.slane %v5046, 1
        %v5048 = vadd.f32 %v5046, %v5047
        %vm5049 = vcmask 57344
        %5050 = vst.msk [vmem:[%s234] sm:$0x1] %vm5049, %v5048
        %v5051 = vmul.f32 %v4786, %v4786
        %v5052 = vmul.f32 %v4787, %v4787
        %v5053 = vmul.f32 %v4788, %v4788
        %v5054 = vmul.f32 %v4789, %v4789
        %v5055 = vmul.f32 %v4790, %v4790
        %v5056 = vmul.f32 %v4791, %v4791
        %v5057 = vmul.f32 %v4792, %v4792
        %v5058 = vmul.f32 %v4793, %v4793
        %v5059 = vmul.f32 %v4794, %v4794
        %v5060 = vmul.f32 %v4795, %v4795
        %v5061 = vmul.f32 %v4796, %v4796
        %v5062 = vmul.f32 %v4797, %v4797
        %v5063 = vmul.f32 %v4798, %v4798
        %v5064 = vmul.f32 %v4799, %v4799
        %v5065 = vmul.f32 %v4800, %v4800
        %v5066 = vmul.f32 %v4801, %v4801
        %v5067 = vmul.f32 %v4802, %v4802
        %v5068 = vmul.f32 %v4803, %v4803
        %v5069 = vmul.f32 %v4804, %v4804
        %v5070 = vmul.f32 %v4805, %v4805
        %v5071 = vmul.f32 %v4806, %v4806
        %v5072 = vmul.f32 %v4807, %v4807
        %v5073 = vmul.f32 %v4808, %v4808
        %v5074 = vmul.f32 %v4809, %v4809
        %v5075 = vmul.f32 %v4810, %v4810
        %v5076 = vmul.f32 %v4811, %v4811
        %v5077 = vmul.f32 %v4812, %v4812
        %v5078 = vmul.f32 %v4813, %v4813
        %v5079 = vmul.f32 %v4814, %v4814
        %v5080 = vmul.f32 %v4815, %v4815
        %v5081 = vmul.f32 %v4816, %v4816
        %v5082 = vmul.f32 %v4817, %v4817
        %v5083 = vsel %vm4979, %v5051, 0.0
        %v5084 = vsel %vm4979, %v5052, 0.0
        %v5085 = vadd.f32 %v5083, %v5084
        %v5086 = vsel %vm4979, %v5053, 0.0
        %v5087 = vadd.f32 %v5085, %v5086
        %v5088 = vsel %vm4979, %v5054, 0.0
        %v5089 = vadd.f32 %v5087, %v5088
        %v5090 = vsel %vm4979, %v5055, 0.0
        %v5091 = vadd.f32 %v5089, %v5090
        %v5092 = vsel %vm4979, %v5056, 0.0
        %v5093 = vadd.f32 %v5091, %v5092
        %v5094 = vsel %vm4979, %v5057, 0.0
        %v5095 = vadd.f32 %v5093, %v5094
        %v5096 = vsel %vm4979, %v5058, 0.0
        %v5097 = vadd.f32 %v5095, %v5096
        %v5098 = vsel %vm4979, %v5059, 0.0
        %v5099 = vadd.f32 %v5097, %v5098
        %v5100 = vsel %vm4979, %v5060, 0.0
        %v5101 = vadd.f32 %v5099, %v5100
        %v5102 = vsel %vm4979, %v5061, 0.0
        %v5103 = vadd.f32 %v5101, %v5102
        %v5104 = vsel %vm4979, %v5062, 0.0
        %v5105 = vadd.f32 %v5103, %v5104
        %v5106 = vsel %vm4979, %v5063, 0.0
        %v5107 = vadd.f32 %v5105, %v5106
        %v5108 = vsel %vm4979, %v5064, 0.0
        %v5109 = vadd.f32 %v5107, %v5108
        %v5110 = vsel %vm4979, %v5065, 0.0
        %v5111 = vadd.f32 %v5109, %v5110
        %v5112 = vsel %vm4979, %v5066, 0.0
        %v5113 = vadd.f32 %v5111, %v5112
        %v5114 = vsel %vm4979, %v5067, 0.0
        %v5115 = vadd.f32 %v5113, %v5114
        %v5116 = vsel %vm4979, %v5068, 0.0
        %v5117 = vadd.f32 %v5115, %v5116
        %v5118 = vsel %vm4979, %v5069, 0.0
        %v5119 = vadd.f32 %v5117, %v5118
        %v5120 = vsel %vm4979, %v5070, 0.0
        %v5121 = vadd.f32 %v5119, %v5120
        %v5122 = vsel %vm4979, %v5071, 0.0
        %v5123 = vadd.f32 %v5121, %v5122
        %v5124 = vsel %vm4979, %v5072, 0.0
        %v5125 = vadd.f32 %v5123, %v5124
        %v5126 = vsel %vm4979, %v5073, 0.0
        %v5127 = vadd.f32 %v5125, %v5126
        %v5128 = vsel %vm4979, %v5074, 0.0
        %v5129 = vadd.f32 %v5127, %v5128
        %v5130 = vsel %vm4979, %v5075, 0.0
        %v5131 = vadd.f32 %v5129, %v5130
        %v5132 = vsel %vm4979, %v5076, 0.0
        %v5133 = vadd.f32 %v5131, %v5132
        %v5134 = vsel %vm4979, %v5077, 0.0
        %v5135 = vadd.f32 %v5133, %v5134
        %v5136 = vsel %vm4979, %v5078, 0.0
        %v5137 = vadd.f32 %v5135, %v5136
        %v5138 = vsel %vm4979, %v5079, 0.0
        %v5139 = vadd.f32 %v5137, %v5138
        %v5140 = vsel %vm4979, %v5080, 0.0
        %v5141 = vadd.f32 %v5139, %v5140
        %v5142 = vsel %vm4979, %v5081, 0.0
        %v5143 = vadd.f32 %v5141, %v5142
        %v5144 = vsel %vm4979, %v5082, 0.0
        %v5145 = vadd.f32 %v5143, %v5144
        %v5146 = vrot.slane %v5145, 4
        %v5147 = vadd.f32 %v5145, %v5146
        %v5148 = vrot.slane %v5147, 2
        %v5149 = vadd.f32 %v5147, %v5148
        %v5150 = vrot.slane %v5149, 1
        %v5151 = vadd.f32 %v5149, %v5150
        %5152 = vst.msk [vmem:[%s240] sm:$0x1] %vm5049, %v5151
        %p5153 = scmp.lt.s32.totalorder %s26, 1
        %s5154 = scalar_select %p5153, %s26, 1
        %p5155 = scmp.lt.s32.totalorder %s27, 0
        %s5156 = scalar_select %p5155, %s27, 0
        %s5157 = smul.addr %s5154, 32
        %s5158 = sadd.s32 %s5156, %s5157
        %s5159 = smul.addr %s5158, 4
        %s5160 = scalar_lea.vmem %s2, %s5159
        %s5161 = sand.u32 %s124, 1
        %s5162 = scalar_lea.sflag [#allocation3], %s5161
        %s5163 = sand.u32 %s124, 1
        %s5164 = scalar_lea.vmem [#allocation2], %s5163
        %s5165 = sand.u32 %s152, 1
        %s5166 = scalar_lea.sflag [#allocation5], %s5165
        %s5167 = sand.u32 %s152, 1
        %s5168 = scalar_lea.vmem [#allocation4], %s5167
        // Predicated region
        $region29: #{tpu_custom_call.1} parent=27 // pred_check
          %p5169 = pneg %p106
        $region30: #{tpu_custom_call.1} parent=27 // pred_check_branch
          %5171 = sbr.rel (%p5169) target = $region32
        $region31: #{tpu_custom_call.1} parent=27 // pred_region
          _
        $region32: #{tpu_custom_call.1} parent=27 // pred_fallthru
          _
        // Predicated region
        $region33: #{tpu_custom_call.1} parent=27 // pred_check
          %p5172 = pneg %p134
        $region34: #{tpu_custom_call.1} parent=27 // pred_check_branch
          %5174 = sbr.rel (%p5172) target = $region36
        $region35: #{tpu_custom_call.1} parent=27 // pred_region
          %s5176 = ssub.s32 16, 16
          %5177 = vsyncadd %s5162, %s5176
          %s5178 = sadd.s32 %s27, %s26
          %s5179 = smul.addr %s5178, 16
          %s5180 = scalar_lea.hbm %s3, %s5179
          %s5182 = sshll.u32 %s5164, 4
          %s5183 = int_to_ptr.vmem [resolvable:$true] %s5182
          %5185 = dma.vmem_to_hbm [thread:$0]  %s5183, 16, %s5180, %s5162
        $region36: #{tpu_custom_call.1} parent=27 // pred_fallthru
          _
        // Predicated region
        $region37: #{tpu_custom_call.1} parent=27 // pred_check
          %p5186 = pneg %p162
        $region38: #{tpu_custom_call.1} parent=27 // pred_check_branch
          %5188 = sbr.rel (%p5186) target = $region40
        $region39: #{tpu_custom_call.1} parent=27 // pred_region
          %s5190 = ssub.s32 16, 16
          %5191 = vsyncadd %s5166, %s5190
          %s5192 = sadd.s32 %s27, %s26
          %s5193 = smul.addr %s5192, 16
          %s5194 = scalar_lea.hbm %s4, %s5193
          %s5196 = sshll.u32 %s5168, 4
          %s5197 = int_to_ptr.vmem [resolvable:$true] %s5196
          %5199 = dma.vmem_to_hbm [thread:$0]  %s5197, 16, %s5194, %s5166
        $region40: #{tpu_custom_call.1} parent=27 // pred_fallthru
          _
      $region28: #{tpu_custom_call.1} parent=5 // pred_fallthru
        _
      %p5200 = scmp.le.s32.totalorder 2, %s17
      // Predicated region
      $region41: #{tpu_custom_call.1} parent=5 // pred_check
        %p5201 = pneg %p5200
      $region42: #{tpu_custom_call.1} parent=5 // pred_check_branch
        %5203 = sbr.rel (%p5201) target = $region44
      $region43: #{tpu_custom_call.1} parent=5 // pred_region
        %s5204 = ssub.s32 %s17, 2
        // Predicated region
        $region45: #{tpu_custom_call.1} parent=43 // pred_check
          %p5205 = pneg %p112
        $region46: #{tpu_custom_call.1} parent=43 // pred_check_branch
          %5207 = sbr.rel (%p5205) target = $region48
        $region47: #{tpu_custom_call.1} parent=43 // pred_region
          %p5208 = scmp.lt.s32.totalorder %s28, 1
          %s5209 = scalar_select %p5208, %s28, 1
          %p5210 = scmp.lt.s32.totalorder %s29, 0
          %s5211 = scalar_select %p5210, %s29, 0
          %s5212 = smul.addr %s5209, 32
          %s5213 = sadd.s32 %s5211, %s5212
          %s5214 = smul.addr %s5213, 4
          %s5215 = scalar_lea.vmem %s2, %s5214
        $region48: #{tpu_custom_call.1} parent=43 // pred_fallthru
          _
        // Predicated region
        $region49: #{tpu_custom_call.1} parent=43 // pred_check
          %p5216 = pneg %p140
        $region50: #{tpu_custom_call.1} parent=43 // pred_check_branch
          %5218 = sbr.rel (%p5216) target = $region52
        $region51: #{tpu_custom_call.1} parent=43 // pred_region
          %s5219 = sand.u32 %s125, 1
          %s5220 = scalar_lea.sflag [#allocation3], %s5219
          %s5221 = sand.u32 %s125, 1
          %s5222 = scalar_lea.vmem [#allocation2], %s5221
          %5223 = dma.done %s5220, 16
        $region52: #{tpu_custom_call.1} parent=43 // pred_fallthru
          _
        // Predicated region
        $region53: #{tpu_custom_call.1} parent=43 // pred_check
          %p5224 = pneg %p168
        $region54: #{tpu_custom_call.1} parent=43 // pred_check_branch
          %5226 = sbr.rel (%p5224) target = $region56
        $region55: #{tpu_custom_call.1} parent=43 // pred_region
          %s5227 = sand.u32 %s153, 1
          %s5228 = scalar_lea.sflag [#allocation5], %s5227
          %s5229 = sand.u32 %s153, 1
          %s5230 = scalar_lea.vmem [#allocation4], %s5229
          %5231 = dma.done %s5228, 16
        $region56: #{tpu_custom_call.1} parent=43 // pred_fallthru
          _
      $region44: #{tpu_custom_call.1} parent=5 // pred_fallthru
        _
    $region6: #{tpu_custom_call.1} parent=1 // loop_footer
      %s21 = sadd.s32 1, %s17
    $region7: #{tpu_custom_call.1} parent=1 // loop_footer_branch
      %16 = sbr.rel target = $region3
    $region8: #{tpu_custom_call.1} parent=1 // loop_exit
      _
    %5232 = vsyncpa [#allocation3], 1
    %s5233 = scalar_lea.sflag [#allocation3], 1
    %5234 = vsyncpa %s5233, 1
    %5235 = vsyncpa [#allocation5], 1
    %s5236 = scalar_lea.sflag [#allocation5], 1
    %5237 = vsyncpa %s5236, 1

</llo_original>
